<compile_context>
chip_gen: v5e
topology: v5e:2x2
jax: 0.10.0
libtpu: 0.0.40
codegen_flags: <defaults>
</compile_context>

<pallas_src>
import jax
import jax.numpy as jnp
from jax.experimental import pallas as pl
from jax.experimental.pallas import tpu as pltpu


# ----------------------------------------------------------------------------
# Fused kernel: BN1 -> ReLU -> conv3x3 -> (+BN2) ReLU -> conv3x3  (+ 1x1/BN3)
# ----------------------------------------------------------------------------
def _make_fused_kernel(H, W, cin, cout):
    HW = H * W

    def kernel(x_ref, s1_ref, t1_ref, w1_ref, b1_ref, w2_ref, wavg_ref,
               bout_ref, o_ref):
        # Flattened row index m and column index, generated in-kernel.
        row = jax.lax.broadcasted_iota(jnp.int32, (HW, 1), 0)
        col = row % W
        ml = (col != 0).astype(jnp.float32)        # dx = -1 valid at col > 0
        mr = (col != W - 1).astype(jnp.float32)    # dx = +1 valid at col < W-1
        top_ok = row >= W                          # ky = 0 reads a real row
        bot_ok = row < HW - W                      # ky = 2 reads a real row

        x = x_ref[0]                               # (HW, cin) bf16

        # ---- BN1 (folded affine) + ReLU, f32 math --------------------------
        h = jnp.maximum(x.astype(jnp.float32) * s1_ref[...] + t1_ref[...], 0.0)

        def conv3x3(act, w_ref):
            """3x3 conv on a row-major-flattened (HW, C) activation.

            The three vertical taps (ky) are fused along the contraction dim
            (K = 3*C) -> one MXU matmul per horizontal tap dx (3 per conv).
            Vertical shifts are sublane rolls by +-W with out-of-image rows
            masked to zero; the +-1 horizontal shifts are one roll of the
            fused operand with the row-wrap outputs killed by ml / mr.
            """
            top = jnp.where(top_ok, pltpu.roll(act, W, 0), 0.0)        # ky=0
            bot = jnp.where(bot_ok, pltpu.roll(act, HW - W, 0), 0.0)   # ky=2
            cat0 = jnp.concatenate([top, act, bot], axis=1)            # dx= 0
            cat_m = pltpu.roll(cat0, 1, 0)                             # dx=-1
            cat_p = pltpu.roll(cat0, HW - 1, 0)                        # dx=+1
            y = jnp.dot(cat0.astype(jnp.bfloat16), w_ref[1],
                        preferred_element_type=jnp.float32)
            y = y + ml * jnp.dot(cat_m.astype(jnp.bfloat16), w_ref[0],
                                 preferred_element_type=jnp.float32)
            y = y + mr * jnp.dot(cat_p.astype(jnp.bfloat16), w_ref[2],
                                 preferred_element_type=jnp.float32)
            return y

        # ---- conv3x3 #1 (BN2 folded into weights / bias) + ReLU -------------
        a1 = jnp.maximum(conv3x3(h, w1_ref) + b1_ref[...], 0.0)

        # ---- conv3x3 #2 ------------------------------------------------------
        y2 = conv3x3(a1, w2_ref)

        # ---- ch_avg branch: 1x1 conv (BN3 scale folded), on raw x -----------
        ch = jnp.dot(x, wavg_ref[...], preferred_element_type=jnp.float32)

        # combined bias (conv2 bias + BN3 shift) added once at the end
        o_ref[0] = y2 + ch + bout_ref[...]

    return kernel


# ----------------------------------------------------------------------------
# Glue: BN folding, weight repacking, bilinear upsample, pallas_call wrapper.
# ----------------------------------------------------------------------------
def _bn_affine(gamma, beta, mean, var, eps=1e-5):
    s = gamma / jnp.sqrt(var + eps)
    return s, beta - mean * s


def _interp_matrix(n_in, n_out):
    """PyTorch bilinear align_corners=True interpolation matrix (n_out, n_in)."""
    if n_in == 1:
        return jnp.ones((n_out, 1), jnp.float32)
    src = jnp.arange(n_out, dtype=jnp.float32) * (n_in - 1) / (n_out - 1)
    lo = jnp.clip(jnp.floor(src).astype(jnp.int32), 0, n_in - 2)
    frac = src - lo.astype(jnp.float32)
    rows = jnp.arange(n_out)
    m = jnp.zeros((n_out, n_in), jnp.float32)
    m = m.at[rows, lo].add(1.0 - frac)
    m = m.at[rows, lo + 1].add(frac)
    return m


def _bilinear_upsample_x2_nhwc(x_nchw):
    """NCHW -> NHWC with spatial doubled (bilinear, align_corners=True)."""
    _, _, h, w = x_nchw.shape
    ah = _interp_matrix(h, 2 * h)
    aw = _interp_matrix(w, 2 * w)
    return jnp.einsum('ih,jw,nchw->nijc', ah, aw, x_nchw,
                      precision=jax.lax.Precision.HIGHEST)


def _bilinear_upsample_x2_nchw(x_nchw):
    _, _, h, w = x_nchw.shape
    ah = _interp_matrix(h, 2 * h)
    aw = _interp_matrix(w, 2 * w)
    return jnp.einsum('ih,jw,nchw->ncij', ah, aw, x_nchw,
                      precision=jax.lax.Precision.HIGHEST)


def pre_activate_res_up_block_pallas(down_input, skip_input, p):
    n, _, H, W = skip_input.shape
    HW = H * W

    # Upsample + concat in NHWC, cast once to bf16 (halves kernel input bytes).
    up_nhwc = _bilinear_upsample_x2_nhwc(down_input)           # (N,H,W,Cd)
    skip_nhwc = jnp.transpose(skip_input, (0, 2, 3, 1))        # (N,H,W,Cs)
    x_nhwc = jnp.concatenate([up_nhwc, skip_nhwc], axis=-1)    # (N,H,W,Cin)
    cin = x_nhwc.shape[-1]
    cout = p['conv1_w'].shape[0]
    x_flat = x_nhwc.reshape(n, HW, cin).astype(jnp.bfloat16)

    # --- fold eval-mode BN into affine / conv weights ------------------------
    s1, t1 = _bn_affine(p['bn1_g'], p['bn1_b'], p['bn1_m'], p['bn1_v'])
    s2, t2 = _bn_affine(p['bn2_g'], p['bn2_b'], p['bn2_m'], p['bn2_v'])
    s3, t3 = _bn_affine(p['bn3_g'], p['bn3_b'], p['bn3_m'], p['bn3_v'])

    # conv1 (BN2 scale folded): (co,ci,kh,kw) -> (kw, kh*cin + ci, co), bf16
    w1f = p['conv1_w'] * s2[:, None, None, None]
    w1_k = jnp.transpose(w1f, (3, 2, 1, 0)).reshape(3, 3 * cin, cout)
    w1_k = w1_k.astype(jnp.bfloat16)
    b1_row = (p['conv1_b'] * s2 + t2).reshape(1, cout).astype(jnp.float32)

    # conv2: (co,ci,kh,kw) -> (kw, kh*cout + ci, co), bf16
    w2_k = jnp.transpose(p['conv2_w'], (3, 2, 1, 0)).reshape(3, 3 * cout, cout)
    w2_k = w2_k.astype(jnp.bfloat16)

    # 1x1 ch_avg conv with BN3 scale folded: (cin, cout), bf16
    wavg = (p['avg_w'][:, :, 0, 0] * s3[:, None]).T.astype(jnp.bfloat16)

    # combined output bias: conv2 bias + BN3 shift
    bout = (p['conv2_b'] + t3).reshape(1, cout).astype(jnp.float32)

    s1_row = s1.reshape(1, cin).astype(jnp.float32)
    t1_row = t1.reshape(1, cin).astype(jnp.float32)

    out_flat = pl.pallas_call(
        _make_fused_kernel(H, W, cin, cout),
        out_shape=jax.ShapeDtypeStruct((n, HW, cout), jnp.float32),
        grid_spec=pltpu.PrefetchScalarGridSpec(
            num_scalar_prefetch=0,
            grid=(n,),
            in_specs=[
                pl.BlockSpec((1, HW, cin), lambda i: (i, 0, 0)),        # x
                pl.BlockSpec((1, cin), lambda i: (0, 0)),               # s1
                pl.BlockSpec((1, cin), lambda i: (0, 0)),               # t1
                pl.BlockSpec((3, 3 * cin, cout), lambda i: (0, 0, 0)),  # w1
                pl.BlockSpec((1, cout), lambda i: (0, 0)),              # b1
                pl.BlockSpec((3, 3 * cout, cout), lambda i: (0, 0, 0)), # w2
                pl.BlockSpec((cin, cout), lambda i: (0, 0)),            # wavg
                pl.BlockSpec((1, cout), lambda i: (0, 0)),              # bout
            ],
            out_specs=pl.BlockSpec((1, HW, cout), lambda i: (i, 0, 0)),
        ),
        compiler_params=pltpu.CompilerParams(
            dimension_semantics=("parallel",),
            vmem_limit_bytes=64 * 1024 * 1024),
    )(x_flat, s1_row, t1_row, w1_k, b1_row, w2_k, wavg, bout)

    # exact-size output -> NCHW for the caller
    out = out_flat.reshape(n, H, W, cout)
    return jnp.transpose(out, (0, 3, 1, 2))


# ----------------------------------------------------------------------------
# Pure-JAX f32 reference (lax.conv) for numerical sanity check.
# ----------------------------------------------------------------------------
def _bn_eval(x, g, b, m, v, eps=1e-5):
    s = g / jnp.sqrt(v + eps)
    t = b - m * s
    return x * s[None, :, None, None] + t[None, :, None, None]


def _conv_ref(x, w, b=None, padding=1):
    out = jax.lax.conv_general_dilated(
        x, w, window_strides=(1, 1),
        padding=((padding, padding), (padding, padding)),
        dimension_numbers=('NCHW', 'OIHW', 'NCHW'),
        precision=jax.lax.Precision.HIGHEST)
    if b is not None:
        out = out + b[None, :, None, None]
    return out


def forward_reference(down_input, skip_input, p):
    x = jnp.concatenate(
        [_bilinear_upsample_x2_nchw(down_input), skip_input], axis=1)
    h = jax.nn.relu(_bn_eval(x, p['bn1_g'], p['bn1_b'], p['bn1_m'], p['bn1_v']))
    a = _conv_ref(h, p['conv1_w'], p['conv1_b'], padding=1)
    a = jax.nn.relu(_bn_eval(a, p['bn2_g'], p['bn2_b'], p['bn2_m'], p['bn2_v']))
    y = _conv_ref(a, p['conv2_w'], p['conv2_b'], padding=1)
    ch = _conv_ref(x, p['avg_w'], None, padding=0)
    ch = _bn_eval(ch, p['bn3_g'], p['bn3_b'], p['bn3_m'], p['bn3_v'])
    return y + ch


# ----------------------------------------------------------------------------
if __name__ == "__main__":
    N, C_DOWN, C_SKIP, C_OUT = 2, 4, 4, 4
    C_IN = C_DOWN + C_SKIP                       # 8
    HD, WD = 8, 8                                # down_input spatial
    H, W = 2 * HD, 2 * WD                        # 16x16 after upsample

    key = jax.random.PRNGKey(0)
    ks = jax.random.split(key, 20)

    down_input = jax.random.normal(ks[0], (N, C_DOWN, HD, WD), jnp.float32)
    skip_input = jax.random.normal(ks[1], (N, C_SKIP, H, W), jnp.float32)

    params = {
        'conv1_w': 0.05 * jax.random.normal(ks[2], (C_OUT, C_IN, 3, 3), jnp.float32),
        'conv1_b': 0.05 * jax.random.normal(ks[3], (C_OUT,), jnp.float32),
        'conv2_w': 0.05 * jax.random.normal(ks[4], (C_OUT, C_OUT, 3, 3), jnp.float32),
        'conv2_b': 0.05 * jax.random.normal(ks[5], (C_OUT,), jnp.float32),
        'avg_w':   0.05 * jax.random.normal(ks[6], (C_OUT, C_IN, 1, 1), jnp.float32),
        'bn1_g': 1.0 + 0.1 * jax.random.normal(ks[7], (C_IN,), jnp.float32),
        'bn1_b': 0.1 * jax.random.normal(ks[8], (C_IN,), jnp.float32),
        'bn1_m': 0.1 * jax.random.normal(ks[9], (C_IN,), jnp.float32),
        'bn1_v': 0.5 + jax.random.uniform(ks[10], (C_IN,), jnp.float32),
        'bn2_g': 1.0 + 0.1 * jax.random.normal(ks[11], (C_OUT,), jnp.float32),
        'bn2_b': 0.1 * jax.random.normal(ks[12], (C_OUT,), jnp.float32),
        'bn2_m': 0.1 * jax.random.normal(ks[13], (C_OUT,), jnp.float32),
        'bn2_v': 0.5 + jax.random.uniform(ks[14], (C_OUT,), jnp.float32),
        'bn3_g': 1.0 + 0.1 * jax.random.normal(ks[15], (C_OUT,), jnp.float32),
        'bn3_b': 0.1 * jax.random.normal(ks[16], (C_OUT,), jnp.float32),
        'bn3_m': 0.1 * jax.random.normal(ks[17], (C_OUT,), jnp.float32),
        'bn3_v': 0.5 + jax.random.uniform(ks[18], (C_OUT,), jnp.float32),
    }

    out_pallas = pre_activate_res_up_block_pallas(down_input, skip_input, params)
    out_pallas = jax.block_until_ready(out_pallas)

    out_ref = forward_reference(down_input, skip_input, params)
    max_err = float(jnp.max(jnp.abs(out_pallas - out_ref)))
    assert out_pallas.shape == (N, C_OUT, H, W), out_pallas.shape
    # bf16 inputs + bf16 matmul operands with f32 accumulation -> few e-3 error
    assert max_err < 3e-2, f"max abs error too large: {max_err}"

    print("KERNEL_OK")
</pallas_src>

<mosaic_0001>
module attributes {stable_mosaic.version = 11 : i64} {
  func.func @kernel(%arg0: i32, %arg1: memref<1x256x8xbf16, #tpu.memory_space<vmem>>, %arg2: memref<1x8xf32, #tpu.memory_space<vmem>>, %arg3: memref<1x8xf32, #tpu.memory_space<vmem>>, %arg4: memref<3x24x4xbf16, #tpu.memory_space<vmem>>, %arg5: memref<1x4xf32, #tpu.memory_space<vmem>>, %arg6: memref<3x12x4xbf16, #tpu.memory_space<vmem>>, %arg7: memref<8x4xbf16, #tpu.memory_space<vmem>>, %arg8: memref<1x4xf32, #tpu.memory_space<vmem>>, %arg9: memref<1x256x4xf32, #tpu.memory_space<vmem>>) attributes {dimension_semantics = [#tpu.dimension_semantics<parallel>], iteration_bounds = array<i64: 2>, scalar_prefetch = 0 : i64, scratch_operands = 0 : i64, tpu.core_type = #tpu.core_type<tc>, window_params = [{transform_indices = @transform_0, window_bounds = array<i64: 1, 256, 8>}, {pipeline_mode = #tpu.pipeline_mode<synchronous>, transform_indices = @transform_1, window_bounds = array<i64: 1, 8>}, {pipeline_mode = #tpu.pipeline_mode<synchronous>, transform_indices = @transform_2, window_bounds = array<i64: 1, 8>}, {pipeline_mode = #tpu.pipeline_mode<synchronous>, transform_indices = @transform_3, window_bounds = array<i64: 3, 24, 4>}, {pipeline_mode = #tpu.pipeline_mode<synchronous>, transform_indices = @transform_4, window_bounds = array<i64: 1, 4>}, {pipeline_mode = #tpu.pipeline_mode<synchronous>, transform_indices = @transform_5, window_bounds = array<i64: 3, 12, 4>}, {pipeline_mode = #tpu.pipeline_mode<synchronous>, transform_indices = @transform_6, window_bounds = array<i64: 8, 4>}, {pipeline_mode = #tpu.pipeline_mode<synchronous>, transform_indices = @transform_7, window_bounds = array<i64: 1, 4>}, {transform_indices = @transform_8, window_bounds = array<i64: 1, 256, 4>}]} {
    %0 = tpu.iota {dimensions = array<i32: 0>} : vector<256x1xi32>
    %c16_i32 = arith.constant 16 : i32
    %c0_i32 = arith.constant 0 : i32
    %1 = arith.cmpi eq, %c16_i32, %c0_i32 : i32
    %c1_i32 = arith.constant 1 : i32
    %2 = arith.select %1, %c1_i32, %c16_i32 : i32
    %3 = vector.broadcast %2 : i32 to vector<256x1xi32>
    %4 = arith.remsi %0, %3 : vector<256x1xi32>
    %c0_i32_0 = arith.constant 0 : i32
    %5 = vector.broadcast %c0_i32_0 : i32 to vector<256x1xi32>
    %6 = arith.cmpi ne, %4, %5 : vector<256x1xi32>
    %c0_i32_1 = arith.constant 0 : i32
    %7 = vector.broadcast %c0_i32_1 : i32 to vector<256x1xi32>
    %8 = arith.cmpi slt, %4, %7 : vector<256x1xi32>
    %c0_i32_2 = arith.constant 0 : i32
    %9 = arith.cmpi slt, %2, %c0_i32_2 : i32
    %10 = vector.broadcast %9 : i1 to vector<256x1xi1>
    %11 = vector.broadcast %10 : vector<256x1xi1> to vector<256x1xi1>
    %12 = arith.xori %8, %11 : vector<256x1xi1>
    %13 = arith.andi %12, %6 : vector<256x1xi1>
    %14 = vector.broadcast %2 : i32 to vector<256x1xi32>
    %15 = arith.addi %4, %14 : vector<256x1xi32>
    %16 = arith.select %13, %15, %4 : vector<256x1xi1>, vector<256x1xi32>
    %c0_i32_3 = arith.constant 0 : i32
    %17 = vector.broadcast %c0_i32_3 : i32 to vector<256x1xi32>
    %18 = arith.cmpi ne, %16, %17 : vector<256x1xi32>
    %19 = arith.extui %18 : vector<256x1xi1> to vector<256x1xi32>
    %20 = arith.sitofp %19 : vector<256x1xi32> to vector<256x1xf32>
    %c15_i32 = arith.constant 15 : i32
    %21 = vector.broadcast %c15_i32 : i32 to vector<256x1xi32>
    %22 = arith.cmpi ne, %16, %21 : vector<256x1xi32>
    %23 = arith.extui %22 : vector<256x1xi1> to vector<256x1xi32>
    %24 = arith.sitofp %23 : vector<256x1xi32> to vector<256x1xf32>
    %c16_i32_4 = arith.constant 16 : i32
    %25 = vector.broadcast %c16_i32_4 : i32 to vector<256x1xi32>
    %26 = arith.cmpi sge, %0, %25 : vector<256x1xi32>
    %c240_i32 = arith.constant 240 : i32
    %27 = vector.broadcast %c240_i32 : i32 to vector<256x1xi32>
    %28 = arith.cmpi slt, %0, %27 : vector<256x1xi32>
    %c0 = arith.constant 0 : index
    %c0_5 = arith.constant 0 : index
    %c0_6 = arith.constant 0 : index
    %29 = vector.load %arg1[%c0, %c0_5, %c0_6] : memref<1x256x8xbf16, #tpu.memory_space<vmem>>, vector<1x256x8xbf16>
    %30 = vector.shape_cast %29 : vector<1x256x8xbf16> to vector<256x8xbf16>
    %31 = arith.extf %30 : vector<256x8xbf16> to vector<256x8xf32>
    %c0_7 = arith.constant 0 : index
    %c0_8 = arith.constant 0 : index
    %32 = vector.load %arg2[%c0_7, %c0_8] : memref<1x8xf32, #tpu.memory_space<vmem>>, vector<1x8xf32>
    %33 = vector.broadcast %32 : vector<1x8xf32> to vector<256x8xf32>
    %34 = arith.mulf %31, %33 : vector<256x8xf32>
    %c0_9 = arith.constant 0 : index
    %c0_10 = arith.constant 0 : index
    %35 = vector.load %arg3[%c0_9, %c0_10] : memref<1x8xf32, #tpu.memory_space<vmem>>, vector<1x8xf32>
    %36 = vector.broadcast %35 : vector<1x8xf32> to vector<256x8xf32>
    %37 = arith.addf %34, %36 : vector<256x8xf32>
    %cst = arith.constant 0.000000e+00 : f32
    %38 = vector.broadcast %cst : f32 to vector<256x8xf32>
    %39 = arith.maximumf %37, %38 : vector<256x8xf32>
    %c16_i32_11 = arith.constant 16 : i32
    %40 = tpu.dynamic_rotate %39 by %c16_i32_11 dim 0 : vector<256x8xf32>, i32 -> vector<256x8xf32>
    %cst_12 = arith.constant 0.000000e+00 : f32
    %41 = vector.shape_cast %26 : vector<256x1xi1> to vector<256x1xi1>
    %42 = vector.broadcast %41 : vector<256x1xi1> to vector<256x8xi1>
    %43 = vector.broadcast %cst_12 : f32 to vector<256x8xf32>
    %44 = arith.select %42, %40, %43 : vector<256x8xi1>, vector<256x8xf32>
    %c240_i32_13 = arith.constant 240 : i32
    %45 = tpu.dynamic_rotate %39 by %c240_i32_13 dim 0 : vector<256x8xf32>, i32 -> vector<256x8xf32>
    %cst_14 = arith.constant 0.000000e+00 : f32
    %46 = vector.shape_cast %28 : vector<256x1xi1> to vector<256x1xi1>
    %47 = vector.broadcast %46 : vector<256x1xi1> to vector<256x8xi1>
    %48 = vector.broadcast %cst_14 : f32 to vector<256x8xf32>
    %49 = arith.select %47, %45, %48 : vector<256x8xi1>, vector<256x8xf32>
    %50 = tpu.concatenate %44, %39, %49 in 1 : vector<256x8xf32>, vector<256x8xf32>, vector<256x8xf32> -> vector<256x24xf32>
    %c1_i32_15 = arith.constant 1 : i32
    %51 = tpu.dynamic_rotate %50 by %c1_i32_15 dim 0 : vector<256x24xf32>, i32 -> vector<256x24xf32>
    %c255_i32 = arith.constant 255 : i32
    %52 = tpu.dynamic_rotate %50 by %c255_i32 dim 0 : vector<256x24xf32>, i32 -> vector<256x24xf32>
    %53 = arith.truncf %50 : vector<256x24xf32> to vector<256x24xbf16>
    %c1 = arith.constant 1 : index
    %c0_16 = arith.constant 0 : index
    %c0_17 = arith.constant 0 : index
    %54 = vector.load %arg4[%c1, %c0_16, %c0_17] : memref<3x24x4xbf16, #tpu.memory_space<vmem>>, vector<1x24x4xbf16>
    %55 = vector.shape_cast %54 : vector<1x24x4xbf16> to vector<24x4xbf16>
    %cst_18 = arith.constant dense<0.000000e+00> : vector<256x4xf32>
    %56 = tpu.matmul %53, %55, %cst_18 {dimension_numbers = #tpu.dot_dimension_numbers<[1], [0], [0], [1], [0, 0, 1, 1], [], []>} : vector<256x24xbf16>, vector<24x4xbf16>, vector<256x4xf32> -> vector<256x4xf32>
    %57 = arith.truncf %51 : vector<256x24xf32> to vector<256x24xbf16>
    %c0_19 = arith.constant 0 : index
    %c0_20 = arith.constant 0 : index
    %c0_21 = arith.constant 0 : index
    %58 = vector.load %arg4[%c0_19, %c0_20, %c0_21] : memref<3x24x4xbf16, #tpu.memory_space<vmem>>, vector<1x24x4xbf16>
    %59 = vector.shape_cast %58 : vector<1x24x4xbf16> to vector<24x4xbf16>
    %cst_22 = arith.constant dense<0.000000e+00> : vector<256x4xf32>
    %60 = tpu.matmul %57, %59, %cst_22 {dimension_numbers = #tpu.dot_dimension_numbers<[1], [0], [0], [1], [0, 0, 1, 1], [], []>} : vector<256x24xbf16>, vector<24x4xbf16>, vector<256x4xf32> -> vector<256x4xf32>
    %61 = vector.broadcast %20 : vector<256x1xf32> to vector<256x4xf32>
    %62 = arith.mulf %61, %60 : vector<256x4xf32>
    %63 = arith.addf %56, %62 : vector<256x4xf32>
    %64 = arith.truncf %52 : vector<256x24xf32> to vector<256x24xbf16>
    %c2 = arith.constant 2 : index
    %c0_23 = arith.constant 0 : index
    %c0_24 = arith.constant 0 : index
    %65 = vector.load %arg4[%c2, %c0_23, %c0_24] : memref<3x24x4xbf16, #tpu.memory_space<vmem>>, vector<1x24x4xbf16>
    %66 = vector.shape_cast %65 : vector<1x24x4xbf16> to vector<24x4xbf16>
    %cst_25 = arith.constant dense<0.000000e+00> : vector<256x4xf32>
    %67 = tpu.matmul %64, %66, %cst_25 {dimension_numbers = #tpu.dot_dimension_numbers<[1], [0], [0], [1], [0, 0, 1, 1], [], []>} : vector<256x24xbf16>, vector<24x4xbf16>, vector<256x4xf32> -> vector<256x4xf32>
    %68 = vector.broadcast %24 : vector<256x1xf32> to vector<256x4xf32>
    %69 = arith.mulf %68, %67 : vector<256x4xf32>
    %70 = arith.addf %63, %69 : vector<256x4xf32>
    %c0_26 = arith.constant 0 : index
    %c0_27 = arith.constant 0 : index
    %71 = vector.load %arg5[%c0_26, %c0_27] : memref<1x4xf32, #tpu.memory_space<vmem>>, vector<1x4xf32>
    %72 = vector.broadcast %71 : vector<1x4xf32> to vector<256x4xf32>
    %73 = arith.addf %70, %72 : vector<256x4xf32>
    %cst_28 = arith.constant 0.000000e+00 : f32
    %74 = vector.broadcast %cst_28 : f32 to vector<256x4xf32>
    %75 = arith.maximumf %73, %74 : vector<256x4xf32>
    %c16_i32_29 = arith.constant 16 : i32
    %76 = tpu.dynamic_rotate %75 by %c16_i32_29 dim 0 : vector<256x4xf32>, i32 -> vector<256x4xf32>
    %cst_30 = arith.constant 0.000000e+00 : f32
    %77 = vector.shape_cast %26 : vector<256x1xi1> to vector<256x1xi1>
    %78 = vector.broadcast %77 : vector<256x1xi1> to vector<256x4xi1>
    %79 = vector.broadcast %cst_30 : f32 to vector<256x4xf32>
    %80 = arith.select %78, %76, %79 : vector<256x4xi1>, vector<256x4xf32>
    %c240_i32_31 = arith.constant 240 : i32
    %81 = tpu.dynamic_rotate %75 by %c240_i32_31 dim 0 : vector<256x4xf32>, i32 -> vector<256x4xf32>
    %cst_32 = arith.constant 0.000000e+00 : f32
    %82 = vector.shape_cast %28 : vector<256x1xi1> to vector<256x1xi1>
    %83 = vector.broadcast %82 : vector<256x1xi1> to vector<256x4xi1>
    %84 = vector.broadcast %cst_32 : f32 to vector<256x4xf32>
    %85 = arith.select %83, %81, %84 : vector<256x4xi1>, vector<256x4xf32>
    %86 = tpu.concatenate %80, %75, %85 in 1 : vector<256x4xf32>, vector<256x4xf32>, vector<256x4xf32> -> vector<256x12xf32>
    %c1_i32_33 = arith.constant 1 : i32
    %87 = tpu.dynamic_rotate %86 by %c1_i32_33 dim 0 : vector<256x12xf32>, i32 -> vector<256x12xf32>
    %c255_i32_34 = arith.constant 255 : i32
    %88 = tpu.dynamic_rotate %86 by %c255_i32_34 dim 0 : vector<256x12xf32>, i32 -> vector<256x12xf32>
    %89 = arith.truncf %86 : vector<256x12xf32> to vector<256x12xbf16>
    %c1_35 = arith.constant 1 : index
    %c0_36 = arith.constant 0 : index
    %c0_37 = arith.constant 0 : index
    %90 = vector.load %arg6[%c1_35, %c0_36, %c0_37] : memref<3x12x4xbf16, #tpu.memory_space<vmem>>, vector<1x12x4xbf16>
    %91 = vector.shape_cast %90 : vector<1x12x4xbf16> to vector<12x4xbf16>
    %cst_38 = arith.constant dense<0.000000e+00> : vector<256x4xf32>
    %92 = tpu.matmul %89, %91, %cst_38 {dimension_numbers = #tpu.dot_dimension_numbers<[1], [0], [0], [1], [0, 0, 1, 1], [], []>} : vector<256x12xbf16>, vector<12x4xbf16>, vector<256x4xf32> -> vector<256x4xf32>
    %93 = arith.truncf %87 : vector<256x12xf32> to vector<256x12xbf16>
    %c0_39 = arith.constant 0 : index
    %c0_40 = arith.constant 0 : index
    %c0_41 = arith.constant 0 : index
    %94 = vector.load %arg6[%c0_39, %c0_40, %c0_41] : memref<3x12x4xbf16, #tpu.memory_space<vmem>>, vector<1x12x4xbf16>
    %95 = vector.shape_cast %94 : vector<1x12x4xbf16> to vector<12x4xbf16>
    %cst_42 = arith.constant dense<0.000000e+00> : vector<256x4xf32>
    %96 = tpu.matmul %93, %95, %cst_42 {dimension_numbers = #tpu.dot_dimension_numbers<[1], [0], [0], [1], [0, 0, 1, 1], [], []>} : vector<256x12xbf16>, vector<12x4xbf16>, vector<256x4xf32> -> vector<256x4xf32>
    %97 = vector.broadcast %20 : vector<256x1xf32> to vector<256x4xf32>
    %98 = arith.mulf %97, %96 : vector<256x4xf32>
    %99 = arith.addf %92, %98 : vector<256x4xf32>
    %100 = arith.truncf %88 : vector<256x12xf32> to vector<256x12xbf16>
    %c2_43 = arith.constant 2 : index
    %c0_44 = arith.constant 0 : index
    %c0_45 = arith.constant 0 : index
    %101 = vector.load %arg6[%c2_43, %c0_44, %c0_45] : memref<3x12x4xbf16, #tpu.memory_space<vmem>>, vector<1x12x4xbf16>
    %102 = vector.shape_cast %101 : vector<1x12x4xbf16> to vector<12x4xbf16>
    %cst_46 = arith.constant dense<0.000000e+00> : vector<256x4xf32>
    %103 = tpu.matmul %100, %102, %cst_46 {dimension_numbers = #tpu.dot_dimension_numbers<[1], [0], [0], [1], [0, 0, 1, 1], [], []>} : vector<256x12xbf16>, vector<12x4xbf16>, vector<256x4xf32> -> vector<256x4xf32>
    %104 = vector.broadcast %24 : vector<256x1xf32> to vector<256x4xf32>
    %105 = arith.mulf %104, %103 : vector<256x4xf32>
    %106 = arith.addf %99, %105 : vector<256x4xf32>
    %c0_47 = arith.constant 0 : index
    %c0_48 = arith.constant 0 : index
    %107 = vector.load %arg7[%c0_47, %c0_48] : memref<8x4xbf16, #tpu.memory_space<vmem>>, vector<8x4xbf16>
    %cst_49 = arith.constant dense<0.000000e+00> : vector<256x4xf32>
    %108 = tpu.matmul %30, %107, %cst_49 {dimension_numbers = #tpu.dot_dimension_numbers<[1], [0], [0], [1], [0, 0, 1, 1], [], []>} : vector<256x8xbf16>, vector<8x4xbf16>, vector<256x4xf32> -> vector<256x4xf32>
    %109 = arith.addf %106, %108 : vector<256x4xf32>
    %c0_50 = arith.constant 0 : index
    %c0_51 = arith.constant 0 : index
    %110 = vector.load %arg8[%c0_50, %c0_51] : memref<1x4xf32, #tpu.memory_space<vmem>>, vector<1x4xf32>
    %111 = vector.broadcast %110 : vector<1x4xf32> to vector<256x4xf32>
    %112 = arith.addf %109, %111 : vector<256x4xf32>
    %c0_52 = arith.constant 0 : index
    %c0_53 = arith.constant 0 : index
    %c0_54 = arith.constant 0 : index
    %113 = vector.load %arg9[%c0_52, %c0_53, %c0_54] : memref<1x256x4xf32, #tpu.memory_space<vmem>>, vector<1x256x4xf32>
    %114 = vector.shape_cast %113 : vector<1x256x4xf32> to vector<256x4xf32>
    %115 = vector.shape_cast %112 : vector<256x4xf32> to vector<1x256x4xf32>
    tpu.vector_store %arg9[%c0_52, %c0_53, %c0_54], %115 {strides = array<i32>} : memref<1x256x4xf32, #tpu.memory_space<vmem>>, vector<1x256x4xf32>,
    return
  }
  func.func @transform_0(%arg0: i32) -> (i32, i32, i32) {
    %c0_i32 = arith.constant 0 : i32
    %c0_i32_0 = arith.constant 0 : i32
    %c0_i32_1 = arith.constant 0 : i32
    return %arg0, %c0_i32, %c0_i32_0 : i32, i32, i32
  }
  func.func @transform_1(%arg0: i32) -> (i32, i32) {
    %c0_i32 = arith.constant 0 : i32
    %c0_i32_0 = arith.constant 0 : i32
    %c0_i32_1 = arith.constant 0 : i32
    return %c0_i32, %c0_i32_0 : i32, i32
  }
  func.func @transform_2(%arg0: i32) -> (i32, i32) {
    %c0_i32 = arith.constant 0 : i32
    %c0_i32_0 = arith.constant 0 : i32
    %c0_i32_1 = arith.constant 0 : i32
    return %c0_i32, %c0_i32_0 : i32, i32
  }
  func.func @transform_3(%arg0: i32) -> (i32, i32, i32) {
    %c0_i32 = arith.constant 0 : i32
    %c0_i32_0 = arith.constant 0 : i32
    %c0_i32_1 = arith.constant 0 : i32
    %c0_i32_2 = arith.constant 0 : i32
    return %c0_i32, %c0_i32_0, %c0_i32_1 : i32, i32, i32
  }
  func.func @transform_4(%arg0: i32) -> (i32, i32) {
    %c0_i32 = arith.constant 0 : i32
    %c0_i32_0 = arith.constant 0 : i32
    %c0_i32_1 = arith.constant 0 : i32
    return %c0_i32, %c0_i32_0 : i32, i32
  }
  func.func @transform_5(%arg0: i32) -> (i32, i32, i32) {
    %c0_i32 = arith.constant 0 : i32
    %c0_i32_0 = arith.constant 0 : i32
    %c0_i32_1 = arith.constant 0 : i32
    %c0_i32_2 = arith.constant 0 : i32
    return %c0_i32, %c0_i32_0, %c0_i32_1 : i32, i32, i32
  }
  func.func @transform_6(%arg0: i32) -> (i32, i32) {
    %c0_i32 = arith.constant 0 : i32
    %c0_i32_0 = arith.constant 0 : i32
    %c0_i32_1 = arith.constant 0 : i32
    return %c0_i32, %c0_i32_0 : i32, i32
  }
  func.func @transform_7(%arg0: i32) -> (i32, i32) {
    %c0_i32 = arith.constant 0 : i32
    %c0_i32_0 = arith.constant 0 : i32
    %c0_i32_1 = arith.constant 0 : i32
    return %c0_i32, %c0_i32_0 : i32, i32
  }
  func.func @transform_8(%arg0: i32) -> (i32, i32, i32) {
    %c0_i32 = arith.constant 0 : i32
    %c0_i32_0 = arith.constant 0 : i32
    %c0_i32_1 = arith.constant 0 : i32
    return %arg0, %c0_i32, %c0_i32_0 : i32, i32, i32
  }
}

</mosaic_0001>

<llo_original>
// kernel: tpu_custom_call.1
$region0: #{tpu_custom_call.1}
  #allocation0 [shape = 'u32[]', space=smem, size = 0x4, offset = 0x4, fixed_abs, tag = 'smem constant byte address 0x4 - core index']
  #allocation1 [shape = 'u32[72,128]{1,0:T(1,128)}', space=vmem, size = 0x9000, scoped, tag = 'internal scratch']
  %s0 = inlined_call_operand.vmem [shape: bf16[2,256,8], index: 0, kind: input, shape index: {}]
  %s1 = inlined_call_operand.vmem [shape: f32[1,8], index: 1, kind: input, shape index: {}]
  %s2 = inlined_call_operand.vmem [shape: f32[1,8], index: 2, kind: input, shape index: {}]
  %s3 = inlined_call_operand.vmem [shape: bf16[3,24,4], index: 3, kind: input, shape index: {}]
  %s4 = inlined_call_operand.vmem [shape: f32[1,4], index: 4, kind: input, shape index: {}]
  %s5 = inlined_call_operand.vmem [shape: bf16[3,12,4], index: 5, kind: input, shape index: {}]
  %s6 = inlined_call_operand.vmem [shape: bf16[8,4], index: 6, kind: input, shape index: {}]
  %s7 = inlined_call_operand.vmem [shape: f32[1,4], index: 7, kind: input, shape index: {}]
  %s8 = inlined_call_operand.vmem [shape: f32[2,256,4], index: 8, kind: output, shape index: {}]
  %s9 = sld [smem:[#allocation0]]
  $region65: #{tpu_custom_call.1} parent=0
    _
  %s11 = ssub.s32 1, %s9
  %s12 = scalar_select 0, %s11, %s9
  loop: start=0, step=1, limit=4
  $region2: #{tpu_custom_call.1} parent=0 // loop_pre_header
    _
  $region3: #{tpu_custom_call.1} parent=0 // loop_header
    %s14 = sphi 0, %s18
    %p15 = scmp.ge.s32.totalorder %s14, 4
    %s24 = sphi 0, %s26
    %s27 = sphi 0, %s24
    %s28 = sphi 0, %s27
    %s44 = sphi 0, %s28
    %s48 = sphi 0, %s48
    %s50 = sphi 0, %s48
    %s51 = sphi 0, %s50
    %s65 = sphi 0, %s51
    %s69 = sphi 0, %s69
    %s71 = sphi 0, %s69
    %s72 = sphi 0, %s71
    %s86 = sphi 0, %s72
    %s90 = sphi 0, %s90
    %s92 = sphi 0, %s90
    %s93 = sphi 0, %s92
    %s107 = sphi 0, %s93
    %s111 = sphi 0, %s111
    %s113 = sphi 0, %s111
    %s114 = sphi 0, %s113
    %s128 = sphi 0, %s114
    %s132 = sphi 0, %s132
    %s134 = sphi 0, %s132
    %s135 = sphi 0, %s134
    %s149 = sphi 0, %s135
    %s153 = sphi 0, %s153
    %s155 = sphi 0, %s153
    %s156 = sphi 0, %s155
    %s170 = sphi 0, %s156
    %s174 = sphi 0, %s174
    %s176 = sphi 0, %s174
    %s177 = sphi 0, %s176
    %s191 = sphi 0, %s177
    %s197 = sphi 0, %s199
    %s200 = sphi 0, %s197
    %s201 = sphi 0, %s200
    %s217 = sphi 0, %s201
  $region4: #{tpu_custom_call.1} parent=0 // loop_header_branch
    %17 = sbr.rel (%p15) target = $region8
  $region5: #{tpu_custom_call.1} parent=0 // loop_body
    %s19 = ssub.s32 %s14, 1
    %s20 = ssub.s32 %s14, 2
    %s21 = sadd.s32 %s14, 1
    %s22 = ssub.s32 %s14, %s21
    %p23 = scmp.eq.s32.totalorder %s22, 0
    %s25 = sadd.s32 %s24, 1
    %s26 = scalar_select %p23, %s24, %s25
    %p29 = pneg %p23
    %p30 = scmp.eq.s32.totalorder %s14, 1
    %p31 = por %p29, %p30
    %p32 = scmp.ne.s32.totalorder %s24, %s27
    %p33 = scmp.eq.s32.totalorder %s14, 0
    %p34 = por %p32, %p33
    %p35 = scmp.ne.s32.totalorder %s24, %s27
    %p36 = scmp.eq.s32.totalorder %s19, 1
    %p37 = por %p35, %p36
    %p38 = scmp.ne.s32.totalorder %s27, %s28
    %p39 = scmp.eq.s32.totalorder %s19, 0
    %p40 = por %p38, %p39
    %p41 = scmp.ne.s32.totalorder %s27, %s28
    %p42 = scmp.eq.s32.totalorder %s20, 1
    %p43 = por %p41, %p42
    %p45 = scmp.ne.s32.totalorder %s28, %s44
    %p46 = scmp.eq.s32.totalorder %s20, 0
    %p47 = por %p45, %p46
    %s49 = sadd.s32 %s48, 1
    %p52 = scmp.eq.s32.totalorder %s14, 1
    %p53 = scmp.ne.s32.totalorder %s48, %s50
    %p54 = scmp.eq.s32.totalorder %s14, 0
    %p55 = por %p53, %p54
    %p56 = scmp.ne.s32.totalorder %s48, %s50
    %p57 = scmp.eq.s32.totalorder %s19, 1
    %p58 = por %p56, %p57
    %p59 = scmp.ne.s32.totalorder %s50, %s51
    %p60 = scmp.eq.s32.totalorder %s19, 0
    %p61 = por %p59, %p60
    %p62 = scmp.ne.s32.totalorder %s50, %s51
    %p63 = scmp.eq.s32.totalorder %s20, 1
    %p64 = por %p62, %p63
    %p66 = scmp.ne.s32.totalorder %s51, %s65
    %p67 = scmp.eq.s32.totalorder %s20, 0
    %p68 = por %p66, %p67
    %s70 = sadd.s32 %s69, 1
    %p73 = scmp.eq.s32.totalorder %s14, 1
    %p74 = scmp.ne.s32.totalorder %s69, %s71
    %p75 = scmp.eq.s32.totalorder %s14, 0
    %p76 = por %p74, %p75
    %p77 = scmp.ne.s32.totalorder %s69, %s71
    %p78 = scmp.eq.s32.totalorder %s19, 1
    %p79 = por %p77, %p78
    %p80 = scmp.ne.s32.totalorder %s71, %s72
    %p81 = scmp.eq.s32.totalorder %s19, 0
    %p82 = por %p80, %p81
    %p83 = scmp.ne.s32.totalorder %s71, %s72
    %p84 = scmp.eq.s32.totalorder %s20, 1
    %p85 = por %p83, %p84
    %p87 = scmp.ne.s32.totalorder %s72, %s86
    %p88 = scmp.eq.s32.totalorder %s20, 0
    %p89 = por %p87, %p88
    %s91 = sadd.s32 %s90, 1
    %p94 = scmp.eq.s32.totalorder %s14, 1
    %p95 = scmp.ne.s32.totalorder %s90, %s92
    %p96 = scmp.eq.s32.totalorder %s14, 0
    %p97 = por %p95, %p96
    %p98 = scmp.ne.s32.totalorder %s90, %s92
    %p99 = scmp.eq.s32.totalorder %s19, 1
    %p100 = por %p98, %p99
    %p101 = scmp.ne.s32.totalorder %s92, %s93
    %p102 = scmp.eq.s32.totalorder %s19, 0
    %p103 = por %p101, %p102
    %p104 = scmp.ne.s32.totalorder %s92, %s93
    %p105 = scmp.eq.s32.totalorder %s20, 1
    %p106 = por %p104, %p105
    %p108 = scmp.ne.s32.totalorder %s93, %s107
    %p109 = scmp.eq.s32.totalorder %s20, 0
    %p110 = por %p108, %p109
    %s112 = sadd.s32 %s111, 1
    %p115 = scmp.eq.s32.totalorder %s14, 1
    %p116 = scmp.ne.s32.totalorder %s111, %s113
    %p117 = scmp.eq.s32.totalorder %s14, 0
    %p118 = por %p116, %p117
    %p119 = scmp.ne.s32.totalorder %s111, %s113
    %p120 = scmp.eq.s32.totalorder %s19, 1
    %p121 = por %p119, %p120
    %p122 = scmp.ne.s32.totalorder %s113, %s114
    %p123 = scmp.eq.s32.totalorder %s19, 0
    %p124 = por %p122, %p123
    %p125 = scmp.ne.s32.totalorder %s113, %s114
    %p126 = scmp.eq.s32.totalorder %s20, 1
    %p127 = por %p125, %p126
    %p129 = scmp.ne.s32.totalorder %s114, %s128
    %p130 = scmp.eq.s32.totalorder %s20, 0
    %p131 = por %p129, %p130
    %s133 = sadd.s32 %s132, 1
    %p136 = scmp.eq.s32.totalorder %s14, 1
    %p137 = scmp.ne.s32.totalorder %s132, %s134
    %p138 = scmp.eq.s32.totalorder %s14, 0
    %p139 = por %p137, %p138
    %p140 = scmp.ne.s32.totalorder %s132, %s134
    %p141 = scmp.eq.s32.totalorder %s19, 1
    %p142 = por %p140, %p141
    %p143 = scmp.ne.s32.totalorder %s134, %s135
    %p144 = scmp.eq.s32.totalorder %s19, 0
    %p145 = por %p143, %p144
    %p146 = scmp.ne.s32.totalorder %s134, %s135
    %p147 = scmp.eq.s32.totalorder %s20, 1
    %p148 = por %p146, %p147
    %p150 = scmp.ne.s32.totalorder %s135, %s149
    %p151 = scmp.eq.s32.totalorder %s20, 0
    %p152 = por %p150, %p151
    %s154 = sadd.s32 %s153, 1
    %p157 = scmp.eq.s32.totalorder %s14, 1
    %p158 = scmp.ne.s32.totalorder %s153, %s155
    %p159 = scmp.eq.s32.totalorder %s14, 0
    %p160 = por %p158, %p159
    %p161 = scmp.ne.s32.totalorder %s153, %s155
    %p162 = scmp.eq.s32.totalorder %s19, 1
    %p163 = por %p161, %p162
    %p164 = scmp.ne.s32.totalorder %s155, %s156
    %p165 = scmp.eq.s32.totalorder %s19, 0
    %p166 = por %p164, %p165
    %p167 = scmp.ne.s32.totalorder %s155, %s156
    %p168 = scmp.eq.s32.totalorder %s20, 1
    %p169 = por %p167, %p168
    %p171 = scmp.ne.s32.totalorder %s156, %s170
    %p172 = scmp.eq.s32.totalorder %s20, 0
    %p173 = por %p171, %p172
    %s175 = sadd.s32 %s174, 1
    %p178 = scmp.eq.s32.totalorder %s14, 1
    %p179 = scmp.ne.s32.totalorder %s174, %s176
    %p180 = scmp.eq.s32.totalorder %s14, 0
    %p181 = por %p179, %p180
    %p182 = scmp.ne.s32.totalorder %s174, %s176
    %p183 = scmp.eq.s32.totalorder %s19, 1
    %p184 = por %p182, %p183
    %p185 = scmp.ne.s32.totalorder %s176, %s177
    %p186 = scmp.eq.s32.totalorder %s19, 0
    %p187 = por %p185, %p186
    %p188 = scmp.ne.s32.totalorder %s176, %s177
    %p189 = scmp.eq.s32.totalorder %s20, 1
    %p190 = por %p188, %p189
    %p192 = scmp.ne.s32.totalorder %s177, %s191
    %p193 = scmp.eq.s32.totalorder %s20, 0
    %p194 = por %p192, %p193
    %s195 = ssub.s32 %s14, %s21
    %p196 = scmp.eq.s32.totalorder %s195, 0
    %s198 = sadd.s32 %s197, 1
    %s199 = scalar_select %p196, %s197, %s198
    %p202 = pneg %p196
    %p203 = scmp.eq.s32.totalorder %s14, 1
    %p204 = por %p202, %p203
    %p205 = scmp.ne.s32.totalorder %s197, %s200
    %p206 = scmp.eq.s32.totalorder %s14, 0
    %p207 = por %p205, %p206
    %p208 = scmp.ne.s32.totalorder %s197, %s200
    %p209 = scmp.eq.s32.totalorder %s19, 1
    %p210 = por %p208, %p209
    %p211 = scmp.ne.s32.totalorder %s200, %s201
    %p212 = scmp.eq.s32.totalorder %s19, 0
    %p213 = por %p211, %p212
    %p214 = scmp.ne.s32.totalorder %s200, %s201
    %p215 = scmp.eq.s32.totalorder %s20, 1
    %p216 = por %p214, %p215
    %p218 = scmp.ne.s32.totalorder %s201, %s217
    %p219 = scmp.eq.s32.totalorder %s20, 0
    %p220 = por %p218, %p219
    %p221 = scmp.le.s32.totalorder 1, %s14
    %p222 = scmp.lt.s32.totalorder %s14, 3
    %p223 = pnand %p221, %p222
    %p224 = pneg %p223
    // Predicated region
    $region9: #{tpu_custom_call.1} parent=5 // pred_check
      _
    $region10: #{tpu_custom_call.1} parent=5 // pred_check_branch
      %226 = sbr.rel (%p223) target = $region12
    $region11: #{tpu_custom_call.1} parent=5 // pred_region
      %s227 = ssub.s32 %s14, 1
      // Predicated region
      $region13: #{tpu_custom_call.1} parent=11 // pred_check
        %p228 = pneg %p61
      $region14: #{tpu_custom_call.1} parent=11 // pred_check_branch
        %230 = sbr.rel (%p228) target = $region16
      $region15: #{tpu_custom_call.1} parent=11 // pred_region
        _
      $region16: #{tpu_custom_call.1} parent=11 // pred_fallthru
        _
      // Predicated region
      $region17: #{tpu_custom_call.1} parent=11 // pred_check
        %p231 = pneg %p82
      $region18: #{tpu_custom_call.1} parent=11 // pred_check_branch
        %233 = sbr.rel (%p231) target = $region20
      $region19: #{tpu_custom_call.1} parent=11 // pred_region
        _
      $region20: #{tpu_custom_call.1} parent=11 // pred_fallthru
        _
      // Predicated region
      $region21: #{tpu_custom_call.1} parent=11 // pred_check
        %p234 = pneg %p103
      $region22: #{tpu_custom_call.1} parent=11 // pred_check_branch
        %236 = sbr.rel (%p234) target = $region24
      $region23: #{tpu_custom_call.1} parent=11 // pred_region
        _
      $region24: #{tpu_custom_call.1} parent=11 // pred_fallthru
        _
      // Predicated region
      $region25: #{tpu_custom_call.1} parent=11 // pred_check
        %p237 = pneg %p124
      $region26: #{tpu_custom_call.1} parent=11 // pred_check_branch
        %239 = sbr.rel (%p237) target = $region28
      $region27: #{tpu_custom_call.1} parent=11 // pred_region
        _
      $region28: #{tpu_custom_call.1} parent=11 // pred_fallthru
        _
      // Predicated region
      $region29: #{tpu_custom_call.1} parent=11 // pred_check
        %p240 = pneg %p145
      $region30: #{tpu_custom_call.1} parent=11 // pred_check_branch
        %242 = sbr.rel (%p240) target = $region32
      $region31: #{tpu_custom_call.1} parent=11 // pred_region
        _
      $region32: #{tpu_custom_call.1} parent=11 // pred_fallthru
        _
      // Predicated region
      $region33: #{tpu_custom_call.1} parent=11 // pred_check
        %p243 = pneg %p166
      $region34: #{tpu_custom_call.1} parent=11 // pred_check_branch
        %245 = sbr.rel (%p243) target = $region36
      $region35: #{tpu_custom_call.1} parent=11 // pred_region
        _
      $region36: #{tpu_custom_call.1} parent=11 // pred_fallthru
        _
      // Predicated region
      $region37: #{tpu_custom_call.1} parent=11 // pred_check
        %p246 = pneg %p187
      $region38: #{tpu_custom_call.1} parent=11 // pred_check_branch
        %248 = sbr.rel (%p246) target = $region40
      $region39: #{tpu_custom_call.1} parent=11 // pred_region
        _
      $region40: #{tpu_custom_call.1} parent=11 // pred_fallthru
        _
    $region12: #{tpu_custom_call.1} parent=5 // pred_fallthru
      _
    %p249 = scmp.lt.s32.totalorder %s14, 2
    // Predicated region
    $region41: #{tpu_custom_call.1} parent=5 // pred_check
      %p250 = pneg %p249
    $region42: #{tpu_custom_call.1} parent=5 // pred_check_branch
      %252 = sbr.rel (%p250) target = $region44
    $region43: #{tpu_custom_call.1} parent=5 // pred_region
      // Predicated region
      $region45: #{tpu_custom_call.1} parent=43 // pred_check
        %p253 = pneg %p34
      $region46: #{tpu_custom_call.1} parent=43 // pred_check_branch
        %255 = sbr.rel (%p253) target = $region48
      $region47: #{tpu_custom_call.1} parent=43 // pred_region
        %p256 = scmp.lt.s32.totalorder %s14, 1
        %s257 = scalar_select %p256, %s14, 1
        %s258 = smul.addr %s257, 32
        %s259 = smul.addr %s258, 4
        %s260 = scalar_lea.vmem %s0, %s259
      $region48: #{tpu_custom_call.1} parent=43 // pred_fallthru
        _
    $region44: #{tpu_custom_call.1} parent=5 // pred_fallthru
      _
    %p261 = scmp.le.s32.totalorder 1, %s14
    %p262 = scmp.lt.s32.totalorder %s14, 3
    %p263 = pnand %p261, %p262
    %p264 = pneg %p263
    // Predicated region
    $region49: #{tpu_custom_call.1} parent=5 // pred_check
      _
    $region50: #{tpu_custom_call.1} parent=5 // pred_check_branch
      %266 = sbr.rel (%p263) target = $region52
    $region51: #{tpu_custom_call.1} parent=5 // pred_region
      %s267 = ssub.s32 %s14, 1
      %p268 = scmp.lt.s32.totalorder %s19, 1
      %s269 = scalar_select %p268, %s19, 1
      %s270 = smul.addr %s269, 32
      %s271 = smul.addr %s270, 4
      %s272 = scalar_lea.vmem %s0, %s271
      %p273 = pneg %p40
      %p274 = pneg %p37
      %p275 = pneg %p61
      %p276 = pneg %p58
      %p277 = pneg %p82
      %p278 = pneg %p79
      %p279 = pneg %p103
      %p280 = pneg %p100
      %p281 = pneg %p124
      %p282 = pneg %p121
      %p283 = pneg %p145
      %p284 = pneg %p142
      %p285 = pneg %p166
      %p286 = pneg %p163
      %p287 = pneg %p187
      %p288 = pneg %p184
      %p289 = pneg %p213
      %p290 = pneg %p210
      %p291 = scmp.lt.s32.totalorder %s19, 1
      %s292 = scalar_select %p291, %s19, 1
      %s293 = smul.addr %s292, 32
      %s294 = smul.addr %s293, 8
      %s295 = scalar_lea.vmem %s8, %s294
      %p296 = scmp.lt.s32.totalorder %s19, 1
      %s297 = scalar_select %p296, %s19, 1
      %s298 = smul.addr %s297, 32
      %s299 = smul.addr %s298, 4
      %s300 = scalar_lea.vmem %s0, %s299
      %p301 = scmp.lt.s32.totalorder %s19, 1
      %s302 = scalar_select %p301, %s19, 1
      %s303 = smul.addr %s302, 32
      %s304 = smul.addr %s303, 8
      %s305 = scalar_lea.vmem %s8, %s304
      %v307 = vlaneseq
      %v308 = vshrl.u32 %v307, 7
      %v309 = vadd.s32 %v308, 8
      %v310 = vadd.s32 %v308, 16
      %v311 = vadd.s32 %v308, 24
      %v312 = vadd.s32 %v308, 32
      %v313 = vadd.s32 %v308, 40
      %v314 = vadd.s32 %v308, 48
      %v315 = vadd.s32 %v308, 56
      %v316 = vadd.s32 %v308, 64
      %v317 = vadd.s32 %v308, 72
      %v318 = vadd.s32 %v308, 80
      %v319 = vadd.s32 %v308, 88
      %v320 = vadd.s32 %v308, 96
      %v321 = vadd.s32 %v308, 104
      %v322 = vadd.s32 %v308, 112
      %v323 = vadd.s32 %v308, 120
      %v324 = vadd.s32 %v308, 128
      %v325 = vadd.s32 %v308, 136
      %v326 = vadd.s32 %v308, 144
      %v327 = vadd.s32 %v308, 152
      %v328 = vadd.s32 %v308, 160
      %v329 = vadd.s32 %v308, 168
      %v330 = vadd.s32 %v308, 176
      %v331 = vadd.s32 %v308, 184
      %v332 = vadd.s32 %v308, 192
      %v333 = vadd.s32 %v308, 200
      %v334 = vadd.s32 %v308, 208
      %v335 = vadd.s32 %v308, 216
      %v336 = vadd.s32 %v308, 224
      %v337 = vadd.s32 %v308, 232
      %v338 = vadd.s32 %v308, 240
      %v339 = vadd.s32 %v308, 248
      %vm340 = vcmp.lt.s32.totalorder %v308, 0
      %v341 = vsub.s32 0, %v308
      %v342 = vsel %vm340, %v341, %v308
      %v343 = vshrl.u32 %v342, 4
      %v344 = vand.u32 %v342, 15
      %v345 = vsub.s32 0, %v344
      %v346 = vsel %vm340, %v345, %v344
      %vm347 = vcmp.lt.s32.totalorder %v309, 0
      %v348 = vsub.s32 0, %v309
      %v349 = vsel %vm347, %v348, %v309
      %v350 = vshrl.u32 %v349, 4
      %v351 = vand.u32 %v349, 15
      %v352 = vsub.s32 0, %v351
      %v353 = vsel %vm347, %v352, %v351
      %vm354 = vcmp.lt.s32.totalorder %v310, 0
      %v355 = vsub.s32 0, %v310
      %v356 = vsel %vm354, %v355, %v310
      %v357 = vshrl.u32 %v356, 4
      %v358 = vand.u32 %v356, 15
      %v359 = vsub.s32 0, %v358
      %v360 = vsel %vm354, %v359, %v358
      %vm361 = vcmp.lt.s32.totalorder %v311, 0
      %v362 = vsub.s32 0, %v311
      %v363 = vsel %vm361, %v362, %v311
      %v364 = vshrl.u32 %v363, 4
      %v365 = vand.u32 %v363, 15
      %v366 = vsub.s32 0, %v365
      %v367 = vsel %vm361, %v366, %v365
      %vm368 = vcmp.lt.s32.totalorder %v312, 0
      %v369 = vsub.s32 0, %v312
      %v370 = vsel %vm368, %v369, %v312
      %v371 = vshrl.u32 %v370, 4
      %v372 = vand.u32 %v370, 15
      %v373 = vsub.s32 0, %v372
      %v374 = vsel %vm368, %v373, %v372
      %vm375 = vcmp.lt.s32.totalorder %v313, 0
      %v376 = vsub.s32 0, %v313
      %v377 = vsel %vm375, %v376, %v313
      %v378 = vshrl.u32 %v377, 4
      %v379 = vand.u32 %v377, 15
      %v380 = vsub.s32 0, %v379
      %v381 = vsel %vm375, %v380, %v379
      %vm382 = vcmp.lt.s32.totalorder %v314, 0
      %v383 = vsub.s32 0, %v314
      %v384 = vsel %vm382, %v383, %v314
      %v385 = vshrl.u32 %v384, 4
      %v386 = vand.u32 %v384, 15
      %v387 = vsub.s32 0, %v386
      %v388 = vsel %vm382, %v387, %v386
      %vm389 = vcmp.lt.s32.totalorder %v315, 0
      %v390 = vsub.s32 0, %v315
      %v391 = vsel %vm389, %v390, %v315
      %v392 = vshrl.u32 %v391, 4
      %v393 = vand.u32 %v391, 15
      %v394 = vsub.s32 0, %v393
      %v395 = vsel %vm389, %v394, %v393
      %vm396 = vcmp.lt.s32.totalorder %v316, 0
      %v397 = vsub.s32 0, %v316
      %v398 = vsel %vm396, %v397, %v316
      %v399 = vshrl.u32 %v398, 4
      %v400 = vand.u32 %v398, 15
      %v401 = vsub.s32 0, %v400
      %v402 = vsel %vm396, %v401, %v400
      %vm403 = vcmp.lt.s32.totalorder %v317, 0
      %v404 = vsub.s32 0, %v317
      %v405 = vsel %vm403, %v404, %v317
      %v406 = vshrl.u32 %v405, 4
      %v407 = vand.u32 %v405, 15
      %v408 = vsub.s32 0, %v407
      %v409 = vsel %vm403, %v408, %v407
      %vm410 = vcmp.lt.s32.totalorder %v318, 0
      %v411 = vsub.s32 0, %v318
      %v412 = vsel %vm410, %v411, %v318
      %v413 = vshrl.u32 %v412, 4
      %v414 = vand.u32 %v412, 15
      %v415 = vsub.s32 0, %v414
      %v416 = vsel %vm410, %v415, %v414
      %vm417 = vcmp.lt.s32.totalorder %v319, 0
      %v418 = vsub.s32 0, %v319
      %v419 = vsel %vm417, %v418, %v319
      %v420 = vshrl.u32 %v419, 4
      %v421 = vand.u32 %v419, 15
      %v422 = vsub.s32 0, %v421
      %v423 = vsel %vm417, %v422, %v421
      %vm424 = vcmp.lt.s32.totalorder %v320, 0
      %v425 = vsub.s32 0, %v320
      %v426 = vsel %vm424, %v425, %v320
      %v427 = vshrl.u32 %v426, 4
      %v428 = vand.u32 %v426, 15
      %v429 = vsub.s32 0, %v428
      %v430 = vsel %vm424, %v429, %v428
      %vm431 = vcmp.lt.s32.totalorder %v321, 0
      %v432 = vsub.s32 0, %v321
      %v433 = vsel %vm431, %v432, %v321
      %v434 = vshrl.u32 %v433, 4
      %v435 = vand.u32 %v433, 15
      %v436 = vsub.s32 0, %v435
      %v437 = vsel %vm431, %v436, %v435
      %vm438 = vcmp.lt.s32.totalorder %v322, 0
      %v439 = vsub.s32 0, %v322
      %v440 = vsel %vm438, %v439, %v322
      %v441 = vshrl.u32 %v440, 4
      %v442 = vand.u32 %v440, 15
      %v443 = vsub.s32 0, %v442
      %v444 = vsel %vm438, %v443, %v442
      %vm445 = vcmp.lt.s32.totalorder %v323, 0
      %v446 = vsub.s32 0, %v323
      %v447 = vsel %vm445, %v446, %v323
      %v448 = vshrl.u32 %v447, 4
      %v449 = vand.u32 %v447, 15
      %v450 = vsub.s32 0, %v449
      %v451 = vsel %vm445, %v450, %v449
      %vm452 = vcmp.lt.s32.totalorder %v324, 0
      %v453 = vsub.s32 0, %v324
      %v454 = vsel %vm452, %v453, %v324
      %v455 = vshrl.u32 %v454, 4
      %v456 = vand.u32 %v454, 15
      %v457 = vsub.s32 0, %v456
      %v458 = vsel %vm452, %v457, %v456
      %vm459 = vcmp.lt.s32.totalorder %v325, 0
      %v460 = vsub.s32 0, %v325
      %v461 = vsel %vm459, %v460, %v325
      %v462 = vshrl.u32 %v461, 4
      %v463 = vand.u32 %v461, 15
      %v464 = vsub.s32 0, %v463
      %v465 = vsel %vm459, %v464, %v463
      %vm466 = vcmp.lt.s32.totalorder %v326, 0
      %v467 = vsub.s32 0, %v326
      %v468 = vsel %vm466, %v467, %v326
      %v469 = vshrl.u32 %v468, 4
      %v470 = vand.u32 %v468, 15
      %v471 = vsub.s32 0, %v470
      %v472 = vsel %vm466, %v471, %v470
      %vm473 = vcmp.lt.s32.totalorder %v327, 0
      %v474 = vsub.s32 0, %v327
      %v475 = vsel %vm473, %v474, %v327
      %v476 = vshrl.u32 %v475, 4
      %v477 = vand.u32 %v475, 15
      %v478 = vsub.s32 0, %v477
      %v479 = vsel %vm473, %v478, %v477
      %vm480 = vcmp.lt.s32.totalorder %v328, 0
      %v481 = vsub.s32 0, %v328
      %v482 = vsel %vm480, %v481, %v328
      %v483 = vshrl.u32 %v482, 4
      %v484 = vand.u32 %v482, 15
      %v485 = vsub.s32 0, %v484
      %v486 = vsel %vm480, %v485, %v484
      %vm487 = vcmp.lt.s32.totalorder %v329, 0
      %v488 = vsub.s32 0, %v329
      %v489 = vsel %vm487, %v488, %v329
      %v490 = vshrl.u32 %v489, 4
      %v491 = vand.u32 %v489, 15
      %v492 = vsub.s32 0, %v491
      %v493 = vsel %vm487, %v492, %v491
      %vm494 = vcmp.lt.s32.totalorder %v330, 0
      %v495 = vsub.s32 0, %v330
      %v496 = vsel %vm494, %v495, %v330
      %v497 = vshrl.u32 %v496, 4
      %v498 = vand.u32 %v496, 15
      %v499 = vsub.s32 0, %v498
      %v500 = vsel %vm494, %v499, %v498
      %vm501 = vcmp.lt.s32.totalorder %v331, 0
      %v502 = vsub.s32 0, %v331
      %v503 = vsel %vm501, %v502, %v331
      %v504 = vshrl.u32 %v503, 4
      %v505 = vand.u32 %v503, 15
      %v506 = vsub.s32 0, %v505
      %v507 = vsel %vm501, %v506, %v505
      %vm508 = vcmp.lt.s32.totalorder %v332, 0
      %v509 = vsub.s32 0, %v332
      %v510 = vsel %vm508, %v509, %v332
      %v511 = vshrl.u32 %v510, 4
      %v512 = vand.u32 %v510, 15
      %v513 = vsub.s32 0, %v512
      %v514 = vsel %vm508, %v513, %v512
      %vm515 = vcmp.lt.s32.totalorder %v333, 0
      %v516 = vsub.s32 0, %v333
      %v517 = vsel %vm515, %v516, %v333
      %v518 = vshrl.u32 %v517, 4
      %v519 = vand.u32 %v517, 15
      %v520 = vsub.s32 0, %v519
      %v521 = vsel %vm515, %v520, %v519
      %vm522 = vcmp.lt.s32.totalorder %v334, 0
      %v523 = vsub.s32 0, %v334
      %v524 = vsel %vm522, %v523, %v334
      %v525 = vshrl.u32 %v524, 4
      %v526 = vand.u32 %v524, 15
      %v527 = vsub.s32 0, %v526
      %v528 = vsel %vm522, %v527, %v526
      %vm529 = vcmp.lt.s32.totalorder %v335, 0
      %v530 = vsub.s32 0, %v335
      %v531 = vsel %vm529, %v530, %v335
      %v532 = vshrl.u32 %v531, 4
      %v533 = vand.u32 %v531, 15
      %v534 = vsub.s32 0, %v533
      %v535 = vsel %vm529, %v534, %v533
      %vm536 = vcmp.lt.s32.totalorder %v336, 0
      %v537 = vsub.s32 0, %v336
      %v538 = vsel %vm536, %v537, %v336
      %v539 = vshrl.u32 %v538, 4
      %v540 = vand.u32 %v538, 15
      %v541 = vsub.s32 0, %v540
      %v542 = vsel %vm536, %v541, %v540
      %vm543 = vcmp.lt.s32.totalorder %v337, 0
      %v544 = vsub.s32 0, %v337
      %v545 = vsel %vm543, %v544, %v337
      %v546 = vshrl.u32 %v545, 4
      %v547 = vand.u32 %v545, 15
      %v548 = vsub.s32 0, %v547
      %v549 = vsel %vm543, %v548, %v547
      %vm550 = vcmp.lt.s32.totalorder %v338, 0
      %v551 = vsub.s32 0, %v338
      %v552 = vsel %vm550, %v551, %v338
      %v553 = vshrl.u32 %v552, 4
      %v554 = vand.u32 %v552, 15
      %v555 = vsub.s32 0, %v554
      %v556 = vsel %vm550, %v555, %v554
      %vm557 = vcmp.lt.s32.totalorder %v339, 0
      %v558 = vsub.s32 0, %v339
      %v559 = vsel %vm557, %v558, %v339
      %v560 = vshrl.u32 %v559, 4
      %v561 = vand.u32 %v559, 15
      %v562 = vsub.s32 0, %v561
      %v563 = vsel %vm557, %v562, %v561
      %vm564 = vcmp.ne.s32.totalorder %v346, 0
      %vm565 = vcmp.ne.s32.totalorder %v353, 0
      %vm566 = vcmp.ne.s32.totalorder %v360, 0
      %vm567 = vcmp.ne.s32.totalorder %v367, 0
      %vm568 = vcmp.ne.s32.totalorder %v374, 0
      %vm569 = vcmp.ne.s32.totalorder %v381, 0
      %vm570 = vcmp.ne.s32.totalorder %v388, 0
      %vm571 = vcmp.ne.s32.totalorder %v395, 0
      %vm572 = vcmp.ne.s32.totalorder %v402, 0
      %vm573 = vcmp.ne.s32.totalorder %v409, 0
      %vm574 = vcmp.ne.s32.totalorder %v416, 0
      %vm575 = vcmp.ne.s32.totalorder %v423, 0
      %vm576 = vcmp.ne.s32.totalorder %v430, 0
      %vm577 = vcmp.ne.s32.totalorder %v437, 0
      %vm578 = vcmp.ne.s32.totalorder %v444, 0
      %vm579 = vcmp.ne.s32.totalorder %v451, 0
      %vm580 = vcmp.ne.s32.totalorder %v458, 0
      %vm581 = vcmp.ne.s32.totalorder %v465, 0
      %vm582 = vcmp.ne.s32.totalorder %v472, 0
      %vm583 = vcmp.ne.s32.totalorder %v479, 0
      %vm584 = vcmp.ne.s32.totalorder %v486, 0
      %vm585 = vcmp.ne.s32.totalorder %v493, 0
      %vm586 = vcmp.ne.s32.totalorder %v500, 0
      %vm587 = vcmp.ne.s32.totalorder %v507, 0
      %vm588 = vcmp.ne.s32.totalorder %v514, 0
      %vm589 = vcmp.ne.s32.totalorder %v521, 0
      %vm590 = vcmp.ne.s32.totalorder %v528, 0
      %vm591 = vcmp.ne.s32.totalorder %v535, 0
      %vm592 = vcmp.ne.s32.totalorder %v542, 0
      %vm593 = vcmp.ne.s32.totalorder %v549, 0
      %vm594 = vcmp.ne.s32.totalorder %v556, 0
      %vm595 = vcmp.ne.s32.totalorder %v563, 0
      %vm596 = vcmp.lt.s32.totalorder %v346, 0
      %vm597 = vcmp.lt.s32.totalorder %v353, 0
      %vm598 = vcmp.lt.s32.totalorder %v360, 0
      %vm599 = vcmp.lt.s32.totalorder %v367, 0
      %vm600 = vcmp.lt.s32.totalorder %v374, 0
      %vm601 = vcmp.lt.s32.totalorder %v381, 0
      %vm602 = vcmp.lt.s32.totalorder %v388, 0
      %vm603 = vcmp.lt.s32.totalorder %v395, 0
      %vm604 = vcmp.lt.s32.totalorder %v402, 0
      %vm605 = vcmp.lt.s32.totalorder %v409, 0
      %vm606 = vcmp.lt.s32.totalorder %v416, 0
      %vm607 = vcmp.lt.s32.totalorder %v423, 0
      %vm608 = vcmp.lt.s32.totalorder %v430, 0
      %vm609 = vcmp.lt.s32.totalorder %v437, 0
      %vm610 = vcmp.lt.s32.totalorder %v444, 0
      %vm611 = vcmp.lt.s32.totalorder %v451, 0
      %vm612 = vcmp.lt.s32.totalorder %v458, 0
      %vm613 = vcmp.lt.s32.totalorder %v465, 0
      %vm614 = vcmp.lt.s32.totalorder %v472, 0
      %vm615 = vcmp.lt.s32.totalorder %v479, 0
      %vm616 = vcmp.lt.s32.totalorder %v486, 0
      %vm617 = vcmp.lt.s32.totalorder %v493, 0
      %vm618 = vcmp.lt.s32.totalorder %v500, 0
      %vm619 = vcmp.lt.s32.totalorder %v507, 0
      %vm620 = vcmp.lt.s32.totalorder %v514, 0
      %vm621 = vcmp.lt.s32.totalorder %v521, 0
      %vm622 = vcmp.lt.s32.totalorder %v528, 0
      %vm623 = vcmp.lt.s32.totalorder %v535, 0
      %vm624 = vcmp.lt.s32.totalorder %v542, 0
      %vm625 = vcmp.lt.s32.totalorder %v549, 0
      %vm626 = vcmp.lt.s32.totalorder %v556, 0
      %vm627 = vcmp.lt.s32.totalorder %v563, 0
      %vm628 = vmand %vm596, %vm564
      %vm629 = vmand %vm597, %vm565
      %vm630 = vmand %vm598, %vm566
      %vm631 = vmand %vm599, %vm567
      %vm632 = vmand %vm600, %vm568
      %vm633 = vmand %vm601, %vm569
      %vm634 = vmand %vm602, %vm570
      %vm635 = vmand %vm603, %vm571
      %vm636 = vmand %vm604, %vm572
      %vm637 = vmand %vm605, %vm573
      %vm638 = vmand %vm606, %vm574
      %vm639 = vmand %vm607, %vm575
      %vm640 = vmand %vm608, %vm576
      %vm641 = vmand %vm609, %vm577
      %vm642 = vmand %vm610, %vm578
      %vm643 = vmand %vm611, %vm579
      %vm644 = vmand %vm612, %vm580
      %vm645 = vmand %vm613, %vm581
      %vm646 = vmand %vm614, %vm582
      %vm647 = vmand %vm615, %vm583
      %vm648 = vmand %vm616, %vm584
      %vm649 = vmand %vm617, %vm585
      %vm650 = vmand %vm618, %vm586
      %vm651 = vmand %vm619, %vm587
      %vm652 = vmand %vm620, %vm588
      %vm653 = vmand %vm621, %vm589
      %vm654 = vmand %vm622, %vm590
      %vm655 = vmand %vm623, %vm591
      %vm656 = vmand %vm624, %vm592
      %vm657 = vmand %vm625, %vm593
      %vm658 = vmand %vm626, %vm594
      %vm659 = vmand %vm627, %vm595
      %v660 = vadd.s32 %v346, 16
      %v661 = vadd.s32 %v353, 16
      %v662 = vadd.s32 %v360, 16
      %v663 = vadd.s32 %v367, 16
      %v664 = vadd.s32 %v374, 16
      %v665 = vadd.s32 %v381, 16
      %v666 = vadd.s32 %v388, 16
      %v667 = vadd.s32 %v395, 16
      %v668 = vadd.s32 %v402, 16
      %v669 = vadd.s32 %v409, 16
      %v670 = vadd.s32 %v416, 16
      %v671 = vadd.s32 %v423, 16
      %v672 = vadd.s32 %v430, 16
      %v673 = vadd.s32 %v437, 16
      %v674 = vadd.s32 %v444, 16
      %v675 = vadd.s32 %v451, 16
      %v676 = vadd.s32 %v458, 16
      %v677 = vadd.s32 %v465, 16
      %v678 = vadd.s32 %v472, 16
      %v679 = vadd.s32 %v479, 16
      %v680 = vadd.s32 %v486, 16
      %v681 = vadd.s32 %v493, 16
      %v682 = vadd.s32 %v500, 16
      %v683 = vadd.s32 %v507, 16
      %v684 = vadd.s32 %v514, 16
      %v685 = vadd.s32 %v521, 16
      %v686 = vadd.s32 %v528, 16
      %v687 = vadd.s32 %v535, 16
      %v688 = vadd.s32 %v542, 16
      %v689 = vadd.s32 %v549, 16
      %v690 = vadd.s32 %v556, 16
      %v691 = vadd.s32 %v563, 16
      %v692 = vsel %vm628, %v660, %v346
      %v693 = vsel %vm629, %v661, %v353
      %v694 = vsel %vm630, %v662, %v360
      %v695 = vsel %vm631, %v663, %v367
      %v696 = vsel %vm632, %v664, %v374
      %v697 = vsel %vm633, %v665, %v381
      %v698 = vsel %vm634, %v666, %v388
      %v699 = vsel %vm635, %v667, %v395
      %v700 = vsel %vm636, %v668, %v402
      %v701 = vsel %vm637, %v669, %v409
      %v702 = vsel %vm638, %v670, %v416
      %v703 = vsel %vm639, %v671, %v423
      %v704 = vsel %vm640, %v672, %v430
      %v705 = vsel %vm641, %v673, %v437
      %v706 = vsel %vm642, %v674, %v444
      %v707 = vsel %vm643, %v675, %v451
      %v708 = vsel %vm644, %v676, %v458
      %v709 = vsel %vm645, %v677, %v465
      %v710 = vsel %vm646, %v678, %v472
      %v711 = vsel %vm647, %v679, %v479
      %v712 = vsel %vm648, %v680, %v486
      %v713 = vsel %vm649, %v681, %v493
      %v714 = vsel %vm650, %v682, %v500
      %v715 = vsel %vm651, %v683, %v507
      %v716 = vsel %vm652, %v684, %v514
      %v717 = vsel %vm653, %v685, %v521
      %v718 = vsel %vm654, %v686, %v528
      %v719 = vsel %vm655, %v687, %v535
      %v720 = vsel %vm656, %v688, %v542
      %v721 = vsel %vm657, %v689, %v549
      %v722 = vsel %vm658, %v690, %v556
      %v723 = vsel %vm659, %v691, %v563
      %vm724 = vcmp.ne.s32.totalorder %v692, 0
      %vm725 = vcmp.ne.s32.totalorder %v693, 0
      %vm726 = vcmp.ne.s32.totalorder %v694, 0
      %vm727 = vcmp.ne.s32.totalorder %v695, 0
      %vm728 = vcmp.ne.s32.totalorder %v696, 0
      %vm729 = vcmp.ne.s32.totalorder %v697, 0
      %vm730 = vcmp.ne.s32.totalorder %v698, 0
      %vm731 = vcmp.ne.s32.totalorder %v699, 0
      %vm732 = vcmp.ne.s32.totalorder %v700, 0
      %vm733 = vcmp.ne.s32.totalorder %v701, 0
      %vm734 = vcmp.ne.s32.totalorder %v702, 0
      %vm735 = vcmp.ne.s32.totalorder %v703, 0
      %vm736 = vcmp.ne.s32.totalorder %v704, 0
      %vm737 = vcmp.ne.s32.totalorder %v705, 0
      %vm738 = vcmp.ne.s32.totalorder %v706, 0
      %vm739 = vcmp.ne.s32.totalorder %v707, 0
      %vm740 = vcmp.ne.s32.totalorder %v708, 0
      %vm741 = vcmp.ne.s32.totalorder %v709, 0
      %vm742 = vcmp.ne.s32.totalorder %v710, 0
      %vm743 = vcmp.ne.s32.totalorder %v711, 0
      %vm744 = vcmp.ne.s32.totalorder %v712, 0
      %vm745 = vcmp.ne.s32.totalorder %v713, 0
      %vm746 = vcmp.ne.s32.totalorder %v714, 0
      %vm747 = vcmp.ne.s32.totalorder %v715, 0
      %vm748 = vcmp.ne.s32.totalorder %v716, 0
      %vm749 = vcmp.ne.s32.totalorder %v717, 0
      %vm750 = vcmp.ne.s32.totalorder %v718, 0
      %vm751 = vcmp.ne.s32.totalorder %v719, 0
      %vm752 = vcmp.ne.s32.totalorder %v720, 0
      %vm753 = vcmp.ne.s32.totalorder %v721, 0
      %vm754 = vcmp.ne.s32.totalorder %v722, 0
      %vm755 = vcmp.ne.s32.totalorder %v723, 0
      %v756 = vsel %vm724, 1, 0
      %v757 = vsel %vm725, 1, 0
      %v758 = vsel %vm726, 1, 0
      %v759 = vsel %vm727, 1, 0
      %v760 = vsel %vm728, 1, 0
      %v761 = vsel %vm729, 1, 0
      %v762 = vsel %vm730, 1, 0
      %v763 = vsel %vm731, 1, 0
      %v764 = vsel %vm732, 1, 0
      %v765 = vsel %vm733, 1, 0
      %v766 = vsel %vm734, 1, 0
      %v767 = vsel %vm735, 1, 0
      %v768 = vsel %vm736, 1, 0
      %v769 = vsel %vm737, 1, 0
      %v770 = vsel %vm738, 1, 0
      %v771 = vsel %vm739, 1, 0
      %v772 = vsel %vm740, 1, 0
      %v773 = vsel %vm741, 1, 0
      %v774 = vsel %vm742, 1, 0
      %v775 = vsel %vm743, 1, 0
      %v776 = vsel %vm744, 1, 0
      %v777 = vsel %vm745, 1, 0
      %v778 = vsel %vm746, 1, 0
      %v779 = vsel %vm747, 1, 0
      %v780 = vsel %vm748, 1, 0
      %v781 = vsel %vm749, 1, 0
      %v782 = vsel %vm750, 1, 0
      %v783 = vsel %vm751, 1, 0
      %v784 = vsel %vm752, 1, 0
      %v785 = vsel %vm753, 1, 0
      %v786 = vsel %vm754, 1, 0
      %v787 = vsel %vm755, 1, 0
      %v788 = vcvt.s32.f32 %v756
      %v789 = vcvt.s32.f32 %v757
      %v790 = vcvt.s32.f32 %v758
      %v791 = vcvt.s32.f32 %v759
      %v792 = vcvt.s32.f32 %v760
      %v793 = vcvt.s32.f32 %v761
      %v794 = vcvt.s32.f32 %v762
      %v795 = vcvt.s32.f32 %v763
      %v796 = vcvt.s32.f32 %v764
      %v797 = vcvt.s32.f32 %v765
      %v798 = vcvt.s32.f32 %v766
      %v799 = vcvt.s32.f32 %v767
      %v800 = vcvt.s32.f32 %v768
      %v801 = vcvt.s32.f32 %v769
      %v802 = vcvt.s32.f32 %v770
      %v803 = vcvt.s32.f32 %v771
      %v804 = vcvt.s32.f32 %v772
      %v805 = vcvt.s32.f32 %v773
      %v806 = vcvt.s32.f32 %v774
      %v807 = vcvt.s32.f32 %v775
      %v808 = vcvt.s32.f32 %v776
      %v809 = vcvt.s32.f32 %v777
      %v810 = vcvt.s32.f32 %v778
      %v811 = vcvt.s32.f32 %v779
      %v812 = vcvt.s32.f32 %v780
      %v813 = vcvt.s32.f32 %v781
      %v814 = vcvt.s32.f32 %v782
      %v815 = vcvt.s32.f32 %v783
      %v816 = vcvt.s32.f32 %v784
      %v817 = vcvt.s32.f32 %v785
      %v818 = vcvt.s32.f32 %v786
      %v819 = vcvt.s32.f32 %v787
      %vm820 = vcmp.ne.s32.totalorder %v692, 15
      %vm821 = vcmp.ne.s32.totalorder %v693, 15
      %vm822 = vcmp.ne.s32.totalorder %v694, 15
      %vm823 = vcmp.ne.s32.totalorder %v695, 15
      %vm824 = vcmp.ne.s32.totalorder %v696, 15
      %vm825 = vcmp.ne.s32.totalorder %v697, 15
      %vm826 = vcmp.ne.s32.totalorder %v698, 15
      %vm827 = vcmp.ne.s32.totalorder %v699, 15
      %vm828 = vcmp.ne.s32.totalorder %v700, 15
      %vm829 = vcmp.ne.s32.totalorder %v701, 15
      %vm830 = vcmp.ne.s32.totalorder %v702, 15
      %vm831 = vcmp.ne.s32.totalorder %v703, 15
      %vm832 = vcmp.ne.s32.totalorder %v704, 15
      %vm833 = vcmp.ne.s32.totalorder %v705, 15
      %vm834 = vcmp.ne.s32.totalorder %v706, 15
      %vm835 = vcmp.ne.s32.totalorder %v707, 15
      %vm836 = vcmp.ne.s32.totalorder %v708, 15
      %vm837 = vcmp.ne.s32.totalorder %v709, 15
      %vm838 = vcmp.ne.s32.totalorder %v710, 15
      %vm839 = vcmp.ne.s32.totalorder %v711, 15
      %vm840 = vcmp.ne.s32.totalorder %v712, 15
      %vm841 = vcmp.ne.s32.totalorder %v713, 15
      %vm842 = vcmp.ne.s32.totalorder %v714, 15
      %vm843 = vcmp.ne.s32.totalorder %v715, 15
      %vm844 = vcmp.ne.s32.totalorder %v716, 15
      %vm845 = vcmp.ne.s32.totalorder %v717, 15
      %vm846 = vcmp.ne.s32.totalorder %v718, 15
      %vm847 = vcmp.ne.s32.totalorder %v719, 15
      %vm848 = vcmp.ne.s32.totalorder %v720, 15
      %vm849 = vcmp.ne.s32.totalorder %v721, 15
      %vm850 = vcmp.ne.s32.totalorder %v722, 15
      %vm851 = vcmp.ne.s32.totalorder %v723, 15
      %v852 = vsel %vm820, 1, 0
      %v853 = vsel %vm821, 1, 0
      %v854 = vsel %vm822, 1, 0
      %v855 = vsel %vm823, 1, 0
      %v856 = vsel %vm824, 1, 0
      %v857 = vsel %vm825, 1, 0
      %v858 = vsel %vm826, 1, 0
      %v859 = vsel %vm827, 1, 0
      %v860 = vsel %vm828, 1, 0
      %v861 = vsel %vm829, 1, 0
      %v862 = vsel %vm830, 1, 0
      %v863 = vsel %vm831, 1, 0
      %v864 = vsel %vm832, 1, 0
      %v865 = vsel %vm833, 1, 0
      %v866 = vsel %vm834, 1, 0
      %v867 = vsel %vm835, 1, 0
      %v868 = vsel %vm836, 1, 0
      %v869 = vsel %vm837, 1, 0
      %v870 = vsel %vm838, 1, 0
      %v871 = vsel %vm839, 1, 0
      %v872 = vsel %vm840, 1, 0
      %v873 = vsel %vm841, 1, 0
      %v874 = vsel %vm842, 1, 0
      %v875 = vsel %vm843, 1, 0
      %v876 = vsel %vm844, 1, 0
      %v877 = vsel %vm845, 1, 0
      %v878 = vsel %vm846, 1, 0
      %v879 = vsel %vm847, 1, 0
      %v880 = vsel %vm848, 1, 0
      %v881 = vsel %vm849, 1, 0
      %v882 = vsel %vm850, 1, 0
      %v883 = vsel %vm851, 1, 0
      %v884 = vcvt.s32.f32 %v852
      %v885 = vcvt.s32.f32 %v853
      %v886 = vcvt.s32.f32 %v854
      %v887 = vcvt.s32.f32 %v855
      %v888 = vcvt.s32.f32 %v856
      %v889 = vcvt.s32.f32 %v857
      %v890 = vcvt.s32.f32 %v858
      %v891 = vcvt.s32.f32 %v859
      %v892 = vcvt.s32.f32 %v860
      %v893 = vcvt.s32.f32 %v861
      %v894 = vcvt.s32.f32 %v862
      %v895 = vcvt.s32.f32 %v863
      %v896 = vcvt.s32.f32 %v864
      %v897 = vcvt.s32.f32 %v865
      %v898 = vcvt.s32.f32 %v866
      %v899 = vcvt.s32.f32 %v867
      %v900 = vcvt.s32.f32 %v868
      %v901 = vcvt.s32.f32 %v869
      %v902 = vcvt.s32.f32 %v870
      %v903 = vcvt.s32.f32 %v871
      %v904 = vcvt.s32.f32 %v872
      %v905 = vcvt.s32.f32 %v873
      %v906 = vcvt.s32.f32 %v874
      %v907 = vcvt.s32.f32 %v875
      %v908 = vcvt.s32.f32 %v876
      %v909 = vcvt.s32.f32 %v877
      %v910 = vcvt.s32.f32 %v878
      %v911 = vcvt.s32.f32 %v879
      %v912 = vcvt.s32.f32 %v880
      %v913 = vcvt.s32.f32 %v881
      %v914 = vcvt.s32.f32 %v882
      %v915 = vcvt.s32.f32 %v883
      %vm916 = vcmp.ge.s32.totalorder %v308, 16
      %vm917 = vcmp.ge.s32.totalorder %v309, 16
      %vm918 = vcmp.ge.s32.totalorder %v310, 16
      %vm919 = vcmp.ge.s32.totalorder %v311, 16
      %vm920 = vcmp.ge.s32.totalorder %v312, 16
      %vm921 = vcmp.ge.s32.totalorder %v313, 16
      %vm922 = vcmp.ge.s32.totalorder %v314, 16
      %vm923 = vcmp.ge.s32.totalorder %v315, 16
      %vm924 = vcmp.ge.s32.totalorder %v316, 16
      %vm925 = vcmp.ge.s32.totalorder %v317, 16
      %vm926 = vcmp.ge.s32.totalorder %v318, 16
      %vm927 = vcmp.ge.s32.totalorder %v319, 16
      %vm928 = vcmp.ge.s32.totalorder %v320, 16
      %vm929 = vcmp.ge.s32.totalorder %v321, 16
      %vm930 = vcmp.ge.s32.totalorder %v322, 16
      %vm931 = vcmp.ge.s32.totalorder %v323, 16
      %vm932 = vcmp.ge.s32.totalorder %v324, 16
      %vm933 = vcmp.ge.s32.totalorder %v325, 16
      %vm934 = vcmp.ge.s32.totalorder %v326, 16
      %vm935 = vcmp.ge.s32.totalorder %v327, 16
      %vm936 = vcmp.ge.s32.totalorder %v328, 16
      %vm937 = vcmp.ge.s32.totalorder %v329, 16
      %vm938 = vcmp.ge.s32.totalorder %v330, 16
      %vm939 = vcmp.ge.s32.totalorder %v331, 16
      %vm940 = vcmp.ge.s32.totalorder %v332, 16
      %vm941 = vcmp.ge.s32.totalorder %v333, 16
      %vm942 = vcmp.ge.s32.totalorder %v334, 16
      %vm943 = vcmp.ge.s32.totalorder %v335, 16
      %vm944 = vcmp.ge.s32.totalorder %v336, 16
      %vm945 = vcmp.ge.s32.totalorder %v337, 16
      %vm946 = vcmp.ge.s32.totalorder %v338, 16
      %vm947 = vcmp.ge.s32.totalorder %v339, 16
      %vm948 = vcmp.lt.s32.totalorder %v308, 240
      %vm949 = vcmp.lt.s32.totalorder %v309, 240
      %vm950 = vcmp.lt.s32.totalorder %v310, 240
      %vm951 = vcmp.lt.s32.totalorder %v311, 240
      %vm952 = vcmp.lt.s32.totalorder %v312, 240
      %vm953 = vcmp.lt.s32.totalorder %v313, 240
      %vm954 = vcmp.lt.s32.totalorder %v314, 240
      %vm955 = vcmp.lt.s32.totalorder %v315, 240
      %vm956 = vcmp.lt.s32.totalorder %v316, 240
      %vm957 = vcmp.lt.s32.totalorder %v317, 240
      %vm958 = vcmp.lt.s32.totalorder %v318, 240
      %vm959 = vcmp.lt.s32.totalorder %v319, 240
      %vm960 = vcmp.lt.s32.totalorder %v320, 240
      %vm961 = vcmp.lt.s32.totalorder %v321, 240
      %vm962 = vcmp.lt.s32.totalorder %v322, 240
      %vm963 = vcmp.lt.s32.totalorder %v323, 240
      %vm964 = vcmp.lt.s32.totalorder %v324, 240
      %vm965 = vcmp.lt.s32.totalorder %v325, 240
      %vm966 = vcmp.lt.s32.totalorder %v326, 240
      %vm967 = vcmp.lt.s32.totalorder %v327, 240
      %vm968 = vcmp.lt.s32.totalorder %v328, 240
      %vm969 = vcmp.lt.s32.totalorder %v329, 240
      %vm970 = vcmp.lt.s32.totalorder %v330, 240
      %vm971 = vcmp.lt.s32.totalorder %v331, 240
      %vm972 = vcmp.lt.s32.totalorder %v332, 240
      %vm973 = vcmp.lt.s32.totalorder %v333, 240
      %vm974 = vcmp.lt.s32.totalorder %v334, 240
      %vm975 = vcmp.lt.s32.totalorder %v335, 240
      %vm976 = vcmp.lt.s32.totalorder %v336, 240
      %vm977 = vcmp.lt.s32.totalorder %v337, 240
      %vm978 = vcmp.lt.s32.totalorder %v338, 240
      %vm979 = vcmp.lt.s32.totalorder %v339, 240
      %v980 = vld [vmem:[%s300] sm:$0xf]
      %v981 = vld [vmem:[%s300 + $0x4] sm:$0xf]
      %v982 = vld [vmem:[%s300 + $0x8] sm:$0xf]
      %v983 = vld [vmem:[%s300 + $0xc] sm:$0xf]
      %v984 = vld [vmem:[%s300 + $0x10] sm:$0xf]
      %v985 = vld [vmem:[%s300 + $0x14] sm:$0xf]
      %v986 = vld [vmem:[%s300 + $0x18] sm:$0xf]
      %v987 = vld [vmem:[%s300 + $0x1c] sm:$0xf]
      %v988 = vld [vmem:[%s300 + $0x20] sm:$0xf]
      %v989 = vld [vmem:[%s300 + $0x24] sm:$0xf]
      %v990 = vld [vmem:[%s300 + $0x28] sm:$0xf]
      %v991 = vld [vmem:[%s300 + $0x2c] sm:$0xf]
      %v992 = vld [vmem:[%s300 + $0x30] sm:$0xf]
      %v993 = vld [vmem:[%s300 + $0x34] sm:$0xf]
      %v994 = vld [vmem:[%s300 + $0x38] sm:$0xf]
      %v995 = vld [vmem:[%s300 + $0x3c] sm:$0xf]
      %v996 = vld [vmem:[%s300 + $0x40] sm:$0xf]
      %v997 = vld [vmem:[%s300 + $0x44] sm:$0xf]
      %v998 = vld [vmem:[%s300 + $0x48] sm:$0xf]
      %v999 = vld [vmem:[%s300 + $0x4c] sm:$0xf]
      %v1000 = vld [vmem:[%s300 + $0x50] sm:$0xf]
      %v1001 = vld [vmem:[%s300 + $0x54] sm:$0xf]
      %v1002 = vld [vmem:[%s300 + $0x58] sm:$0xf]
      %v1003 = vld [vmem:[%s300 + $0x5c] sm:$0xf]
      %v1004 = vld [vmem:[%s300 + $0x60] sm:$0xf]
      %v1005 = vld [vmem:[%s300 + $0x64] sm:$0xf]
      %v1006 = vld [vmem:[%s300 + $0x68] sm:$0xf]
      %v1007 = vld [vmem:[%s300 + $0x6c] sm:$0xf]
      %v1008 = vld [vmem:[%s300 + $0x70] sm:$0xf]
      %v1009 = vld [vmem:[%s300 + $0x74] sm:$0xf]
      %v1010 = vld [vmem:[%s300 + $0x78] sm:$0xf]
      %v1011 = vld [vmem:[%s300 + $0x7c] sm:$0xf]
      %v1012 = vunpack.c.l.bf16 %v980
      %v1013 = vunpack.c.l.bf16 %v981
      %v1014 = vunpack.c.l.bf16 %v982
      %v1015 = vunpack.c.l.bf16 %v983
      %v1016 = vunpack.c.l.bf16 %v984
      %v1017 = vunpack.c.l.bf16 %v985
      %v1018 = vunpack.c.l.bf16 %v986
      %v1019 = vunpack.c.l.bf16 %v987
      %v1020 = vunpack.c.l.bf16 %v988
      %v1021 = vunpack.c.l.bf16 %v989
      %v1022 = vunpack.c.l.bf16 %v990
      %v1023 = vunpack.c.l.bf16 %v991
      %v1024 = vunpack.c.l.bf16 %v992
      %v1025 = vunpack.c.l.bf16 %v993
      %v1026 = vunpack.c.l.bf16 %v994
      %v1027 = vunpack.c.l.bf16 %v995
      %v1028 = vunpack.c.l.bf16 %v996
      %v1029 = vunpack.c.l.bf16 %v997
      %v1030 = vunpack.c.l.bf16 %v998
      %v1031 = vunpack.c.l.bf16 %v999
      %v1032 = vunpack.c.l.bf16 %v1000
      %v1033 = vunpack.c.l.bf16 %v1001
      %v1034 = vunpack.c.l.bf16 %v1002
      %v1035 = vunpack.c.l.bf16 %v1003
      %v1036 = vunpack.c.l.bf16 %v1004
      %v1037 = vunpack.c.l.bf16 %v1005
      %v1038 = vunpack.c.l.bf16 %v1006
      %v1039 = vunpack.c.l.bf16 %v1007
      %v1040 = vunpack.c.l.bf16 %v1008
      %v1041 = vunpack.c.l.bf16 %v1009
      %v1042 = vunpack.c.l.bf16 %v1010
      %v1043 = vunpack.c.l.bf16 %v1011
      %v1044 = vld [vmem:[%s1] sm:$0x1]
      %v1046 = vperm.slane %v1044, 0
      %v1048 = vmul.f32 %v1012, %v1046
      %v1049 = vmul.f32 %v1013, %v1046
      %v1050 = vmul.f32 %v1014, %v1046
      %v1051 = vmul.f32 %v1015, %v1046
      %v1052 = vmul.f32 %v1016, %v1046
      %v1053 = vmul.f32 %v1017, %v1046
      %v1054 = vmul.f32 %v1018, %v1046
      %v1055 = vmul.f32 %v1019, %v1046
      %v1056 = vmul.f32 %v1020, %v1046
      %v1057 = vmul.f32 %v1021, %v1046
      %v1058 = vmul.f32 %v1022, %v1046
      %v1059 = vmul.f32 %v1023, %v1046
      %v1060 = vmul.f32 %v1024, %v1046
      %v1061 = vmul.f32 %v1025, %v1046
      %v1062 = vmul.f32 %v1026, %v1046
      %v1063 = vmul.f32 %v1027, %v1046
      %v1064 = vmul.f32 %v1028, %v1046
      %v1065 = vmul.f32 %v1029, %v1046
      %v1066 = vmul.f32 %v1030, %v1046
      %v1067 = vmul.f32 %v1031, %v1046
      %v1068 = vmul.f32 %v1032, %v1046
      %v1069 = vmul.f32 %v1033, %v1046
      %v1070 = vmul.f32 %v1034, %v1046
      %v1071 = vmul.f32 %v1035, %v1046
      %v1072 = vmul.f32 %v1036, %v1046
      %v1073 = vmul.f32 %v1037, %v1046
      %v1074 = vmul.f32 %v1038, %v1046
      %v1075 = vmul.f32 %v1039, %v1046
      %v1076 = vmul.f32 %v1040, %v1046
      %v1077 = vmul.f32 %v1041, %v1046
      %v1078 = vmul.f32 %v1042, %v1046
      %v1079 = vmul.f32 %v1043, %v1046
      %v1080 = vld [vmem:[%s2] sm:$0x1]
      %v1082 = vperm.slane %v1080, 0
      %v1084 = vadd.f32 %v1048, %v1082
      %v1085 = vadd.f32 %v1049, %v1082
      %v1086 = vadd.f32 %v1050, %v1082
      %v1087 = vadd.f32 %v1051, %v1082
      %v1088 = vadd.f32 %v1052, %v1082
      %v1089 = vadd.f32 %v1053, %v1082
      %v1090 = vadd.f32 %v1054, %v1082
      %v1091 = vadd.f32 %v1055, %v1082
      %v1092 = vadd.f32 %v1056, %v1082
      %v1093 = vadd.f32 %v1057, %v1082
      %v1094 = vadd.f32 %v1058, %v1082
      %v1095 = vadd.f32 %v1059, %v1082
      %v1096 = vadd.f32 %v1060, %v1082
      %v1097 = vadd.f32 %v1061, %v1082
      %v1098 = vadd.f32 %v1062, %v1082
      %v1099 = vadd.f32 %v1063, %v1082
      %v1100 = vadd.f32 %v1064, %v1082
      %v1101 = vadd.f32 %v1065, %v1082
      %v1102 = vadd.f32 %v1066, %v1082
      %v1103 = vadd.f32 %v1067, %v1082
      %v1104 = vadd.f32 %v1068, %v1082
      %v1105 = vadd.f32 %v1069, %v1082
      %v1106 = vadd.f32 %v1070, %v1082
      %v1107 = vadd.f32 %v1071, %v1082
      %v1108 = vadd.f32 %v1072, %v1082
      %v1109 = vadd.f32 %v1073, %v1082
      %v1110 = vadd.f32 %v1074, %v1082
      %v1111 = vadd.f32 %v1075, %v1082
      %v1112 = vadd.f32 %v1076, %v1082
      %v1113 = vadd.f32 %v1077, %v1082
      %v1114 = vadd.f32 %v1078, %v1082
      %v1115 = vadd.f32 %v1079, %v1082
      %v1116 = vmax.f32 %v1084, 0.0
      %v1117 = vmax.f32 %v1085, 0.0
      %v1118 = vmax.f32 %v1086, 0.0
      %v1119 = vmax.f32 %v1087, 0.0
      %v1120 = vmax.f32 %v1088, 0.0
      %v1121 = vmax.f32 %v1089, 0.0
      %v1122 = vmax.f32 %v1090, 0.0
      %v1123 = vmax.f32 %v1091, 0.0
      %v1124 = vmax.f32 %v1092, 0.0
      %v1125 = vmax.f32 %v1093, 0.0
      %v1126 = vmax.f32 %v1094, 0.0
      %v1127 = vmax.f32 %v1095, 0.0
      %v1128 = vmax.f32 %v1096, 0.0
      %v1129 = vmax.f32 %v1097, 0.0
      %v1130 = vmax.f32 %v1098, 0.0
      %v1131 = vmax.f32 %v1099, 0.0
      %v1132 = vmax.f32 %v1100, 0.0
      %v1133 = vmax.f32 %v1101, 0.0
      %v1134 = vmax.f32 %v1102, 0.0
      %v1135 = vmax.f32 %v1103, 0.0
      %v1136 = vmax.f32 %v1104, 0.0
      %v1137 = vmax.f32 %v1105, 0.0
      %v1138 = vmax.f32 %v1106, 0.0
      %v1139 = vmax.f32 %v1107, 0.0
      %v1140 = vmax.f32 %v1108, 0.0
      %v1141 = vmax.f32 %v1109, 0.0
      %v1142 = vmax.f32 %v1110, 0.0
      %v1143 = vmax.f32 %v1111, 0.0
      %v1144 = vmax.f32 %v1112, 0.0
      %v1145 = vmax.f32 %v1113, 0.0
      %v1146 = vmax.f32 %v1114, 0.0
      %v1147 = vmax.f32 %v1115, 0.0
      %v1148 = vsel %vm916, 1, 0
      %v1149 = vsel %vm917, 1, 0
      %v1150 = vsel %vm918, 1, 0
      %v1151 = vsel %vm919, 1, 0
      %v1152 = vsel %vm920, 1, 0
      %v1153 = vsel %vm921, 1, 0
      %v1154 = vsel %vm922, 1, 0
      %v1155 = vsel %vm923, 1, 0
      %v1156 = vsel %vm924, 1, 0
      %v1157 = vsel %vm925, 1, 0
      %v1158 = vsel %vm926, 1, 0
      %v1159 = vsel %vm927, 1, 0
      %v1160 = vsel %vm928, 1, 0
      %v1161 = vsel %vm929, 1, 0
      %v1162 = vsel %vm930, 1, 0
      %v1163 = vsel %vm931, 1, 0
      %v1164 = vsel %vm932, 1, 0
      %v1165 = vsel %vm933, 1, 0
      %v1166 = vsel %vm934, 1, 0
      %v1167 = vsel %vm935, 1, 0
      %v1168 = vsel %vm936, 1, 0
      %v1169 = vsel %vm937, 1, 0
      %v1170 = vsel %vm938, 1, 0
      %v1171 = vsel %vm939, 1, 0
      %v1172 = vsel %vm940, 1, 0
      %v1173 = vsel %vm941, 1, 0
      %v1174 = vsel %vm942, 1, 0
      %v1175 = vsel %vm943, 1, 0
      %v1176 = vsel %vm944, 1, 0
      %v1177 = vsel %vm945, 1, 0
      %v1178 = vsel %vm946, 1, 0
      %v1179 = vsel %vm947, 1, 0
      %vm1180 = vcmp.eq.s32.totalorder %v1148, 1
      %vm1181 = vcmp.eq.s32.totalorder %v1149, 1
      %vm1182 = vcmp.eq.s32.totalorder %v1150, 1
      %vm1183 = vcmp.eq.s32.totalorder %v1151, 1
      %vm1184 = vcmp.eq.s32.totalorder %v1152, 1
      %vm1185 = vcmp.eq.s32.totalorder %v1153, 1
      %vm1186 = vcmp.eq.s32.totalorder %v1154, 1
      %vm1187 = vcmp.eq.s32.totalorder %v1155, 1
      %vm1188 = vcmp.eq.s32.totalorder %v1156, 1
      %vm1189 = vcmp.eq.s32.totalorder %v1157, 1
      %vm1190 = vcmp.eq.s32.totalorder %v1158, 1
      %vm1191 = vcmp.eq.s32.totalorder %v1159, 1
      %vm1192 = vcmp.eq.s32.totalorder %v1160, 1
      %vm1193 = vcmp.eq.s32.totalorder %v1161, 1
      %vm1194 = vcmp.eq.s32.totalorder %v1162, 1
      %vm1195 = vcmp.eq.s32.totalorder %v1163, 1
      %vm1196 = vcmp.eq.s32.totalorder %v1164, 1
      %vm1197 = vcmp.eq.s32.totalorder %v1165, 1
      %vm1198 = vcmp.eq.s32.totalorder %v1166, 1
      %vm1199 = vcmp.eq.s32.totalorder %v1167, 1
      %vm1200 = vcmp.eq.s32.totalorder %v1168, 1
      %vm1201 = vcmp.eq.s32.totalorder %v1169, 1
      %vm1202 = vcmp.eq.s32.totalorder %v1170, 1
      %vm1203 = vcmp.eq.s32.totalorder %v1171, 1
      %vm1204 = vcmp.eq.s32.totalorder %v1172, 1
      %vm1205 = vcmp.eq.s32.totalorder %v1173, 1
      %vm1206 = vcmp.eq.s32.totalorder %v1174, 1
      %vm1207 = vcmp.eq.s32.totalorder %v1175, 1
      %vm1208 = vcmp.eq.s32.totalorder %v1176, 1
      %vm1209 = vcmp.eq.s32.totalorder %v1177, 1
      %vm1210 = vcmp.eq.s32.totalorder %v1178, 1
      %vm1211 = vcmp.eq.s32.totalorder %v1179, 1
      %v1212 = vsel %vm1180, %v1146, 0.0
      %v1213 = vsel %vm1181, %v1147, 0.0
      %v1214 = vsel %vm1182, %v1116, 0.0
      %v1215 = vsel %vm1183, %v1117, 0.0
      %v1216 = vsel %vm1184, %v1118, 0.0
      %v1217 = vsel %vm1185, %v1119, 0.0
      %v1218 = vsel %vm1186, %v1120, 0.0
      %v1219 = vsel %vm1187, %v1121, 0.0
      %v1220 = vsel %vm1188, %v1122, 0.0
      %v1221 = vsel %vm1189, %v1123, 0.0
      %v1222 = vsel %vm1190, %v1124, 0.0
      %v1223 = vsel %vm1191, %v1125, 0.0
      %v1224 = vsel %vm1192, %v1126, 0.0
      %v1225 = vsel %vm1193, %v1127, 0.0
      %v1226 = vsel %vm1194, %v1128, 0.0
      %v1227 = vsel %vm1195, %v1129, 0.0
      %v1228 = vsel %vm1196, %v1130, 0.0
      %v1229 = vsel %vm1197, %v1131, 0.0
      %v1230 = vsel %vm1198, %v1132, 0.0
      %v1231 = vsel %vm1199, %v1133, 0.0
      %v1232 = vsel %vm1200, %v1134, 0.0
      %v1233 = vsel %vm1201, %v1135, 0.0
      %v1234 = vsel %vm1202, %v1136, 0.0
      %v1235 = vsel %vm1203, %v1137, 0.0
      %v1236 = vsel %vm1204, %v1138, 0.0
      %v1237 = vsel %vm1205, %v1139, 0.0
      %v1238 = vsel %vm1206, %v1140, 0.0
      %v1239 = vsel %vm1207, %v1141, 0.0
      %v1240 = vsel %vm1208, %v1142, 0.0
      %v1241 = vsel %vm1209, %v1143, 0.0
      %v1242 = vsel %vm1210, %v1144, 0.0
      %v1243 = vsel %vm1211, %v1145, 0.0
      %v1244 = vsel %vm948, 1, 0
      %v1245 = vsel %vm949, 1, 0
      %v1246 = vsel %vm950, 1, 0
      %v1247 = vsel %vm951, 1, 0
      %v1248 = vsel %vm952, 1, 0
      %v1249 = vsel %vm953, 1, 0
      %v1250 = vsel %vm954, 1, 0
      %v1251 = vsel %vm955, 1, 0
      %v1252 = vsel %vm956, 1, 0
      %v1253 = vsel %vm957, 1, 0
      %v1254 = vsel %vm958, 1, 0
      %v1255 = vsel %vm959, 1, 0
      %v1256 = vsel %vm960, 1, 0
      %v1257 = vsel %vm961, 1, 0
      %v1258 = vsel %vm962, 1, 0
      %v1259 = vsel %vm963, 1, 0
      %v1260 = vsel %vm964, 1, 0
      %v1261 = vsel %vm965, 1, 0
      %v1262 = vsel %vm966, 1, 0
      %v1263 = vsel %vm967, 1, 0
      %v1264 = vsel %vm968, 1, 0
      %v1265 = vsel %vm969, 1, 0
      %v1266 = vsel %vm970, 1, 0
      %v1267 = vsel %vm971, 1, 0
      %v1268 = vsel %vm972, 1, 0
      %v1269 = vsel %vm973, 1, 0
      %v1270 = vsel %vm974, 1, 0
      %v1271 = vsel %vm975, 1, 0
      %v1272 = vsel %vm976, 1, 0
      %v1273 = vsel %vm977, 1, 0
      %v1274 = vsel %vm978, 1, 0
      %v1275 = vsel %vm979, 1, 0
      %vm1276 = vcmp.eq.s32.totalorder %v1244, 1
      %vm1277 = vcmp.eq.s32.totalorder %v1245, 1
      %vm1278 = vcmp.eq.s32.totalorder %v1246, 1
      %vm1279 = vcmp.eq.s32.totalorder %v1247, 1
      %vm1280 = vcmp.eq.s32.totalorder %v1248, 1
      %vm1281 = vcmp.eq.s32.totalorder %v1249, 1
      %vm1282 = vcmp.eq.s32.totalorder %v1250, 1
      %vm1283 = vcmp.eq.s32.totalorder %v1251, 1
      %vm1284 = vcmp.eq.s32.totalorder %v1252, 1
      %vm1285 = vcmp.eq.s32.totalorder %v1253, 1
      %vm1286 = vcmp.eq.s32.totalorder %v1254, 1
      %vm1287 = vcmp.eq.s32.totalorder %v1255, 1
      %vm1288 = vcmp.eq.s32.totalorder %v1256, 1
      %vm1289 = vcmp.eq.s32.totalorder %v1257, 1
      %vm1290 = vcmp.eq.s32.totalorder %v1258, 1
      %vm1291 = vcmp.eq.s32.totalorder %v1259, 1
      %vm1292 = vcmp.eq.s32.totalorder %v1260, 1
      %vm1293 = vcmp.eq.s32.totalorder %v1261, 1
      %vm1294 = vcmp.eq.s32.totalorder %v1262, 1
      %vm1295 = vcmp.eq.s32.totalorder %v1263, 1
      %vm1296 = vcmp.eq.s32.totalorder %v1264, 1
      %vm1297 = vcmp.eq.s32.totalorder %v1265, 1
      %vm1298 = vcmp.eq.s32.totalorder %v1266, 1
      %vm1299 = vcmp.eq.s32.totalorder %v1267, 1
      %vm1300 = vcmp.eq.s32.totalorder %v1268, 1
      %vm1301 = vcmp.eq.s32.totalorder %v1269, 1
      %vm1302 = vcmp.eq.s32.totalorder %v1270, 1
      %vm1303 = vcmp.eq.s32.totalorder %v1271, 1
      %vm1304 = vcmp.eq.s32.totalorder %v1272, 1
      %vm1305 = vcmp.eq.s32.totalorder %v1273, 1
      %vm1306 = vcmp.eq.s32.totalorder %v1274, 1
      %vm1307 = vcmp.eq.s32.totalorder %v1275, 1
      %v1308 = vsel %vm1276, %v1118, 0.0
      %v1309 = vsel %vm1277, %v1119, 0.0
      %v1310 = vsel %vm1278, %v1120, 0.0
      %v1311 = vsel %vm1279, %v1121, 0.0
      %v1312 = vsel %vm1280, %v1122, 0.0
      %v1313 = vsel %vm1281, %v1123, 0.0
      %v1314 = vsel %vm1282, %v1124, 0.0
      %v1315 = vsel %vm1283, %v1125, 0.0
      %v1316 = vsel %vm1284, %v1126, 0.0
      %v1317 = vsel %vm1285, %v1127, 0.0
      %v1318 = vsel %vm1286, %v1128, 0.0
      %v1319 = vsel %vm1287, %v1129, 0.0
      %v1320 = vsel %vm1288, %v1130, 0.0
      %v1321 = vsel %vm1289, %v1131, 0.0
      %v1322 = vsel %vm1290, %v1132, 0.0
      %v1323 = vsel %vm1291, %v1133, 0.0
      %v1324 = vsel %vm1292, %v1134, 0.0
      %v1325 = vsel %vm1293, %v1135, 0.0
      %v1326 = vsel %vm1294, %v1136, 0.0
      %v1327 = vsel %vm1295, %v1137, 0.0
      %v1328 = vsel %vm1296, %v1138, 0.0
      %v1329 = vsel %vm1297, %v1139, 0.0
      %v1330 = vsel %vm1298, %v1140, 0.0
      %v1331 = vsel %vm1299, %v1141, 0.0
      %v1332 = vsel %vm1300, %v1142, 0.0
      %v1333 = vsel %vm1301, %v1143, 0.0
      %v1334 = vsel %vm1302, %v1144, 0.0
      %v1335 = vsel %vm1303, %v1145, 0.0
      %v1336 = vsel %vm1304, %v1146, 0.0
      %v1337 = vsel %vm1305, %v1147, 0.0
      %v1338 = vsel %vm1306, %v1116, 0.0
      %v1339 = vsel %vm1307, %v1117, 0.0
      %1372 = vrot.lane.b32.xlu0 %v1116, 8
      %v1373 = vpop.permute.xlu0 %1372
      %1374 = vrot.lane.b32.xlu0 %v1117, 8
      %v1375 = vpop.permute.xlu0 %1374
      %1376 = vrot.lane.b32.xlu0 %v1118, 8
      %v1377 = vpop.permute.xlu0 %1376
      %1378 = vrot.lane.b32.xlu0 %v1119, 8
      %v1379 = vpop.permute.xlu0 %1378
      %1380 = vrot.lane.b32.xlu0 %v1120, 8
      %v1381 = vpop.permute.xlu0 %1380
      %1382 = vrot.lane.b32.xlu0 %v1121, 8
      %v1383 = vpop.permute.xlu0 %1382
      %1384 = vrot.lane.b32.xlu0 %v1122, 8
      %v1385 = vpop.permute.xlu0 %1384
      %1386 = vrot.lane.b32.xlu0 %v1123, 8
      %v1387 = vpop.permute.xlu0 %1386
      %1388 = vrot.lane.b32.xlu0 %v1124, 8
      %v1389 = vpop.permute.xlu0 %1388
      %1390 = vrot.lane.b32.xlu0 %v1125, 8
      %v1391 = vpop.permute.xlu0 %1390
      %1392 = vrot.lane.b32.xlu0 %v1126, 8
      %v1393 = vpop.permute.xlu0 %1392
      %1394 = vrot.lane.b32.xlu0 %v1127, 8
      %v1395 = vpop.permute.xlu0 %1394
      %1396 = vrot.lane.b32.xlu0 %v1128, 8
      %v1397 = vpop.permute.xlu0 %1396
      %1398 = vrot.lane.b32.xlu0 %v1129, 8
      %v1399 = vpop.permute.xlu0 %1398
      %1400 = vrot.lane.b32.xlu0 %v1130, 8
      %v1401 = vpop.permute.xlu0 %1400
      %1402 = vrot.lane.b32.xlu0 %v1131, 8
      %v1403 = vpop.permute.xlu0 %1402
      %1404 = vrot.lane.b32.xlu0 %v1132, 8
      %v1405 = vpop.permute.xlu0 %1404
      %1406 = vrot.lane.b32.xlu0 %v1133, 8
      %v1407 = vpop.permute.xlu0 %1406
      %1408 = vrot.lane.b32.xlu0 %v1134, 8
      %v1409 = vpop.permute.xlu0 %1408
      %1410 = vrot.lane.b32.xlu0 %v1135, 8
      %v1411 = vpop.permute.xlu0 %1410
      %1412 = vrot.lane.b32.xlu0 %v1136, 8
      %v1413 = vpop.permute.xlu0 %1412
      %1414 = vrot.lane.b32.xlu0 %v1137, 8
      %v1415 = vpop.permute.xlu0 %1414
      %1416 = vrot.lane.b32.xlu0 %v1138, 8
      %v1417 = vpop.permute.xlu0 %1416
      %1418 = vrot.lane.b32.xlu0 %v1139, 8
      %v1419 = vpop.permute.xlu0 %1418
      %1420 = vrot.lane.b32.xlu0 %v1140, 8
      %v1421 = vpop.permute.xlu0 %1420
      %1422 = vrot.lane.b32.xlu0 %v1141, 8
      %v1423 = vpop.permute.xlu0 %1422
      %1424 = vrot.lane.b32.xlu0 %v1142, 8
      %v1425 = vpop.permute.xlu0 %1424
      %1426 = vrot.lane.b32.xlu0 %v1143, 8
      %v1427 = vpop.permute.xlu0 %1426
      %1428 = vrot.lane.b32.xlu0 %v1144, 8
      %v1429 = vpop.permute.xlu0 %1428
      %1430 = vrot.lane.b32.xlu0 %v1145, 8
      %v1431 = vpop.permute.xlu0 %1430
      %1432 = vrot.lane.b32.xlu0 %v1146, 8
      %v1433 = vpop.permute.xlu0 %1432
      %1434 = vrot.lane.b32.xlu0 %v1147, 8
      %v1435 = vpop.permute.xlu0 %1434
      %1500 = vrot.lane.b32.xlu0 %v1308, 16
      %v1501 = vpop.permute.xlu0 %1500
      %1502 = vrot.lane.b32.xlu0 %v1309, 16
      %v1503 = vpop.permute.xlu0 %1502
      %1504 = vrot.lane.b32.xlu0 %v1310, 16
      %v1505 = vpop.permute.xlu0 %1504
      %1506 = vrot.lane.b32.xlu0 %v1311, 16
      %v1507 = vpop.permute.xlu0 %1506
      %1508 = vrot.lane.b32.xlu0 %v1312, 16
      %v1509 = vpop.permute.xlu0 %1508
      %1510 = vrot.lane.b32.xlu0 %v1313, 16
      %v1511 = vpop.permute.xlu0 %1510
      %1512 = vrot.lane.b32.xlu0 %v1314, 16
      %v1513 = vpop.permute.xlu0 %1512
      %1514 = vrot.lane.b32.xlu0 %v1315, 16
      %v1515 = vpop.permute.xlu0 %1514
      %1516 = vrot.lane.b32.xlu0 %v1316, 16
      %v1517 = vpop.permute.xlu0 %1516
      %1518 = vrot.lane.b32.xlu0 %v1317, 16
      %v1519 = vpop.permute.xlu0 %1518
      %1520 = vrot.lane.b32.xlu0 %v1318, 16
      %v1521 = vpop.permute.xlu0 %1520
      %1522 = vrot.lane.b32.xlu0 %v1319, 16
      %v1523 = vpop.permute.xlu0 %1522
      %1524 = vrot.lane.b32.xlu0 %v1320, 16
      %v1525 = vpop.permute.xlu0 %1524
      %1526 = vrot.lane.b32.xlu0 %v1321, 16
      %v1527 = vpop.permute.xlu0 %1526
      %1528 = vrot.lane.b32.xlu0 %v1322, 16
      %v1529 = vpop.permute.xlu0 %1528
      %1530 = vrot.lane.b32.xlu0 %v1323, 16
      %v1531 = vpop.permute.xlu0 %1530
      %1532 = vrot.lane.b32.xlu0 %v1324, 16
      %v1533 = vpop.permute.xlu0 %1532
      %1534 = vrot.lane.b32.xlu0 %v1325, 16
      %v1535 = vpop.permute.xlu0 %1534
      %1536 = vrot.lane.b32.xlu0 %v1326, 16
      %v1537 = vpop.permute.xlu0 %1536
      %1538 = vrot.lane.b32.xlu0 %v1327, 16
      %v1539 = vpop.permute.xlu0 %1538
      %1540 = vrot.lane.b32.xlu0 %v1328, 16
      %v1541 = vpop.permute.xlu0 %1540
      %1542 = vrot.lane.b32.xlu0 %v1329, 16
      %v1543 = vpop.permute.xlu0 %1542
      %1544 = vrot.lane.b32.xlu0 %v1330, 16
      %v1545 = vpop.permute.xlu0 %1544
      %1546 = vrot.lane.b32.xlu0 %v1331, 16
      %v1547 = vpop.permute.xlu0 %1546
      %1548 = vrot.lane.b32.xlu0 %v1332, 16
      %v1549 = vpop.permute.xlu0 %1548
      %1550 = vrot.lane.b32.xlu0 %v1333, 16
      %v1551 = vpop.permute.xlu0 %1550
      %1552 = vrot.lane.b32.xlu0 %v1334, 16
      %v1553 = vpop.permute.xlu0 %1552
      %1554 = vrot.lane.b32.xlu0 %v1335, 16
      %v1555 = vpop.permute.xlu0 %1554
      %1556 = vrot.lane.b32.xlu0 %v1336, 16
      %v1557 = vpop.permute.xlu0 %1556
      %1558 = vrot.lane.b32.xlu0 %v1337, 16
      %v1559 = vpop.permute.xlu0 %1558
      %1560 = vrot.lane.b32.xlu0 %v1338, 16
      %v1561 = vpop.permute.xlu0 %1560
      %1562 = vrot.lane.b32.xlu0 %v1339, 16
      %v1563 = vpop.permute.xlu0 %1562
      %vm1596 = vcmask 64512
      %v1597 = vsel %vm1596, %v1212, %v1373
      %v1598 = vsel %vm1596, %v1213, %v1375
      %v1599 = vsel %vm1596, %v1214, %v1377
      %v1600 = vsel %vm1596, %v1215, %v1379
      %v1601 = vsel %vm1596, %v1216, %v1381
      %v1602 = vsel %vm1596, %v1217, %v1383
      %v1603 = vsel %vm1596, %v1218, %v1385
      %v1604 = vsel %vm1596, %v1219, %v1387
      %v1605 = vsel %vm1596, %v1220, %v1389
      %v1606 = vsel %vm1596, %v1221, %v1391
      %v1607 = vsel %vm1596, %v1222, %v1393
      %v1608 = vsel %vm1596, %v1223, %v1395
      %v1609 = vsel %vm1596, %v1224, %v1397
      %v1610 = vsel %vm1596, %v1225, %v1399
      %v1611 = vsel %vm1596, %v1226, %v1401
      %v1612 = vsel %vm1596, %v1227, %v1403
      %v1613 = vsel %vm1596, %v1228, %v1405
      %v1614 = vsel %vm1596, %v1229, %v1407
      %v1615 = vsel %vm1596, %v1230, %v1409
      %v1616 = vsel %vm1596, %v1231, %v1411
      %v1617 = vsel %vm1596, %v1232, %v1413
      %v1618 = vsel %vm1596, %v1233, %v1415
      %v1619 = vsel %vm1596, %v1234, %v1417
      %v1620 = vsel %vm1596, %v1235, %v1419
      %v1621 = vsel %vm1596, %v1236, %v1421
      %v1622 = vsel %vm1596, %v1237, %v1423
      %v1623 = vsel %vm1596, %v1238, %v1425
      %v1624 = vsel %vm1596, %v1239, %v1427
      %v1625 = vsel %vm1596, %v1240, %v1429
      %v1626 = vsel %vm1596, %v1241, %v1431
      %v1627 = vsel %vm1596, %v1242, %v1433
      %v1628 = vsel %vm1596, %v1243, %v1435
      %vm1629 = vcmask 130048
      %v1630 = vsel %vm1629, %v1597, %v1501
      %v1631 = vsel %vm1629, %v1598, %v1503
      %v1632 = vsel %vm1629, %v1599, %v1505
      %v1633 = vsel %vm1629, %v1600, %v1507
      %v1634 = vsel %vm1629, %v1601, %v1509
      %v1635 = vsel %vm1629, %v1602, %v1511
      %v1636 = vsel %vm1629, %v1603, %v1513
      %v1637 = vsel %vm1629, %v1604, %v1515
      %v1638 = vsel %vm1629, %v1605, %v1517
      %v1639 = vsel %vm1629, %v1606, %v1519
      %v1640 = vsel %vm1629, %v1607, %v1521
      %v1641 = vsel %vm1629, %v1608, %v1523
      %v1642 = vsel %vm1629, %v1609, %v1525
      %v1643 = vsel %vm1629, %v1610, %v1527
      %v1644 = vsel %vm1629, %v1611, %v1529
      %v1645 = vsel %vm1629, %v1612, %v1531
      %v1646 = vsel %vm1629, %v1613, %v1533
      %v1647 = vsel %vm1629, %v1614, %v1535
      %v1648 = vsel %vm1629, %v1615, %v1537
      %v1649 = vsel %vm1629, %v1616, %v1539
      %v1650 = vsel %vm1629, %v1617, %v1541
      %v1651 = vsel %vm1629, %v1618, %v1543
      %v1652 = vsel %vm1629, %v1619, %v1545
      %v1653 = vsel %vm1629, %v1620, %v1547
      %v1654 = vsel %vm1629, %v1621, %v1549
      %v1655 = vsel %vm1629, %v1622, %v1551
      %v1656 = vsel %vm1629, %v1623, %v1553
      %v1657 = vsel %vm1629, %v1624, %v1555
      %v1658 = vsel %vm1629, %v1625, %v1557
      %v1659 = vsel %vm1629, %v1626, %v1559
      %v1660 = vsel %vm1629, %v1627, %v1561
      %v1661 = vsel %vm1629, %v1628, %v1563
      %v1662 = vrot.slane %v1630, 7
      %v1663 = vrot.slane %v1631, 7
      %v1664 = vrot.slane %v1632, 7
      %v1665 = vrot.slane %v1633, 7
      %v1666 = vrot.slane %v1634, 7
      %v1667 = vrot.slane %v1635, 7
      %v1668 = vrot.slane %v1636, 7
      %v1669 = vrot.slane %v1637, 7
      %v1670 = vrot.slane %v1638, 7
      %v1671 = vrot.slane %v1639, 7
      %v1672 = vrot.slane %v1640, 7
      %v1673 = vrot.slane %v1641, 7
      %v1674 = vrot.slane %v1642, 7
      %v1675 = vrot.slane %v1643, 7
      %v1676 = vrot.slane %v1644, 7
      %v1677 = vrot.slane %v1645, 7
      %v1678 = vrot.slane %v1646, 7
      %v1679 = vrot.slane %v1647, 7
      %v1680 = vrot.slane %v1648, 7
      %v1681 = vrot.slane %v1649, 7
      %v1682 = vrot.slane %v1650, 7
      %v1683 = vrot.slane %v1651, 7
      %v1684 = vrot.slane %v1652, 7
      %v1685 = vrot.slane %v1653, 7
      %v1686 = vrot.slane %v1654, 7
      %v1687 = vrot.slane %v1655, 7
      %v1688 = vrot.slane %v1656, 7
      %v1689 = vrot.slane %v1657, 7
      %v1690 = vrot.slane %v1658, 7
      %v1691 = vrot.slane %v1659, 7
      %v1692 = vrot.slane %v1660, 7
      %v1693 = vrot.slane %v1661, 7
      %vm1694 = vcmp.lt.s32.totalorder %v308, 1
      %v1695 = vsel %vm1694, %v1692, %v1693
      %v1696 = vsel %vm1694, %v1691, %v1692
      %v1697 = vsel %vm1694, %v1690, %v1691
      %v1698 = vsel %vm1694, %v1689, %v1690
      %v1699 = vsel %vm1694, %v1688, %v1689
      %v1700 = vsel %vm1694, %v1687, %v1688
      %v1701 = vsel %vm1694, %v1686, %v1687
      %v1702 = vsel %vm1694, %v1685, %v1686
      %v1703 = vsel %vm1694, %v1684, %v1685
      %v1704 = vsel %vm1694, %v1683, %v1684
      %v1705 = vsel %vm1694, %v1682, %v1683
      %v1706 = vsel %vm1694, %v1681, %v1682
      %v1707 = vsel %vm1694, %v1680, %v1681
      %v1708 = vsel %vm1694, %v1679, %v1680
      %v1709 = vsel %vm1694, %v1678, %v1679
      %v1710 = vsel %vm1694, %v1677, %v1678
      %v1711 = vsel %vm1694, %v1676, %v1677
      %v1712 = vsel %vm1694, %v1675, %v1676
      %v1713 = vsel %vm1694, %v1674, %v1675
      %v1714 = vsel %vm1694, %v1673, %v1674
      %v1715 = vsel %vm1694, %v1672, %v1673
      %v1716 = vsel %vm1694, %v1671, %v1672
      %v1717 = vsel %vm1694, %v1670, %v1671
      %v1718 = vsel %vm1694, %v1669, %v1670
      %v1719 = vsel %vm1694, %v1668, %v1669
      %v1720 = vsel %vm1694, %v1667, %v1668
      %v1721 = vsel %vm1694, %v1666, %v1667
      %v1722 = vsel %vm1694, %v1665, %v1666
      %v1723 = vsel %vm1694, %v1664, %v1665
      %v1724 = vsel %vm1694, %v1663, %v1664
      %v1725 = vsel %vm1694, %v1662, %v1663
      %v1726 = vsel %vm1694, %v1693, %v1662
      %v1727 = vrot.slane %v1630, 1
      %v1728 = vrot.slane %v1631, 1
      %v1729 = vrot.slane %v1632, 1
      %v1730 = vrot.slane %v1633, 1
      %v1731 = vrot.slane %v1634, 1
      %v1732 = vrot.slane %v1635, 1
      %v1733 = vrot.slane %v1636, 1
      %v1734 = vrot.slane %v1637, 1
      %v1735 = vrot.slane %v1638, 1
      %v1736 = vrot.slane %v1639, 1
      %v1737 = vrot.slane %v1640, 1
      %v1738 = vrot.slane %v1641, 1
      %v1739 = vrot.slane %v1642, 1
      %v1740 = vrot.slane %v1643, 1
      %v1741 = vrot.slane %v1644, 1
      %v1742 = vrot.slane %v1645, 1
      %v1743 = vrot.slane %v1646, 1
      %v1744 = vrot.slane %v1647, 1
      %v1745 = vrot.slane %v1648, 1
      %v1746 = vrot.slane %v1649, 1
      %v1747 = vrot.slane %v1650, 1
      %v1748 = vrot.slane %v1651, 1
      %v1749 = vrot.slane %v1652, 1
      %v1750 = vrot.slane %v1653, 1
      %v1751 = vrot.slane %v1654, 1
      %v1752 = vrot.slane %v1655, 1
      %v1753 = vrot.slane %v1656, 1
      %v1754 = vrot.slane %v1657, 1
      %v1755 = vrot.slane %v1658, 1
      %v1756 = vrot.slane %v1659, 1
      %v1757 = vrot.slane %v1660, 1
      %v1758 = vrot.slane %v1661, 1
      %vm1759 = vcmp.lt.s32.totalorder %v308, 7
      %v1760 = vsel %vm1759, %v1757, %v1758
      %v1761 = vsel %vm1759, %v1756, %v1757
      %v1762 = vsel %vm1759, %v1755, %v1756
      %v1763 = vsel %vm1759, %v1754, %v1755
      %v1764 = vsel %vm1759, %v1753, %v1754
      %v1765 = vsel %vm1759, %v1752, %v1753
      %v1766 = vsel %vm1759, %v1751, %v1752
      %v1767 = vsel %vm1759, %v1750, %v1751
      %v1768 = vsel %vm1759, %v1749, %v1750
      %v1769 = vsel %vm1759, %v1748, %v1749
      %v1770 = vsel %vm1759, %v1747, %v1748
      %v1771 = vsel %vm1759, %v1746, %v1747
      %v1772 = vsel %vm1759, %v1745, %v1746
      %v1773 = vsel %vm1759, %v1744, %v1745
      %v1774 = vsel %vm1759, %v1743, %v1744
      %v1775 = vsel %vm1759, %v1742, %v1743
      %v1776 = vsel %vm1759, %v1741, %v1742
      %v1777 = vsel %vm1759, %v1740, %v1741
      %v1778 = vsel %vm1759, %v1739, %v1740
      %v1779 = vsel %vm1759, %v1738, %v1739
      %v1780 = vsel %vm1759, %v1737, %v1738
      %v1781 = vsel %vm1759, %v1736, %v1737
      %v1782 = vsel %vm1759, %v1735, %v1736
      %v1783 = vsel %vm1759, %v1734, %v1735
      %v1784 = vsel %vm1759, %v1733, %v1734
      %v1785 = vsel %vm1759, %v1732, %v1733
      %v1786 = vsel %vm1759, %v1731, %v1732
      %v1787 = vsel %vm1759, %v1730, %v1731
      %v1788 = vsel %vm1759, %v1729, %v1730
      %v1789 = vsel %vm1759, %v1728, %v1729
      %v1790 = vsel %vm1759, %v1727, %v1728
      %v1791 = vsel %vm1759, %v1758, %v1727
      %v1792 = vpack.c.bf16 %v1631, %v1630
      %v1793 = vpack.c.bf16 %v1633, %v1632
      %v1794 = vpack.c.bf16 %v1635, %v1634
      %v1795 = vpack.c.bf16 %v1637, %v1636
      %v1796 = vpack.c.bf16 %v1639, %v1638
      %v1797 = vpack.c.bf16 %v1641, %v1640
      %v1798 = vpack.c.bf16 %v1643, %v1642
      %v1799 = vpack.c.bf16 %v1645, %v1644
      %v1800 = vpack.c.bf16 %v1647, %v1646
      %v1801 = vpack.c.bf16 %v1649, %v1648
      %v1802 = vpack.c.bf16 %v1651, %v1650
      %v1803 = vpack.c.bf16 %v1653, %v1652
      %v1804 = vpack.c.bf16 %v1655, %v1654
      %v1805 = vpack.c.bf16 %v1657, %v1656
      %v1806 = vpack.c.bf16 %v1659, %v1658
      %v1807 = vpack.c.bf16 %v1661, %v1660
      %s1808 = scalar_lea.vmem %s3, 12
      %v1809 = vld [vmem:[%s1808] sm:$0xf]
      %v1810 = vld [vmem:[%s1808 + $0x4] sm:$0xf]
      %v1811 = vld [vmem:[%s1808 + $0x8] sm:$0xf]
      %v1812 = vpack.c.bf16 %v1725, %v1726
      %v1813 = vpack.c.bf16 %v1723, %v1724
      %v1814 = vpack.c.bf16 %v1721, %v1722
      %v1815 = vpack.c.bf16 %v1719, %v1720
      %v1816 = vpack.c.bf16 %v1717, %v1718
      %v1817 = vpack.c.bf16 %v1715, %v1716
      %v1818 = vpack.c.bf16 %v1713, %v1714
      %v1819 = vpack.c.bf16 %v1711, %v1712
      %v1820 = vpack.c.bf16 %v1709, %v1710
      %v1821 = vpack.c.bf16 %v1707, %v1708
      %v1822 = vpack.c.bf16 %v1705, %v1706
      %v1823 = vpack.c.bf16 %v1703, %v1704
      %v1824 = vpack.c.bf16 %v1701, %v1702
      %v1825 = vpack.c.bf16 %v1699, %v1700
      %v1826 = vpack.c.bf16 %v1697, %v1698
      %v1827 = vpack.c.bf16 %v1695, %v1696
      %v1828 = vld [vmem:[%s3] sm:$0xf]
      %v1829 = vld [vmem:[%s3 + $0x4] sm:$0xf]
      %v1830 = vld [vmem:[%s3 + $0x8] sm:$0xf]
      %v1834 = vunpack.c.l.b16 %v1828
      %v1835 = vunpack.c.l.b16 %v1829
      %v1836 = vunpack.c.l.b16 %v1830
      %v1837 = vpack.c.b16 %v1835, %v1834
      %v1838 = vpack.c.b16 %v1836, %v1836
      %vm1840 = vcmask 195584
      %v1842 = vsel %vm1840, %v1812, 0
      %v1845 = vsel %vm1840, %v1813, 0
      %v1848 = vsel %vm1840, %v1814, 0
      %v1851 = vsel %vm1840, %v1815, 0
      %v1854 = vsel %vm1840, %v1816, 0
      %v1857 = vsel %vm1840, %v1817, 0
      %v1860 = vsel %vm1840, %v1818, 0
      %v1863 = vsel %vm1840, %v1819, 0
      %v1866 = vsel %vm1840, %v1820, 0
      %v1869 = vsel %vm1840, %v1821, 0
      %v1872 = vsel %vm1840, %v1822, 0
      %v1875 = vsel %vm1840, %v1823, 0
      %v1878 = vsel %vm1840, %v1824, 0
      %v1881 = vsel %vm1840, %v1825, 0
      %v1884 = vsel %vm1840, %v1826, 0
      %v1887 = vsel %vm1840, %v1827, 0
      %vm1889 = vcmask 1043456
      %v1891 = vsel %vm1889, %v1838, 0
      %1893 = vmatpush.bf16.msra.mxu0 0
      %1894 = vmatpush.bf16.msra.mxu0 0
      %1895 = vmatpush.bf16.msra.mxu0 0
      %1896 = vmatpush.bf16.msra.mxu0 0
      %1897 = vmatpush.bf16.msra.mxu0 0
      %1898 = vmatpush.bf16.msra.mxu0 0
      %1899 = vmatpush.bf16.msra.mxu0 %v1891
      %1900 = vmatpush.bf16.msra.mxu0 %v1837
      %1901 = vmatmul.bf16.gmra.mxu0 %v1842
      %v1902 = vpop.f32.mrf.mxu0
      %v1903 = vadd.f32 0.0, %v1902
      %v1904 = vpop.f32.mrf.mxu0
      %v1905 = vadd.f32 0.0, %v1904
      %1906 = vmatmul.bf16.gmra.mxu0 %v1845
      %v1907 = vpop.f32.mrf.mxu0
      %v1908 = vadd.f32 0.0, %v1907
      %v1909 = vpop.f32.mrf.mxu0
      %v1910 = vadd.f32 0.0, %v1909
      %1911 = vmatmul.bf16.gmra.mxu0 %v1848
      %v1912 = vpop.f32.mrf.mxu0
      %v1913 = vadd.f32 0.0, %v1912
      %v1914 = vpop.f32.mrf.mxu0
      %v1915 = vadd.f32 0.0, %v1914
      %1916 = vmatmul.bf16.gmra.mxu0 %v1851
      %v1917 = vpop.f32.mrf.mxu0
      %v1918 = vadd.f32 0.0, %v1917
      %v1919 = vpop.f32.mrf.mxu0
      %v1920 = vadd.f32 0.0, %v1919
      %1921 = vmatmul.bf16.gmra.mxu0 %v1854
      %v1922 = vpop.f32.mrf.mxu0
      %v1923 = vadd.f32 0.0, %v1922
      %v1924 = vpop.f32.mrf.mxu0
      %v1925 = vadd.f32 0.0, %v1924
      %1926 = vmatmul.bf16.gmra.mxu0 %v1857
      %v1927 = vpop.f32.mrf.mxu0
      %v1928 = vadd.f32 0.0, %v1927
      %v1929 = vpop.f32.mrf.mxu0
      %v1930 = vadd.f32 0.0, %v1929
      %1931 = vmatmul.bf16.gmra.mxu0 %v1860
      %v1932 = vpop.f32.mrf.mxu0
      %v1933 = vadd.f32 0.0, %v1932
      %v1934 = vpop.f32.mrf.mxu0
      %v1935 = vadd.f32 0.0, %v1934
      %1936 = vmatmul.bf16.gmra.mxu0 %v1863
      %v1937 = vpop.f32.mrf.mxu0
      %v1938 = vadd.f32 0.0, %v1937
      %v1939 = vpop.f32.mrf.mxu0
      %v1940 = vadd.f32 0.0, %v1939
      %1941 = vmatmul.bf16.gmra.mxu0 %v1866
      %v1942 = vpop.f32.mrf.mxu0
      %v1943 = vadd.f32 0.0, %v1942
      %v1944 = vpop.f32.mrf.mxu0
      %v1945 = vadd.f32 0.0, %v1944
      %1946 = vmatmul.bf16.gmra.mxu0 %v1869
      %v1947 = vpop.f32.mrf.mxu0
      %v1948 = vadd.f32 0.0, %v1947
      %v1949 = vpop.f32.mrf.mxu0
      %v1950 = vadd.f32 0.0, %v1949
      %1951 = vmatmul.bf16.gmra.mxu0 %v1872
      %v1952 = vpop.f32.mrf.mxu0
      %v1953 = vadd.f32 0.0, %v1952
      %v1954 = vpop.f32.mrf.mxu0
      %v1955 = vadd.f32 0.0, %v1954
      %1956 = vmatmul.bf16.gmra.mxu0 %v1875
      %v1957 = vpop.f32.mrf.mxu0
      %v1958 = vadd.f32 0.0, %v1957
      %v1959 = vpop.f32.mrf.mxu0
      %v1960 = vadd.f32 0.0, %v1959
      %1961 = vmatmul.bf16.gmra.mxu0 %v1878
      %v1962 = vpop.f32.mrf.mxu0
      %v1963 = vadd.f32 0.0, %v1962
      %v1964 = vpop.f32.mrf.mxu0
      %v1965 = vadd.f32 0.0, %v1964
      %1966 = vmatmul.bf16.gmra.mxu0 %v1881
      %v1967 = vpop.f32.mrf.mxu0
      %v1968 = vadd.f32 0.0, %v1967
      %v1969 = vpop.f32.mrf.mxu0
      %v1970 = vadd.f32 0.0, %v1969
      %1971 = vmatmul.bf16.gmra.mxu0 %v1884
      %v1972 = vpop.f32.mrf.mxu0
      %v1973 = vadd.f32 0.0, %v1972
      %v1974 = vpop.f32.mrf.mxu0
      %v1975 = vadd.f32 0.0, %v1974
      %1976 = vmatmul.bf16.gmra.mxu0 %v1887
      %v1977 = vpop.f32.mrf.mxu0
      %v1978 = vadd.f32 0.0, %v1977
      %v1979 = vpop.f32.mrf.mxu0
      %v1980 = vadd.f32 0.0, %v1979
      %1981 = vdwg.mxu0
      %v1982 = vmul.f32 %v788, %v1903
      %v1983 = vmul.f32 %v789, %v1905
      %v1984 = vmul.f32 %v790, %v1908
      %v1985 = vmul.f32 %v791, %v1910
      %v1986 = vmul.f32 %v792, %v1913
      %v1987 = vmul.f32 %v793, %v1915
      %v1988 = vmul.f32 %v794, %v1918
      %v1989 = vmul.f32 %v795, %v1920
      %v1990 = vmul.f32 %v796, %v1923
      %v1991 = vmul.f32 %v797, %v1925
      %v1992 = vmul.f32 %v798, %v1928
      %v1993 = vmul.f32 %v799, %v1930
      %v1994 = vmul.f32 %v800, %v1933
      %v1995 = vmul.f32 %v801, %v1935
      %v1996 = vmul.f32 %v802, %v1938
      %v1997 = vmul.f32 %v803, %v1940
      %v1998 = vmul.f32 %v804, %v1943
      %v1999 = vmul.f32 %v805, %v1945
      %v2000 = vmul.f32 %v806, %v1948
      %v2001 = vmul.f32 %v807, %v1950
      %v2002 = vmul.f32 %v808, %v1953
      %v2003 = vmul.f32 %v809, %v1955
      %v2004 = vmul.f32 %v810, %v1958
      %v2005 = vmul.f32 %v811, %v1960
      %v2006 = vmul.f32 %v812, %v1963
      %v2007 = vmul.f32 %v813, %v1965
      %v2008 = vmul.f32 %v814, %v1968
      %v2009 = vmul.f32 %v815, %v1970
      %v2010 = vmul.f32 %v816, %v1973
      %v2011 = vmul.f32 %v817, %v1975
      %v2012 = vmul.f32 %v818, %v1978
      %v2013 = vmul.f32 %v819, %v1980
      %v2017 = vunpack.c.l.b16 %v1809
      %v2018 = vunpack.c.l.b16 %v1810
      %v2019 = vunpack.c.l.b16 %v1811
      %v2020 = vpack.c.b16 %v2018, %v2017
      %v2021 = vpack.c.b16 %v2019, %v2019
      %v2024 = vsel %vm1840, %v1792, 0
      %v2027 = vsel %vm1840, %v1793, 0
      %v2030 = vsel %vm1840, %v1794, 0
      %v2033 = vsel %vm1840, %v1795, 0
      %v2036 = vsel %vm1840, %v1796, 0
      %v2039 = vsel %vm1840, %v1797, 0
      %v2042 = vsel %vm1840, %v1798, 0
      %v2045 = vsel %vm1840, %v1799, 0
      %v2048 = vsel %vm1840, %v1800, 0
      %v2051 = vsel %vm1840, %v1801, 0
      %v2054 = vsel %vm1840, %v1802, 0
      %v2057 = vsel %vm1840, %v1803, 0
      %v2060 = vsel %vm1840, %v1804, 0
      %v2063 = vsel %vm1840, %v1805, 0
      %v2066 = vsel %vm1840, %v1806, 0
      %v2069 = vsel %vm1840, %v1807, 0
      %v2072 = vsel %vm1889, %v2021, 0
      %2074 = vmatpush.bf16.msra.mxu0 0
      %2075 = vmatpush.bf16.msra.mxu0 0
      %2076 = vmatpush.bf16.msra.mxu0 0
      %2077 = vmatpush.bf16.msra.mxu0 0
      %2078 = vmatpush.bf16.msra.mxu0 0
      %2079 = vmatpush.bf16.msra.mxu0 0
      %2080 = vmatpush.bf16.msra.mxu0 %v2072
      %2081 = vmatpush.bf16.msra.mxu0 %v2020
      %2082 = vmatmul.bf16.gmra.mxu0 %v2024
      %v2083 = vpop.f32.mrf.mxu0
      %v2084 = vadd.f32 %v1982, %v2083
      %v2085 = vpop.f32.mrf.mxu0
      %v2086 = vadd.f32 %v1983, %v2085
      %2087 = vmatmul.bf16.gmra.mxu0 %v2027
      %v2088 = vpop.f32.mrf.mxu0
      %v2089 = vadd.f32 %v1984, %v2088
      %v2090 = vpop.f32.mrf.mxu0
      %v2091 = vadd.f32 %v1985, %v2090
      %2092 = vmatmul.bf16.gmra.mxu0 %v2030
      %v2093 = vpop.f32.mrf.mxu0
      %v2094 = vadd.f32 %v1986, %v2093
      %v2095 = vpop.f32.mrf.mxu0
      %v2096 = vadd.f32 %v1987, %v2095
      %2097 = vmatmul.bf16.gmra.mxu0 %v2033
      %v2098 = vpop.f32.mrf.mxu0
      %v2099 = vadd.f32 %v1988, %v2098
      %v2100 = vpop.f32.mrf.mxu0
      %v2101 = vadd.f32 %v1989, %v2100
      %2102 = vmatmul.bf16.gmra.mxu0 %v2036
      %v2103 = vpop.f32.mrf.mxu0
      %v2104 = vadd.f32 %v1990, %v2103
      %v2105 = vpop.f32.mrf.mxu0
      %v2106 = vadd.f32 %v1991, %v2105
      %2107 = vmatmul.bf16.gmra.mxu0 %v2039
      %v2108 = vpop.f32.mrf.mxu0
      %v2109 = vadd.f32 %v1992, %v2108
      %v2110 = vpop.f32.mrf.mxu0
      %v2111 = vadd.f32 %v1993, %v2110
      %2112 = vmatmul.bf16.gmra.mxu0 %v2042
      %v2113 = vpop.f32.mrf.mxu0
      %v2114 = vadd.f32 %v1994, %v2113
      %v2115 = vpop.f32.mrf.mxu0
      %v2116 = vadd.f32 %v1995, %v2115
      %2117 = vmatmul.bf16.gmra.mxu0 %v2045
      %v2118 = vpop.f32.mrf.mxu0
      %v2119 = vadd.f32 %v1996, %v2118
      %v2120 = vpop.f32.mrf.mxu0
      %v2121 = vadd.f32 %v1997, %v2120
      %2122 = vmatmul.bf16.gmra.mxu0 %v2048
      %v2123 = vpop.f32.mrf.mxu0
      %v2124 = vadd.f32 %v1998, %v2123
      %v2125 = vpop.f32.mrf.mxu0
      %v2126 = vadd.f32 %v1999, %v2125
      %2127 = vmatmul.bf16.gmra.mxu0 %v2051
      %v2128 = vpop.f32.mrf.mxu0
      %v2129 = vadd.f32 %v2000, %v2128
      %v2130 = vpop.f32.mrf.mxu0
      %v2131 = vadd.f32 %v2001, %v2130
      %2132 = vmatmul.bf16.gmra.mxu0 %v2054
      %v2133 = vpop.f32.mrf.mxu0
      %v2134 = vadd.f32 %v2002, %v2133
      %v2135 = vpop.f32.mrf.mxu0
      %v2136 = vadd.f32 %v2003, %v2135
      %2137 = vmatmul.bf16.gmra.mxu0 %v2057
      %v2138 = vpop.f32.mrf.mxu0
      %v2139 = vadd.f32 %v2004, %v2138
      %v2140 = vpop.f32.mrf.mxu0
      %v2141 = vadd.f32 %v2005, %v2140
      %2142 = vmatmul.bf16.gmra.mxu0 %v2060
      %v2143 = vpop.f32.mrf.mxu0
      %v2144 = vadd.f32 %v2006, %v2143
      %v2145 = vpop.f32.mrf.mxu0
      %v2146 = vadd.f32 %v2007, %v2145
      %2147 = vmatmul.bf16.gmra.mxu0 %v2063
      %v2148 = vpop.f32.mrf.mxu0
      %v2149 = vadd.f32 %v2008, %v2148
      %v2150 = vpop.f32.mrf.mxu0
      %v2151 = vadd.f32 %v2009, %v2150
      %2152 = vmatmul.bf16.gmra.mxu0 %v2066
      %v2153 = vpop.f32.mrf.mxu0
      %v2154 = vadd.f32 %v2010, %v2153
      %v2155 = vpop.f32.mrf.mxu0
      %v2156 = vadd.f32 %v2011, %v2155
      %2157 = vmatmul.bf16.gmra.mxu0 %v2069
      %v2158 = vpop.f32.mrf.mxu0
      %v2159 = vadd.f32 %v2012, %v2158
      %v2160 = vpop.f32.mrf.mxu0
      %v2161 = vadd.f32 %v2013, %v2160
      %2162 = vdwg.mxu0
      %v2163 = vpack.c.bf16 %v1789, %v1790
      %v2164 = vpack.c.bf16 %v1787, %v1788
      %v2165 = vpack.c.bf16 %v1785, %v1786
      %v2166 = vpack.c.bf16 %v1783, %v1784
      %v2167 = vpack.c.bf16 %v1781, %v1782
      %v2168 = vpack.c.bf16 %v1779, %v1780
      %v2169 = vpack.c.bf16 %v1777, %v1778
      %v2170 = vpack.c.bf16 %v1775, %v1776
      %v2171 = vpack.c.bf16 %v1773, %v1774
      %v2172 = vpack.c.bf16 %v1771, %v1772
      %v2173 = vpack.c.bf16 %v1769, %v1770
      %v2174 = vpack.c.bf16 %v1767, %v1768
      %v2175 = vpack.c.bf16 %v1765, %v1766
      %v2176 = vpack.c.bf16 %v1763, %v1764
      %v2177 = vpack.c.bf16 %v1761, %v1762
      %v2178 = vpack.c.bf16 %v1791, %v1760
      %s2179 = scalar_lea.vmem %s3, 24
      %v2180 = vld [vmem:[%s2179] sm:$0xf]
      %v2181 = vld [vmem:[%s2179 + $0x4] sm:$0xf]
      %v2182 = vld [vmem:[%s2179 + $0x8] sm:$0xf]
      %v2186 = vunpack.c.l.b16 %v2180
      %v2187 = vunpack.c.l.b16 %v2181
      %v2188 = vunpack.c.l.b16 %v2182
      %v2189 = vpack.c.b16 %v2187, %v2186
      %v2190 = vpack.c.b16 %v2188, %v2188
      %v2193 = vsel %vm1840, %v2163, 0
      %v2196 = vsel %vm1840, %v2164, 0
      %v2199 = vsel %vm1840, %v2165, 0
      %v2202 = vsel %vm1840, %v2166, 0
      %v2205 = vsel %vm1840, %v2167, 0
      %v2208 = vsel %vm1840, %v2168, 0
      %v2211 = vsel %vm1840, %v2169, 0
      %v2214 = vsel %vm1840, %v2170, 0
      %v2217 = vsel %vm1840, %v2171, 0
      %v2220 = vsel %vm1840, %v2172, 0
      %v2223 = vsel %vm1840, %v2173, 0
      %v2226 = vsel %vm1840, %v2174, 0
      %v2229 = vsel %vm1840, %v2175, 0
      %v2232 = vsel %vm1840, %v2176, 0
      %v2235 = vsel %vm1840, %v2177, 0
      %v2238 = vsel %vm1840, %v2178, 0
      %v2241 = vsel %vm1889, %v2190, 0
      %2243 = vmatpush.bf16.msra.mxu0 0
      %2244 = vmatpush.bf16.msra.mxu0 0
      %2245 = vmatpush.bf16.msra.mxu0 0
      %2246 = vmatpush.bf16.msra.mxu0 0
      %2247 = vmatpush.bf16.msra.mxu0 0
      %2248 = vmatpush.bf16.msra.mxu0 0
      %2249 = vmatpush.bf16.msra.mxu0 %v2241
      %2250 = vmatpush.bf16.msra.mxu0 %v2189
      %2251 = vmatmul.bf16.gmra.mxu0 %v2193
      %v2252 = vpop.f32.mrf.mxu0
      %v2253 = vadd.f32 0.0, %v2252
      %v2254 = vpop.f32.mrf.mxu0
      %v2255 = vadd.f32 0.0, %v2254
      %2256 = vmatmul.bf16.gmra.mxu0 %v2196
      %v2257 = vpop.f32.mrf.mxu0
      %v2258 = vadd.f32 0.0, %v2257
      %v2259 = vpop.f32.mrf.mxu0
      %v2260 = vadd.f32 0.0, %v2259
      %2261 = vmatmul.bf16.gmra.mxu0 %v2199
      %v2262 = vpop.f32.mrf.mxu0
      %v2263 = vadd.f32 0.0, %v2262
      %v2264 = vpop.f32.mrf.mxu0
      %v2265 = vadd.f32 0.0, %v2264
      %2266 = vmatmul.bf16.gmra.mxu0 %v2202
      %v2267 = vpop.f32.mrf.mxu0
      %v2268 = vadd.f32 0.0, %v2267
      %v2269 = vpop.f32.mrf.mxu0
      %v2270 = vadd.f32 0.0, %v2269
      %2271 = vmatmul.bf16.gmra.mxu0 %v2205
      %v2272 = vpop.f32.mrf.mxu0
      %v2273 = vadd.f32 0.0, %v2272
      %v2274 = vpop.f32.mrf.mxu0
      %v2275 = vadd.f32 0.0, %v2274
      %2276 = vmatmul.bf16.gmra.mxu0 %v2208
      %v2277 = vpop.f32.mrf.mxu0
      %v2278 = vadd.f32 0.0, %v2277
      %v2279 = vpop.f32.mrf.mxu0
      %v2280 = vadd.f32 0.0, %v2279
      %2281 = vmatmul.bf16.gmra.mxu0 %v2211
      %v2282 = vpop.f32.mrf.mxu0
      %v2283 = vadd.f32 0.0, %v2282
      %v2284 = vpop.f32.mrf.mxu0
      %v2285 = vadd.f32 0.0, %v2284
      %2286 = vmatmul.bf16.gmra.mxu0 %v2214
      %v2287 = vpop.f32.mrf.mxu0
      %v2288 = vadd.f32 0.0, %v2287
      %v2289 = vpop.f32.mrf.mxu0
      %v2290 = vadd.f32 0.0, %v2289
      %2291 = vmatmul.bf16.gmra.mxu0 %v2217
      %v2292 = vpop.f32.mrf.mxu0
      %v2293 = vadd.f32 0.0, %v2292
      %v2294 = vpop.f32.mrf.mxu0
      %v2295 = vadd.f32 0.0, %v2294
      %2296 = vmatmul.bf16.gmra.mxu0 %v2220
      %v2297 = vpop.f32.mrf.mxu0
      %v2298 = vadd.f32 0.0, %v2297
      %v2299 = vpop.f32.mrf.mxu0
      %v2300 = vadd.f32 0.0, %v2299
      %2301 = vmatmul.bf16.gmra.mxu0 %v2223
      %v2302 = vpop.f32.mrf.mxu0
      %v2303 = vadd.f32 0.0, %v2302
      %v2304 = vpop.f32.mrf.mxu0
      %v2305 = vadd.f32 0.0, %v2304
      %2306 = vmatmul.bf16.gmra.mxu0 %v2226
      %v2307 = vpop.f32.mrf.mxu0
      %v2308 = vadd.f32 0.0, %v2307
      %v2309 = vpop.f32.mrf.mxu0
      %v2310 = vadd.f32 0.0, %v2309
      %2311 = vmatmul.bf16.gmra.mxu0 %v2229
      %v2312 = vpop.f32.mrf.mxu0
      %v2313 = vadd.f32 0.0, %v2312
      %v2314 = vpop.f32.mrf.mxu0
      %v2315 = vadd.f32 0.0, %v2314
      %2316 = vmatmul.bf16.gmra.mxu0 %v2232
      %v2317 = vpop.f32.mrf.mxu0
      %v2318 = vadd.f32 0.0, %v2317
      %v2319 = vpop.f32.mrf.mxu0
      %v2320 = vadd.f32 0.0, %v2319
      %2321 = vmatmul.bf16.gmra.mxu0 %v2235
      %v2322 = vpop.f32.mrf.mxu0
      %v2323 = vadd.f32 0.0, %v2322
      %v2324 = vpop.f32.mrf.mxu0
      %v2325 = vadd.f32 0.0, %v2324
      %2326 = vmatmul.bf16.gmra.mxu0 %v2238
      %v2327 = vpop.f32.mrf.mxu0
      %v2328 = vadd.f32 0.0, %v2327
      %v2329 = vpop.f32.mrf.mxu0
      %v2330 = vadd.f32 0.0, %v2329
      %2331 = vdwg.mxu0
      %v2332 = vmul.f32 %v884, %v2253
      %v2333 = vmul.f32 %v885, %v2255
      %v2334 = vmul.f32 %v886, %v2258
      %v2335 = vmul.f32 %v887, %v2260
      %v2336 = vmul.f32 %v888, %v2263
      %v2337 = vmul.f32 %v889, %v2265
      %v2338 = vmul.f32 %v890, %v2268
      %v2339 = vmul.f32 %v891, %v2270
      %v2340 = vmul.f32 %v892, %v2273
      %v2341 = vmul.f32 %v893, %v2275
      %v2342 = vmul.f32 %v894, %v2278
      %v2343 = vmul.f32 %v895, %v2280
      %v2344 = vmul.f32 %v896, %v2283
      %v2345 = vmul.f32 %v897, %v2285
      %v2346 = vmul.f32 %v898, %v2288
      %v2347 = vmul.f32 %v899, %v2290
      %v2348 = vmul.f32 %v900, %v2293
      %v2349 = vmul.f32 %v901, %v2295
      %v2350 = vmul.f32 %v902, %v2298
      %v2351 = vmul.f32 %v903, %v2300
      %v2352 = vmul.f32 %v904, %v2303
      %v2353 = vmul.f32 %v905, %v2305
      %v2354 = vmul.f32 %v906, %v2308
      %v2355 = vmul.f32 %v907, %v2310
      %v2356 = vmul.f32 %v908, %v2313
      %v2357 = vmul.f32 %v909, %v2315
      %v2358 = vmul.f32 %v910, %v2318
      %v2359 = vmul.f32 %v911, %v2320
      %v2360 = vmul.f32 %v912, %v2323
      %v2361 = vmul.f32 %v913, %v2325
      %v2362 = vmul.f32 %v914, %v2328
      %v2363 = vmul.f32 %v915, %v2330
      %v2364 = vadd.f32 %v2084, %v2332
      %v2365 = vadd.f32 %v2086, %v2333
      %v2366 = vadd.f32 %v2089, %v2334
      %v2367 = vadd.f32 %v2091, %v2335
      %v2368 = vadd.f32 %v2094, %v2336
      %v2369 = vadd.f32 %v2096, %v2337
      %v2370 = vadd.f32 %v2099, %v2338
      %v2371 = vadd.f32 %v2101, %v2339
      %v2372 = vadd.f32 %v2104, %v2340
      %v2373 = vadd.f32 %v2106, %v2341
      %v2374 = vadd.f32 %v2109, %v2342
      %v2375 = vadd.f32 %v2111, %v2343
      %v2376 = vadd.f32 %v2114, %v2344
      %v2377 = vadd.f32 %v2116, %v2345
      %v2378 = vadd.f32 %v2119, %v2346
      %v2379 = vadd.f32 %v2121, %v2347
      %v2380 = vadd.f32 %v2124, %v2348
      %v2381 = vadd.f32 %v2126, %v2349
      %v2382 = vadd.f32 %v2129, %v2350
      %v2383 = vadd.f32 %v2131, %v2351
      %v2384 = vadd.f32 %v2134, %v2352
      %v2385 = vadd.f32 %v2136, %v2353
      %v2386 = vadd.f32 %v2139, %v2354
      %v2387 = vadd.f32 %v2141, %v2355
      %v2388 = vadd.f32 %v2144, %v2356
      %v2389 = vadd.f32 %v2146, %v2357
      %v2390 = vadd.f32 %v2149, %v2358
      %v2391 = vadd.f32 %v2151, %v2359
      %v2392 = vadd.f32 %v2154, %v2360
      %v2393 = vadd.f32 %v2156, %v2361
      %v2394 = vadd.f32 %v2159, %v2362
      %v2395 = vadd.f32 %v2161, %v2363
      %v2396 = vld [vmem:[%s4] sm:$0x1]
      %v2398 = vperm.slane %v2396, 0
      %v2400 = vadd.f32 %v2364, %v2398
      %v2401 = vadd.f32 %v2365, %v2398
      %v2402 = vadd.f32 %v2366, %v2398
      %v2403 = vadd.f32 %v2367, %v2398
      %v2404 = vadd.f32 %v2368, %v2398
      %v2405 = vadd.f32 %v2369, %v2398
      %v2406 = vadd.f32 %v2370, %v2398
      %v2407 = vadd.f32 %v2371, %v2398
      %v2408 = vadd.f32 %v2372, %v2398
      %v2409 = vadd.f32 %v2373, %v2398
      %v2410 = vadd.f32 %v2374, %v2398
      %v2411 = vadd.f32 %v2375, %v2398
      %v2412 = vadd.f32 %v2376, %v2398
      %v2413 = vadd.f32 %v2377, %v2398
      %v2414 = vadd.f32 %v2378, %v2398
      %v2415 = vadd.f32 %v2379, %v2398
      %v2416 = vadd.f32 %v2380, %v2398
      %v2417 = vadd.f32 %v2381, %v2398
      %v2418 = vadd.f32 %v2382, %v2398
      %v2419 = vadd.f32 %v2383, %v2398
      %v2420 = vadd.f32 %v2384, %v2398
      %v2421 = vadd.f32 %v2385, %v2398
      %v2422 = vadd.f32 %v2386, %v2398
      %v2423 = vadd.f32 %v2387, %v2398
      %v2424 = vadd.f32 %v2388, %v2398
      %v2425 = vadd.f32 %v2389, %v2398
      %v2426 = vadd.f32 %v2390, %v2398
      %v2427 = vadd.f32 %v2391, %v2398
      %v2428 = vadd.f32 %v2392, %v2398
      %v2429 = vadd.f32 %v2393, %v2398
      %v2430 = vadd.f32 %v2394, %v2398
      %v2431 = vadd.f32 %v2395, %v2398
      %v2432 = vmax.f32 %v2400, 0.0
      %v2433 = vmax.f32 %v2401, 0.0
      %v2434 = vmax.f32 %v2402, 0.0
      %v2435 = vmax.f32 %v2403, 0.0
      %v2436 = vmax.f32 %v2404, 0.0
      %v2437 = vmax.f32 %v2405, 0.0
      %v2438 = vmax.f32 %v2406, 0.0
      %v2439 = vmax.f32 %v2407, 0.0
      %v2440 = vmax.f32 %v2408, 0.0
      %v2441 = vmax.f32 %v2409, 0.0
      %v2442 = vmax.f32 %v2410, 0.0
      %v2443 = vmax.f32 %v2411, 0.0
      %v2444 = vmax.f32 %v2412, 0.0
      %v2445 = vmax.f32 %v2413, 0.0
      %v2446 = vmax.f32 %v2414, 0.0
      %v2447 = vmax.f32 %v2415, 0.0
      %v2448 = vmax.f32 %v2416, 0.0
      %v2449 = vmax.f32 %v2417, 0.0
      %v2450 = vmax.f32 %v2418, 0.0
      %v2451 = vmax.f32 %v2419, 0.0
      %v2452 = vmax.f32 %v2420, 0.0
      %v2453 = vmax.f32 %v2421, 0.0
      %v2454 = vmax.f32 %v2422, 0.0
      %v2455 = vmax.f32 %v2423, 0.0
      %v2456 = vmax.f32 %v2424, 0.0
      %v2457 = vmax.f32 %v2425, 0.0
      %v2458 = vmax.f32 %v2426, 0.0
      %v2459 = vmax.f32 %v2427, 0.0
      %v2460 = vmax.f32 %v2428, 0.0
      %v2461 = vmax.f32 %v2429, 0.0
      %v2462 = vmax.f32 %v2430, 0.0
      %v2463 = vmax.f32 %v2431, 0.0
      %v2464 = vsel %vm1180, %v2462, 0.0
      %v2465 = vsel %vm1181, %v2463, 0.0
      %v2466 = vsel %vm1182, %v2432, 0.0
      %v2467 = vsel %vm1183, %v2433, 0.0
      %v2468 = vsel %vm1184, %v2434, 0.0
      %v2469 = vsel %vm1185, %v2435, 0.0
      %v2470 = vsel %vm1186, %v2436, 0.0
      %v2471 = vsel %vm1187, %v2437, 0.0
      %v2472 = vsel %vm1188, %v2438, 0.0
      %v2473 = vsel %vm1189, %v2439, 0.0
      %v2474 = vsel %vm1190, %v2440, 0.0
      %v2475 = vsel %vm1191, %v2441, 0.0
      %v2476 = vsel %vm1192, %v2442, 0.0
      %v2477 = vsel %vm1193, %v2443, 0.0
      %v2478 = vsel %vm1194, %v2444, 0.0
      %v2479 = vsel %vm1195, %v2445, 0.0
      %v2480 = vsel %vm1196, %v2446, 0.0
      %v2481 = vsel %vm1197, %v2447, 0.0
      %v2482 = vsel %vm1198, %v2448, 0.0
      %v2483 = vsel %vm1199, %v2449, 0.0
      %v2484 = vsel %vm1200, %v2450, 0.0
      %v2485 = vsel %vm1201, %v2451, 0.0
      %v2486 = vsel %vm1202, %v2452, 0.0
      %v2487 = vsel %vm1203, %v2453, 0.0
      %v2488 = vsel %vm1204, %v2454, 0.0
      %v2489 = vsel %vm1205, %v2455, 0.0
      %v2490 = vsel %vm1206, %v2456, 0.0
      %v2491 = vsel %vm1207, %v2457, 0.0
      %v2492 = vsel %vm1208, %v2458, 0.0
      %v2493 = vsel %vm1209, %v2459, 0.0
      %v2494 = vsel %vm1210, %v2460, 0.0
      %v2495 = vsel %vm1211, %v2461, 0.0
      %v2496 = vsel %vm1276, %v2434, 0.0
      %v2497 = vsel %vm1277, %v2435, 0.0
      %v2498 = vsel %vm1278, %v2436, 0.0
      %v2499 = vsel %vm1279, %v2437, 0.0
      %v2500 = vsel %vm1280, %v2438, 0.0
      %v2501 = vsel %vm1281, %v2439, 0.0
      %v2502 = vsel %vm1282, %v2440, 0.0
      %v2503 = vsel %vm1283, %v2441, 0.0
      %v2504 = vsel %vm1284, %v2442, 0.0
      %v2505 = vsel %vm1285, %v2443, 0.0
      %v2506 = vsel %vm1286, %v2444, 0.0
      %v2507 = vsel %vm1287, %v2445, 0.0
      %v2508 = vsel %vm1288, %v2446, 0.0
      %v2509 = vsel %vm1289, %v2447, 0.0
      %v2510 = vsel %vm1290, %v2448, 0.0
      %v2511 = vsel %vm1291, %v2449, 0.0
      %v2512 = vsel %vm1292, %v2450, 0.0
      %v2513 = vsel %vm1293, %v2451, 0.0
      %v2514 = vsel %vm1294, %v2452, 0.0
      %v2515 = vsel %vm1295, %v2453, 0.0
      %v2516 = vsel %vm1296, %v2454, 0.0
      %v2517 = vsel %vm1297, %v2455, 0.0
      %v2518 = vsel %vm1298, %v2456, 0.0
      %v2519 = vsel %vm1299, %v2457, 0.0
      %v2520 = vsel %vm1300, %v2458, 0.0
      %v2521 = vsel %vm1301, %v2459, 0.0
      %v2522 = vsel %vm1302, %v2460, 0.0
      %v2523 = vsel %vm1303, %v2461, 0.0
      %v2524 = vsel %vm1304, %v2462, 0.0
      %v2525 = vsel %vm1305, %v2463, 0.0
      %v2526 = vsel %vm1306, %v2432, 0.0
      %v2527 = vsel %vm1307, %v2433, 0.0
      %2560 = vrot.lane.b32.xlu0 %v2432, 4
      %v2561 = vpop.permute.xlu0 %2560
      %2562 = vrot.lane.b32.xlu0 %v2433, 4
      %v2563 = vpop.permute.xlu0 %2562
      %2564 = vrot.lane.b32.xlu0 %v2434, 4
      %v2565 = vpop.permute.xlu0 %2564
      %2566 = vrot.lane.b32.xlu0 %v2435, 4
      %v2567 = vpop.permute.xlu0 %2566
      %2568 = vrot.lane.b32.xlu0 %v2436, 4
      %v2569 = vpop.permute.xlu0 %2568
      %2570 = vrot.lane.b32.xlu0 %v2437, 4
      %v2571 = vpop.permute.xlu0 %2570
      %2572 = vrot.lane.b32.xlu0 %v2438, 4
      %v2573 = vpop.permute.xlu0 %2572
      %2574 = vrot.lane.b32.xlu0 %v2439, 4
      %v2575 = vpop.permute.xlu0 %2574
      %2576 = vrot.lane.b32.xlu0 %v2440, 4
      %v2577 = vpop.permute.xlu0 %2576
      %2578 = vrot.lane.b32.xlu0 %v2441, 4
      %v2579 = vpop.permute.xlu0 %2578
      %2580 = vrot.lane.b32.xlu0 %v2442, 4
      %v2581 = vpop.permute.xlu0 %2580
      %2582 = vrot.lane.b32.xlu0 %v2443, 4
      %v2583 = vpop.permute.xlu0 %2582
      %2584 = vrot.lane.b32.xlu0 %v2444, 4
      %v2585 = vpop.permute.xlu0 %2584
      %2586 = vrot.lane.b32.xlu0 %v2445, 4
      %v2587 = vpop.permute.xlu0 %2586
      %2588 = vrot.lane.b32.xlu0 %v2446, 4
      %v2589 = vpop.permute.xlu0 %2588
      %2590 = vrot.lane.b32.xlu0 %v2447, 4
      %v2591 = vpop.permute.xlu0 %2590
      %2592 = vrot.lane.b32.xlu0 %v2448, 4
      %v2593 = vpop.permute.xlu0 %2592
      %2594 = vrot.lane.b32.xlu0 %v2449, 4
      %v2595 = vpop.permute.xlu0 %2594
      %2596 = vrot.lane.b32.xlu0 %v2450, 4
      %v2597 = vpop.permute.xlu0 %2596
      %2598 = vrot.lane.b32.xlu0 %v2451, 4
      %v2599 = vpop.permute.xlu0 %2598
      %2600 = vrot.lane.b32.xlu0 %v2452, 4
      %v2601 = vpop.permute.xlu0 %2600
      %2602 = vrot.lane.b32.xlu0 %v2453, 4
      %v2603 = vpop.permute.xlu0 %2602
      %2604 = vrot.lane.b32.xlu0 %v2454, 4
      %v2605 = vpop.permute.xlu0 %2604
      %2606 = vrot.lane.b32.xlu0 %v2455, 4
      %v2607 = vpop.permute.xlu0 %2606
      %2608 = vrot.lane.b32.xlu0 %v2456, 4
      %v2609 = vpop.permute.xlu0 %2608
      %2610 = vrot.lane.b32.xlu0 %v2457, 4
      %v2611 = vpop.permute.xlu0 %2610
      %2612 = vrot.lane.b32.xlu0 %v2458, 4
      %v2613 = vpop.permute.xlu0 %2612
      %2614 = vrot.lane.b32.xlu0 %v2459, 4
      %v2615 = vpop.permute.xlu0 %2614
      %2616 = vrot.lane.b32.xlu0 %v2460, 4
      %v2617 = vpop.permute.xlu0 %2616
      %2618 = vrot.lane.b32.xlu0 %v2461, 4
      %v2619 = vpop.permute.xlu0 %2618
      %2620 = vrot.lane.b32.xlu0 %v2462, 4
      %v2621 = vpop.permute.xlu0 %2620
      %2622 = vrot.lane.b32.xlu0 %v2463, 4
      %v2623 = vpop.permute.xlu0 %2622
      %2688 = vrot.lane.b32.xlu0 %v2496, 8
      %v2689 = vpop.permute.xlu0 %2688
      %2690 = vrot.lane.b32.xlu0 %v2497, 8
      %v2691 = vpop.permute.xlu0 %2690
      %2692 = vrot.lane.b32.xlu0 %v2498, 8
      %v2693 = vpop.permute.xlu0 %2692
      %2694 = vrot.lane.b32.xlu0 %v2499, 8
      %v2695 = vpop.permute.xlu0 %2694
      %2696 = vrot.lane.b32.xlu0 %v2500, 8
      %v2697 = vpop.permute.xlu0 %2696
      %2698 = vrot.lane.b32.xlu0 %v2501, 8
      %v2699 = vpop.permute.xlu0 %2698
      %2700 = vrot.lane.b32.xlu0 %v2502, 8
      %v2701 = vpop.permute.xlu0 %2700
      %2702 = vrot.lane.b32.xlu0 %v2503, 8
      %v2703 = vpop.permute.xlu0 %2702
      %2704 = vrot.lane.b32.xlu0 %v2504, 8
      %v2705 = vpop.permute.xlu0 %2704
      %2706 = vrot.lane.b32.xlu0 %v2505, 8
      %v2707 = vpop.permute.xlu0 %2706
      %2708 = vrot.lane.b32.xlu0 %v2506, 8
      %v2709 = vpop.permute.xlu0 %2708
      %2710 = vrot.lane.b32.xlu0 %v2507, 8
      %v2711 = vpop.permute.xlu0 %2710
      %2712 = vrot.lane.b32.xlu0 %v2508, 8
      %v2713 = vpop.permute.xlu0 %2712
      %2714 = vrot.lane.b32.xlu0 %v2509, 8
      %v2715 = vpop.permute.xlu0 %2714
      %2716 = vrot.lane.b32.xlu0 %v2510, 8
      %v2717 = vpop.permute.xlu0 %2716
      %2718 = vrot.lane.b32.xlu0 %v2511, 8
      %v2719 = vpop.permute.xlu0 %2718
      %2720 = vrot.lane.b32.xlu0 %v2512, 8
      %v2721 = vpop.permute.xlu0 %2720
      %2722 = vrot.lane.b32.xlu0 %v2513, 8
      %v2723 = vpop.permute.xlu0 %2722
      %2724 = vrot.lane.b32.xlu0 %v2514, 8
      %v2725 = vpop.permute.xlu0 %2724
      %2726 = vrot.lane.b32.xlu0 %v2515, 8
      %v2727 = vpop.permute.xlu0 %2726
      %2728 = vrot.lane.b32.xlu0 %v2516, 8
      %v2729 = vpop.permute.xlu0 %2728
      %2730 = vrot.lane.b32.xlu0 %v2517, 8
      %v2731 = vpop.permute.xlu0 %2730
      %2732 = vrot.lane.b32.xlu0 %v2518, 8
      %v2733 = vpop.permute.xlu0 %2732
      %2734 = vrot.lane.b32.xlu0 %v2519, 8
      %v2735 = vpop.permute.xlu0 %2734
      %2736 = vrot.lane.b32.xlu0 %v2520, 8
      %v2737 = vpop.permute.xlu0 %2736
      %2738 = vrot.lane.b32.xlu0 %v2521, 8
      %v2739 = vpop.permute.xlu0 %2738
      %2740 = vrot.lane.b32.xlu0 %v2522, 8
      %v2741 = vpop.permute.xlu0 %2740
      %2742 = vrot.lane.b32.xlu0 %v2523, 8
      %v2743 = vpop.permute.xlu0 %2742
      %2744 = vrot.lane.b32.xlu0 %v2524, 8
      %v2745 = vpop.permute.xlu0 %2744
      %2746 = vrot.lane.b32.xlu0 %v2525, 8
      %v2747 = vpop.permute.xlu0 %2746
      %2748 = vrot.lane.b32.xlu0 %v2526, 8
      %v2749 = vpop.permute.xlu0 %2748
      %2750 = vrot.lane.b32.xlu0 %v2527, 8
      %v2751 = vpop.permute.xlu0 %2750
      %vm2784 = vcmask 31744
      %v2785 = vsel %vm2784, %v2464, %v2561
      %v2786 = vsel %vm2784, %v2465, %v2563
      %v2787 = vsel %vm2784, %v2466, %v2565
      %v2788 = vsel %vm2784, %v2467, %v2567
      %v2789 = vsel %vm2784, %v2468, %v2569
      %v2790 = vsel %vm2784, %v2469, %v2571
      %v2791 = vsel %vm2784, %v2470, %v2573
      %v2792 = vsel %vm2784, %v2471, %v2575
      %v2793 = vsel %vm2784, %v2472, %v2577
      %v2794 = vsel %vm2784, %v2473, %v2579
      %v2795 = vsel %vm2784, %v2474, %v2581
      %v2796 = vsel %vm2784, %v2475, %v2583
      %v2797 = vsel %vm2784, %v2476, %v2585
      %v2798 = vsel %vm2784, %v2477, %v2587
      %v2799 = vsel %vm2784, %v2478, %v2589
      %v2800 = vsel %vm2784, %v2479, %v2591
      %v2801 = vsel %vm2784, %v2480, %v2593
      %v2802 = vsel %vm2784, %v2481, %v2595
      %v2803 = vsel %vm2784, %v2482, %v2597
      %v2804 = vsel %vm2784, %v2483, %v2599
      %v2805 = vsel %vm2784, %v2484, %v2601
      %v2806 = vsel %vm2784, %v2485, %v2603
      %v2807 = vsel %vm2784, %v2486, %v2605
      %v2808 = vsel %vm2784, %v2487, %v2607
      %v2809 = vsel %vm2784, %v2488, %v2609
      %v2810 = vsel %vm2784, %v2489, %v2611
      %v2811 = vsel %vm2784, %v2490, %v2613
      %v2812 = vsel %vm2784, %v2491, %v2615
      %v2813 = vsel %vm2784, %v2492, %v2617
      %v2814 = vsel %vm2784, %v2493, %v2619
      %v2815 = vsel %vm2784, %v2494, %v2621
      %v2816 = vsel %vm2784, %v2495, %v2623
      %v2817 = vsel %vm1596, %v2785, %v2689
      %v2818 = vsel %vm1596, %v2786, %v2691
      %v2819 = vsel %vm1596, %v2787, %v2693
      %v2820 = vsel %vm1596, %v2788, %v2695
      %v2821 = vsel %vm1596, %v2789, %v2697
      %v2822 = vsel %vm1596, %v2790, %v2699
      %v2823 = vsel %vm1596, %v2791, %v2701
      %v2824 = vsel %vm1596, %v2792, %v2703
      %v2825 = vsel %vm1596, %v2793, %v2705
      %v2826 = vsel %vm1596, %v2794, %v2707
      %v2827 = vsel %vm1596, %v2795, %v2709
      %v2828 = vsel %vm1596, %v2796, %v2711
      %v2829 = vsel %vm1596, %v2797, %v2713
      %v2830 = vsel %vm1596, %v2798, %v2715
      %v2831 = vsel %vm1596, %v2799, %v2717
      %v2832 = vsel %vm1596, %v2800, %v2719
      %v2833 = vsel %vm1596, %v2801, %v2721
      %v2834 = vsel %vm1596, %v2802, %v2723
      %v2835 = vsel %vm1596, %v2803, %v2725
      %v2836 = vsel %vm1596, %v2804, %v2727
      %v2837 = vsel %vm1596, %v2805, %v2729
      %v2838 = vsel %vm1596, %v2806, %v2731
      %v2839 = vsel %vm1596, %v2807, %v2733
      %v2840 = vsel %vm1596, %v2808, %v2735
      %v2841 = vsel %vm1596, %v2809, %v2737
      %v2842 = vsel %vm1596, %v2810, %v2739
      %v2843 = vsel %vm1596, %v2811, %v2741
      %v2844 = vsel %vm1596, %v2812, %v2743
      %v2845 = vsel %vm1596, %v2813, %v2745
      %v2846 = vsel %vm1596, %v2814, %v2747
      %v2847 = vsel %vm1596, %v2815, %v2749
      %v2848 = vsel %vm1596, %v2816, %v2751
      %v2849 = vrot.slane %v2817, 7
      %v2850 = vrot.slane %v2818, 7
      %v2851 = vrot.slane %v2819, 7
      %v2852 = vrot.slane %v2820, 7
      %v2853 = vrot.slane %v2821, 7
      %v2854 = vrot.slane %v2822, 7
      %v2855 = vrot.slane %v2823, 7
      %v2856 = vrot.slane %v2824, 7
      %v2857 = vrot.slane %v2825, 7
      %v2858 = vrot.slane %v2826, 7
      %v2859 = vrot.slane %v2827, 7
      %v2860 = vrot.slane %v2828, 7
      %v2861 = vrot.slane %v2829, 7
      %v2862 = vrot.slane %v2830, 7
      %v2863 = vrot.slane %v2831, 7
      %v2864 = vrot.slane %v2832, 7
      %v2865 = vrot.slane %v2833, 7
      %v2866 = vrot.slane %v2834, 7
      %v2867 = vrot.slane %v2835, 7
      %v2868 = vrot.slane %v2836, 7
      %v2869 = vrot.slane %v2837, 7
      %v2870 = vrot.slane %v2838, 7
      %v2871 = vrot.slane %v2839, 7
      %v2872 = vrot.slane %v2840, 7
      %v2873 = vrot.slane %v2841, 7
      %v2874 = vrot.slane %v2842, 7
      %v2875 = vrot.slane %v2843, 7
      %v2876 = vrot.slane %v2844, 7
      %v2877 = vrot.slane %v2845, 7
      %v2878 = vrot.slane %v2846, 7
      %v2879 = vrot.slane %v2847, 7
      %v2880 = vrot.slane %v2848, 7
      %v2881 = vsel %vm1694, %v2879, %v2880
      %v2882 = vsel %vm1694, %v2878, %v2879
      %v2883 = vsel %vm1694, %v2877, %v2878
      %v2884 = vsel %vm1694, %v2876, %v2877
      %v2885 = vsel %vm1694, %v2875, %v2876
      %v2886 = vsel %vm1694, %v2874, %v2875
      %v2887 = vsel %vm1694, %v2873, %v2874
      %v2888 = vsel %vm1694, %v2872, %v2873
      %v2889 = vsel %vm1694, %v2871, %v2872
      %v2890 = vsel %vm1694, %v2870, %v2871
      %v2891 = vsel %vm1694, %v2869, %v2870
      %v2892 = vsel %vm1694, %v2868, %v2869
      %v2893 = vsel %vm1694, %v2867, %v2868
      %v2894 = vsel %vm1694, %v2866, %v2867
      %v2895 = vsel %vm1694, %v2865, %v2866
      %v2896 = vsel %vm1694, %v2864, %v2865
      %v2897 = vsel %vm1694, %v2863, %v2864
      %v2898 = vsel %vm1694, %v2862, %v2863
      %v2899 = vsel %vm1694, %v2861, %v2862
      %v2900 = vsel %vm1694, %v2860, %v2861
      %v2901 = vsel %vm1694, %v2859, %v2860
      %v2902 = vsel %vm1694, %v2858, %v2859
      %v2903 = vsel %vm1694, %v2857, %v2858
      %v2904 = vsel %vm1694, %v2856, %v2857
      %v2905 = vsel %vm1694, %v2855, %v2856
      %v2906 = vsel %vm1694, %v2854, %v2855
      %v2907 = vsel %vm1694, %v2853, %v2854
      %v2908 = vsel %vm1694, %v2852, %v2853
      %v2909 = vsel %vm1694, %v2851, %v2852
      %v2910 = vsel %vm1694, %v2850, %v2851
      %v2911 = vsel %vm1694, %v2849, %v2850
      %v2912 = vsel %vm1694, %v2880, %v2849
      %v2913 = vrot.slane %v2817, 1
      %v2914 = vrot.slane %v2818, 1
      %v2915 = vrot.slane %v2819, 1
      %v2916 = vrot.slane %v2820, 1
      %v2917 = vrot.slane %v2821, 1
      %v2918 = vrot.slane %v2822, 1
      %v2919 = vrot.slane %v2823, 1
      %v2920 = vrot.slane %v2824, 1
      %v2921 = vrot.slane %v2825, 1
      %v2922 = vrot.slane %v2826, 1
      %v2923 = vrot.slane %v2827, 1
      %v2924 = vrot.slane %v2828, 1
      %v2925 = vrot.slane %v2829, 1
      %v2926 = vrot.slane %v2830, 1
      %v2927 = vrot.slane %v2831, 1
      %v2928 = vrot.slane %v2832, 1
      %v2929 = vrot.slane %v2833, 1
      %v2930 = vrot.slane %v2834, 1
      %v2931 = vrot.slane %v2835, 1
      %v2932 = vrot.slane %v2836, 1
      %v2933 = vrot.slane %v2837, 1
      %v2934 = vrot.slane %v2838, 1
      %v2935 = vrot.slane %v2839, 1
      %v2936 = vrot.slane %v2840, 1
      %v2937 = vrot.slane %v2841, 1
      %v2938 = vrot.slane %v2842, 1
      %v2939 = vrot.slane %v2843, 1
      %v2940 = vrot.slane %v2844, 1
      %v2941 = vrot.slane %v2845, 1
      %v2942 = vrot.slane %v2846, 1
      %v2943 = vrot.slane %v2847, 1
      %v2944 = vrot.slane %v2848, 1
      %v2945 = vsel %vm1759, %v2943, %v2944
      %v2946 = vsel %vm1759, %v2942, %v2943
      %v2947 = vsel %vm1759, %v2941, %v2942
      %v2948 = vsel %vm1759, %v2940, %v2941
      %v2949 = vsel %vm1759, %v2939, %v2940
      %v2950 = vsel %vm1759, %v2938, %v2939
      %v2951 = vsel %vm1759, %v2937, %v2938
      %v2952 = vsel %vm1759, %v2936, %v2937
      %v2953 = vsel %vm1759, %v2935, %v2936
      %v2954 = vsel %vm1759, %v2934, %v2935
      %v2955 = vsel %vm1759, %v2933, %v2934
      %v2956 = vsel %vm1759, %v2932, %v2933
      %v2957 = vsel %vm1759, %v2931, %v2932
      %v2958 = vsel %vm1759, %v2930, %v2931
      %v2959 = vsel %vm1759, %v2929, %v2930
      %v2960 = vsel %vm1759, %v2928, %v2929
      %v2961 = vsel %vm1759, %v2927, %v2928
      %v2962 = vsel %vm1759, %v2926, %v2927
      %v2963 = vsel %vm1759, %v2925, %v2926
      %v2964 = vsel %vm1759, %v2924, %v2925
      %v2965 = vsel %vm1759, %v2923, %v2924
      %v2966 = vsel %vm1759, %v2922, %v2923
      %v2967 = vsel %vm1759, %v2921, %v2922
      %v2968 = vsel %vm1759, %v2920, %v2921
      %v2969 = vsel %vm1759, %v2919, %v2920
      %v2970 = vsel %vm1759, %v2918, %v2919
      %v2971 = vsel %vm1759, %v2917, %v2918
      %v2972 = vsel %vm1759, %v2916, %v2917
      %v2973 = vsel %vm1759, %v2915, %v2916
      %v2974 = vsel %vm1759, %v2914, %v2915
      %v2975 = vsel %vm1759, %v2913, %v2914
      %v2976 = vsel %vm1759, %v2944, %v2913
      %v2977 = vpack.c.bf16 %v2818, %v2817
      %v2978 = vpack.c.bf16 %v2820, %v2819
      %v2979 = vpack.c.bf16 %v2822, %v2821
      %v2980 = vpack.c.bf16 %v2824, %v2823
      %v2981 = vpack.c.bf16 %v2826, %v2825
      %v2982 = vpack.c.bf16 %v2828, %v2827
      %v2983 = vpack.c.bf16 %v2830, %v2829
      %v2984 = vpack.c.bf16 %v2832, %v2831
      %v2985 = vpack.c.bf16 %v2834, %v2833
      %v2986 = vpack.c.bf16 %v2836, %v2835
      %v2987 = vpack.c.bf16 %v2838, %v2837
      %v2988 = vpack.c.bf16 %v2840, %v2839
      %v2989 = vpack.c.bf16 %v2842, %v2841
      %v2990 = vpack.c.bf16 %v2844, %v2843
      %v2991 = vpack.c.bf16 %v2846, %v2845
      %v2992 = vpack.c.bf16 %v2848, %v2847
      %s2993 = scalar_lea.vmem %s5, 8
      %v2994 = vld [vmem:[%s2993] sm:$0xf]
      %v2995 = vld [vmem:[%s2993 + $0x4] sm:$0x3]
      %v2996 = vpack.c.bf16 %v2911, %v2912
      %v2997 = vpack.c.bf16 %v2909, %v2910
      %v2998 = vpack.c.bf16 %v2907, %v2908
      %v2999 = vpack.c.bf16 %v2905, %v2906
      %v3000 = vpack.c.bf16 %v2903, %v2904
      %v3001 = vpack.c.bf16 %v2901, %v2902
      %v3002 = vpack.c.bf16 %v2899, %v2900
      %v3003 = vpack.c.bf16 %v2897, %v2898
      %v3004 = vpack.c.bf16 %v2895, %v2896
      %v3005 = vpack.c.bf16 %v2893, %v2894
      %v3006 = vpack.c.bf16 %v2891, %v2892
      %v3007 = vpack.c.bf16 %v2889, %v2890
      %v3008 = vpack.c.bf16 %v2887, %v2888
      %v3009 = vpack.c.bf16 %v2885, %v2886
      %v3010 = vpack.c.bf16 %v2883, %v2884
      %v3011 = vpack.c.bf16 %v2881, %v2882
      %v3012 = vld [vmem:[%s5] sm:$0xf]
      %v3013 = vld [vmem:[%s5 + $0x4] sm:$0x3]
      %v3016 = vunpack.c.l.b16 %v3012
      %v3017 = vunpack.c.l.b16 %v3013
      %v3018 = vpack.c.b16 %v3017, %v3016
      %vm3019 = vcmask 97280
      %v3021 = vsel %vm3019, %v2996, 0
      %v3024 = vsel %vm3019, %v2997, 0
      %v3027 = vsel %vm3019, %v2998, 0
      %v3030 = vsel %vm3019, %v2999, 0
      %v3033 = vsel %vm3019, %v3000, 0
      %v3036 = vsel %vm3019, %v3001, 0
      %v3039 = vsel %vm3019, %v3002, 0
      %v3042 = vsel %vm3019, %v3003, 0
      %v3045 = vsel %vm3019, %v3004, 0
      %v3048 = vsel %vm3019, %v3005, 0
      %v3051 = vsel %vm3019, %v3006, 0
      %v3054 = vsel %vm3019, %v3007, 0
      %v3057 = vsel %vm3019, %v3008, 0
      %v3060 = vsel %vm3019, %v3009, 0
      %v3063 = vsel %vm3019, %v3010, 0
      %v3066 = vsel %vm3019, %v3011, 0
      %vm3068 = vcmask 1045504
      %v3070 = vsel %vm3068, %v3018, 0
      %3072 = vmatpush.bf16.msra.mxu0 0
      %3073 = vmatpush.bf16.msra.mxu0 0
      %3074 = vmatpush.bf16.msra.mxu0 0
      %3075 = vmatpush.bf16.msra.mxu0 0
      %3076 = vmatpush.bf16.msra.mxu0 0
      %3077 = vmatpush.bf16.msra.mxu0 0
      %3078 = vmatpush.bf16.msra.mxu0 0
      %3079 = vmatpush.bf16.msra.mxu0 %v3070
      %3080 = vmatmul.bf16.gmra.mxu0 %v3021
      %v3081 = vpop.f32.mrf.mxu0
      %v3082 = vadd.f32 0.0, %v3081
      %v3083 = vpop.f32.mrf.mxu0
      %v3084 = vadd.f32 0.0, %v3083
      %3085 = vmatmul.bf16.gmra.mxu0 %v3024
      %v3086 = vpop.f32.mrf.mxu0
      %v3087 = vadd.f32 0.0, %v3086
      %v3088 = vpop.f32.mrf.mxu0
      %v3089 = vadd.f32 0.0, %v3088
      %3090 = vmatmul.bf16.gmra.mxu0 %v3027
      %v3091 = vpop.f32.mrf.mxu0
      %v3092 = vadd.f32 0.0, %v3091
      %v3093 = vpop.f32.mrf.mxu0
      %v3094 = vadd.f32 0.0, %v3093
      %3095 = vmatmul.bf16.gmra.mxu0 %v3030
      %v3096 = vpop.f32.mrf.mxu0
      %v3097 = vadd.f32 0.0, %v3096
      %v3098 = vpop.f32.mrf.mxu0
      %v3099 = vadd.f32 0.0, %v3098
      %3100 = vmatmul.bf16.gmra.mxu0 %v3033
      %v3101 = vpop.f32.mrf.mxu0
      %v3102 = vadd.f32 0.0, %v3101
      %v3103 = vpop.f32.mrf.mxu0
      %v3104 = vadd.f32 0.0, %v3103
      %3105 = vmatmul.bf16.gmra.mxu0 %v3036
      %v3106 = vpop.f32.mrf.mxu0
      %v3107 = vadd.f32 0.0, %v3106
      %v3108 = vpop.f32.mrf.mxu0
      %v3109 = vadd.f32 0.0, %v3108
      %3110 = vmatmul.bf16.gmra.mxu0 %v3039
      %v3111 = vpop.f32.mrf.mxu0
      %v3112 = vadd.f32 0.0, %v3111
      %v3113 = vpop.f32.mrf.mxu0
      %v3114 = vadd.f32 0.0, %v3113
      %3115 = vmatmul.bf16.gmra.mxu0 %v3042
      %v3116 = vpop.f32.mrf.mxu0
      %v3117 = vadd.f32 0.0, %v3116
      %v3118 = vpop.f32.mrf.mxu0
      %v3119 = vadd.f32 0.0, %v3118
      %3120 = vmatmul.bf16.gmra.mxu0 %v3045
      %v3121 = vpop.f32.mrf.mxu0
      %v3122 = vadd.f32 0.0, %v3121
      %v3123 = vpop.f32.mrf.mxu0
      %v3124 = vadd.f32 0.0, %v3123
      %3125 = vmatmul.bf16.gmra.mxu0 %v3048
      %v3126 = vpop.f32.mrf.mxu0
      %v3127 = vadd.f32 0.0, %v3126
      %v3128 = vpop.f32.mrf.mxu0
      %v3129 = vadd.f32 0.0, %v3128
      %3130 = vmatmul.bf16.gmra.mxu0 %v3051
      %v3131 = vpop.f32.mrf.mxu0
      %v3132 = vadd.f32 0.0, %v3131
      %v3133 = vpop.f32.mrf.mxu0
      %v3134 = vadd.f32 0.0, %v3133
      %3135 = vmatmul.bf16.gmra.mxu0 %v3054
      %v3136 = vpop.f32.mrf.mxu0
      %v3137 = vadd.f32 0.0, %v3136
      %v3138 = vpop.f32.mrf.mxu0
      %v3139 = vadd.f32 0.0, %v3138
      %3140 = vmatmul.bf16.gmra.mxu0 %v3057
      %v3141 = vpop.f32.mrf.mxu0
      %v3142 = vadd.f32 0.0, %v3141
      %v3143 = vpop.f32.mrf.mxu0
      %v3144 = vadd.f32 0.0, %v3143
      %3145 = vmatmul.bf16.gmra.mxu0 %v3060
      %v3146 = vpop.f32.mrf.mxu0
      %v3147 = vadd.f32 0.0, %v3146
      %v3148 = vpop.f32.mrf.mxu0
      %v3149 = vadd.f32 0.0, %v3148
      %3150 = vmatmul.bf16.gmra.mxu0 %v3063
      %v3151 = vpop.f32.mrf.mxu0
      %v3152 = vadd.f32 0.0, %v3151
      %v3153 = vpop.f32.mrf.mxu0
      %v3154 = vadd.f32 0.0, %v3153
      %3155 = vmatmul.bf16.gmra.mxu0 %v3066
      %v3156 = vpop.f32.mrf.mxu0
      %v3157 = vadd.f32 0.0, %v3156
      %v3158 = vpop.f32.mrf.mxu0
      %v3159 = vadd.f32 0.0, %v3158
      %3160 = vdwg.mxu0
      %v3161 = vmul.f32 %v788, %v3082
      %v3162 = vmul.f32 %v789, %v3084
      %v3163 = vmul.f32 %v790, %v3087
      %v3164 = vmul.f32 %v791, %v3089
      %v3165 = vmul.f32 %v792, %v3092
      %v3166 = vmul.f32 %v793, %v3094
      %v3167 = vmul.f32 %v794, %v3097
      %v3168 = vmul.f32 %v795, %v3099
      %v3169 = vmul.f32 %v796, %v3102
      %v3170 = vmul.f32 %v797, %v3104
      %v3171 = vmul.f32 %v798, %v3107
      %v3172 = vmul.f32 %v799, %v3109
      %v3173 = vmul.f32 %v800, %v3112
      %v3174 = vmul.f32 %v801, %v3114
      %v3175 = vmul.f32 %v802, %v3117
      %v3176 = vmul.f32 %v803, %v3119
      %v3177 = vmul.f32 %v804, %v3122
      %v3178 = vmul.f32 %v805, %v3124
      %v3179 = vmul.f32 %v806, %v3127
      %v3180 = vmul.f32 %v807, %v3129
      %v3181 = vmul.f32 %v808, %v3132
      %v3182 = vmul.f32 %v809, %v3134
      %v3183 = vmul.f32 %v810, %v3137
      %v3184 = vmul.f32 %v811, %v3139
      %v3185 = vmul.f32 %v812, %v3142
      %v3186 = vmul.f32 %v813, %v3144
      %v3187 = vmul.f32 %v814, %v3147
      %v3188 = vmul.f32 %v815, %v3149
      %v3189 = vmul.f32 %v816, %v3152
      %v3190 = vmul.f32 %v817, %v3154
      %v3191 = vmul.f32 %v818, %v3157
      %v3192 = vmul.f32 %v819, %v3159
      %v3195 = vunpack.c.l.b16 %v2994
      %v3196 = vunpack.c.l.b16 %v2995
      %v3197 = vpack.c.b16 %v3196, %v3195
      %v3199 = vsel %vm3019, %v2977, 0
      %v3202 = vsel %vm3019, %v2978, 0
      %v3205 = vsel %vm3019, %v2979, 0
      %v3208 = vsel %vm3019, %v2980, 0
      %v3211 = vsel %vm3019, %v2981, 0
      %v3214 = vsel %vm3019, %v2982, 0
      %v3217 = vsel %vm3019, %v2983, 0
      %v3220 = vsel %vm3019, %v2984, 0
      %v3223 = vsel %vm3019, %v2985, 0
      %v3226 = vsel %vm3019, %v2986, 0
      %v3229 = vsel %vm3019, %v2987, 0
      %v3232 = vsel %vm3019, %v2988, 0
      %v3235 = vsel %vm3019, %v2989, 0
      %v3238 = vsel %vm3019, %v2990, 0
      %v3241 = vsel %vm3019, %v2991, 0
      %v3244 = vsel %vm3019, %v2992, 0
      %v3247 = vsel %vm3068, %v3197, 0
      %3249 = vmatpush.bf16.msra.mxu0 0
      %3250 = vmatpush.bf16.msra.mxu0 0
      %3251 = vmatpush.bf16.msra.mxu0 0
      %3252 = vmatpush.bf16.msra.mxu0 0
      %3253 = vmatpush.bf16.msra.mxu0 0
      %3254 = vmatpush.bf16.msra.mxu0 0
      %3255 = vmatpush.bf16.msra.mxu0 0
      %3256 = vmatpush.bf16.msra.mxu0 %v3247
      %3257 = vmatmul.bf16.gmra.mxu0 %v3199
      %v3258 = vpop.f32.mrf.mxu0
      %v3259 = vadd.f32 %v3161, %v3258
      %v3260 = vpop.f32.mrf.mxu0
      %v3261 = vadd.f32 %v3162, %v3260
      %3262 = vmatmul.bf16.gmra.mxu0 %v3202
      %v3263 = vpop.f32.mrf.mxu0
      %v3264 = vadd.f32 %v3163, %v3263
      %v3265 = vpop.f32.mrf.mxu0
      %v3266 = vadd.f32 %v3164, %v3265
      %3267 = vmatmul.bf16.gmra.mxu0 %v3205
      %v3268 = vpop.f32.mrf.mxu0
      %v3269 = vadd.f32 %v3165, %v3268
      %v3270 = vpop.f32.mrf.mxu0
      %v3271 = vadd.f32 %v3166, %v3270
      %3272 = vmatmul.bf16.gmra.mxu0 %v3208
      %v3273 = vpop.f32.mrf.mxu0
      %v3274 = vadd.f32 %v3167, %v3273
      %v3275 = vpop.f32.mrf.mxu0
      %v3276 = vadd.f32 %v3168, %v3275
      %3277 = vmatmul.bf16.gmra.mxu0 %v3211
      %v3278 = vpop.f32.mrf.mxu0
      %v3279 = vadd.f32 %v3169, %v3278
      %v3280 = vpop.f32.mrf.mxu0
      %v3281 = vadd.f32 %v3170, %v3280
      %3282 = vmatmul.bf16.gmra.mxu0 %v3214
      %v3283 = vpop.f32.mrf.mxu0
      %v3284 = vadd.f32 %v3171, %v3283
      %v3285 = vpop.f32.mrf.mxu0
      %v3286 = vadd.f32 %v3172, %v3285
      %3287 = vmatmul.bf16.gmra.mxu0 %v3217
      %v3288 = vpop.f32.mrf.mxu0
      %v3289 = vadd.f32 %v3173, %v3288
      %v3290 = vpop.f32.mrf.mxu0
      %v3291 = vadd.f32 %v3174, %v3290
      %3292 = vmatmul.bf16.gmra.mxu0 %v3220
      %v3293 = vpop.f32.mrf.mxu0
      %v3294 = vadd.f32 %v3175, %v3293
      %v3295 = vpop.f32.mrf.mxu0
      %v3296 = vadd.f32 %v3176, %v3295
      %3297 = vmatmul.bf16.gmra.mxu0 %v3223
      %v3298 = vpop.f32.mrf.mxu0
      %v3299 = vadd.f32 %v3177, %v3298
      %v3300 = vpop.f32.mrf.mxu0
      %v3301 = vadd.f32 %v3178, %v3300
      %3302 = vmatmul.bf16.gmra.mxu0 %v3226
      %v3303 = vpop.f32.mrf.mxu0
      %v3304 = vadd.f32 %v3179, %v3303
      %v3305 = vpop.f32.mrf.mxu0
      %v3306 = vadd.f32 %v3180, %v3305
      %3307 = vmatmul.bf16.gmra.mxu0 %v3229
      %v3308 = vpop.f32.mrf.mxu0
      %v3309 = vadd.f32 %v3181, %v3308
      %v3310 = vpop.f32.mrf.mxu0
      %v3311 = vadd.f32 %v3182, %v3310
      %3312 = vmatmul.bf16.gmra.mxu0 %v3232
      %v3313 = vpop.f32.mrf.mxu0
      %v3314 = vadd.f32 %v3183, %v3313
      %v3315 = vpop.f32.mrf.mxu0
      %v3316 = vadd.f32 %v3184, %v3315
      %3317 = vmatmul.bf16.gmra.mxu0 %v3235
      %v3318 = vpop.f32.mrf.mxu0
      %v3319 = vadd.f32 %v3185, %v3318
      %v3320 = vpop.f32.mrf.mxu0
      %v3321 = vadd.f32 %v3186, %v3320
      %3322 = vmatmul.bf16.gmra.mxu0 %v3238
      %v3323 = vpop.f32.mrf.mxu0
      %v3324 = vadd.f32 %v3187, %v3323
      %v3325 = vpop.f32.mrf.mxu0
      %v3326 = vadd.f32 %v3188, %v3325
      %3327 = vmatmul.bf16.gmra.mxu0 %v3241
      %v3328 = vpop.f32.mrf.mxu0
      %v3329 = vadd.f32 %v3189, %v3328
      %v3330 = vpop.f32.mrf.mxu0
      %v3331 = vadd.f32 %v3190, %v3330
      %3332 = vmatmul.bf16.gmra.mxu0 %v3244
      %v3333 = vpop.f32.mrf.mxu0
      %v3334 = vadd.f32 %v3191, %v3333
      %v3335 = vpop.f32.mrf.mxu0
      %v3336 = vadd.f32 %v3192, %v3335
      %3337 = vdwg.mxu0
      %v3338 = vpack.c.bf16 %v2974, %v2975
      %v3339 = vpack.c.bf16 %v2972, %v2973
      %v3340 = vpack.c.bf16 %v2970, %v2971
      %v3341 = vpack.c.bf16 %v2968, %v2969
      %v3342 = vpack.c.bf16 %v2966, %v2967
      %v3343 = vpack.c.bf16 %v2964, %v2965
      %v3344 = vpack.c.bf16 %v2962, %v2963
      %v3345 = vpack.c.bf16 %v2960, %v2961
      %v3346 = vpack.c.bf16 %v2958, %v2959
      %v3347 = vpack.c.bf16 %v2956, %v2957
      %v3348 = vpack.c.bf16 %v2954, %v2955
      %v3349 = vpack.c.bf16 %v2952, %v2953
      %v3350 = vpack.c.bf16 %v2950, %v2951
      %v3351 = vpack.c.bf16 %v2948, %v2949
      %v3352 = vpack.c.bf16 %v2946, %v2947
      %v3353 = vpack.c.bf16 %v2976, %v2945
      %s3354 = scalar_lea.vmem %s5, 16
      %v3355 = vld [vmem:[%s3354] sm:$0xf]
      %v3356 = vld [vmem:[%s3354 + $0x4] sm:$0x3]
      %v3359 = vunpack.c.l.b16 %v3355
      %v3360 = vunpack.c.l.b16 %v3356
      %v3361 = vpack.c.b16 %v3360, %v3359
      %v3363 = vsel %vm3019, %v3338, 0
      %v3366 = vsel %vm3019, %v3339, 0
      %v3369 = vsel %vm3019, %v3340, 0
      %v3372 = vsel %vm3019, %v3341, 0
      %v3375 = vsel %vm3019, %v3342, 0
      %v3378 = vsel %vm3019, %v3343, 0
      %v3381 = vsel %vm3019, %v3344, 0
      %v3384 = vsel %vm3019, %v3345, 0
      %v3387 = vsel %vm3019, %v3346, 0
      %v3390 = vsel %vm3019, %v3347, 0
      %v3393 = vsel %vm3019, %v3348, 0
      %v3396 = vsel %vm3019, %v3349, 0
      %v3399 = vsel %vm3019, %v3350, 0
      %v3402 = vsel %vm3019, %v3351, 0
      %v3405 = vsel %vm3019, %v3352, 0
      %v3408 = vsel %vm3019, %v3353, 0
      %v3411 = vsel %vm3068, %v3361, 0
      %3413 = vmatpush.bf16.msra.mxu0 0
      %3414 = vmatpush.bf16.msra.mxu0 0
      %3415 = vmatpush.bf16.msra.mxu0 0
      %3416 = vmatpush.bf16.msra.mxu0 0
      %3417 = vmatpush.bf16.msra.mxu0 0
      %3418 = vmatpush.bf16.msra.mxu0 0
      %3419 = vmatpush.bf16.msra.mxu0 0
      %3420 = vmatpush.bf16.msra.mxu0 %v3411
      %3421 = vmatmul.bf16.gmra.mxu0 %v3363
      %v3422 = vpop.f32.mrf.mxu0
      %v3423 = vadd.f32 0.0, %v3422
      %v3424 = vpop.f32.mrf.mxu0
      %v3425 = vadd.f32 0.0, %v3424
      %3426 = vmatmul.bf16.gmra.mxu0 %v3366
      %v3427 = vpop.f32.mrf.mxu0
      %v3428 = vadd.f32 0.0, %v3427
      %v3429 = vpop.f32.mrf.mxu0
      %v3430 = vadd.f32 0.0, %v3429
      %3431 = vmatmul.bf16.gmra.mxu0 %v3369
      %v3432 = vpop.f32.mrf.mxu0
      %v3433 = vadd.f32 0.0, %v3432
      %v3434 = vpop.f32.mrf.mxu0
      %v3435 = vadd.f32 0.0, %v3434
      %3436 = vmatmul.bf16.gmra.mxu0 %v3372
      %v3437 = vpop.f32.mrf.mxu0
      %v3438 = vadd.f32 0.0, %v3437
      %v3439 = vpop.f32.mrf.mxu0
      %v3440 = vadd.f32 0.0, %v3439
      %3441 = vmatmul.bf16.gmra.mxu0 %v3375
      %v3442 = vpop.f32.mrf.mxu0
      %v3443 = vadd.f32 0.0, %v3442
      %v3444 = vpop.f32.mrf.mxu0
      %v3445 = vadd.f32 0.0, %v3444
      %3446 = vmatmul.bf16.gmra.mxu0 %v3378
      %v3447 = vpop.f32.mrf.mxu0
      %v3448 = vadd.f32 0.0, %v3447
      %v3449 = vpop.f32.mrf.mxu0
      %v3450 = vadd.f32 0.0, %v3449
      %3451 = vmatmul.bf16.gmra.mxu0 %v3381
      %v3452 = vpop.f32.mrf.mxu0
      %v3453 = vadd.f32 0.0, %v3452
      %v3454 = vpop.f32.mrf.mxu0
      %v3455 = vadd.f32 0.0, %v3454
      %3456 = vmatmul.bf16.gmra.mxu0 %v3384
      %v3457 = vpop.f32.mrf.mxu0
      %v3458 = vadd.f32 0.0, %v3457
      %v3459 = vpop.f32.mrf.mxu0
      %v3460 = vadd.f32 0.0, %v3459
      %3461 = vmatmul.bf16.gmra.mxu0 %v3387
      %v3462 = vpop.f32.mrf.mxu0
      %v3463 = vadd.f32 0.0, %v3462
      %v3464 = vpop.f32.mrf.mxu0
      %v3465 = vadd.f32 0.0, %v3464
      %3466 = vmatmul.bf16.gmra.mxu0 %v3390
      %v3467 = vpop.f32.mrf.mxu0
      %v3468 = vadd.f32 0.0, %v3467
      %v3469 = vpop.f32.mrf.mxu0
      %v3470 = vadd.f32 0.0, %v3469
      %3471 = vmatmul.bf16.gmra.mxu0 %v3393
      %v3472 = vpop.f32.mrf.mxu0
      %v3473 = vadd.f32 0.0, %v3472
      %v3474 = vpop.f32.mrf.mxu0
      %v3475 = vadd.f32 0.0, %v3474
      %3476 = vmatmul.bf16.gmra.mxu0 %v3396
      %v3477 = vpop.f32.mrf.mxu0
      %v3478 = vadd.f32 0.0, %v3477
      %v3479 = vpop.f32.mrf.mxu0
      %v3480 = vadd.f32 0.0, %v3479
      %3481 = vmatmul.bf16.gmra.mxu0 %v3399
      %v3482 = vpop.f32.mrf.mxu0
      %v3483 = vadd.f32 0.0, %v3482
      %v3484 = vpop.f32.mrf.mxu0
      %v3485 = vadd.f32 0.0, %v3484
      %3486 = vmatmul.bf16.gmra.mxu0 %v3402
      %v3487 = vpop.f32.mrf.mxu0
      %v3488 = vadd.f32 0.0, %v3487
      %v3489 = vpop.f32.mrf.mxu0
      %v3490 = vadd.f32 0.0, %v3489
      %3491 = vmatmul.bf16.gmra.mxu0 %v3405
      %v3492 = vpop.f32.mrf.mxu0
      %v3493 = vadd.f32 0.0, %v3492
      %v3494 = vpop.f32.mrf.mxu0
      %v3495 = vadd.f32 0.0, %v3494
      %3496 = vmatmul.bf16.gmra.mxu0 %v3408
      %v3497 = vpop.f32.mrf.mxu0
      %v3498 = vadd.f32 0.0, %v3497
      %v3499 = vpop.f32.mrf.mxu0
      %v3500 = vadd.f32 0.0, %v3499
      %3501 = vdwg.mxu0
      %v3502 = vmul.f32 %v884, %v3423
      %v3503 = vmul.f32 %v885, %v3425
      %v3504 = vmul.f32 %v886, %v3428
      %v3505 = vmul.f32 %v887, %v3430
      %v3506 = vmul.f32 %v888, %v3433
      %v3507 = vmul.f32 %v889, %v3435
      %v3508 = vmul.f32 %v890, %v3438
      %v3509 = vmul.f32 %v891, %v3440
      %v3510 = vmul.f32 %v892, %v3443
      %v3511 = vmul.f32 %v893, %v3445
      %v3512 = vmul.f32 %v894, %v3448
      %v3513 = vmul.f32 %v895, %v3450
      %v3514 = vmul.f32 %v896, %v3453
      %v3515 = vmul.f32 %v897, %v3455
      %v3516 = vmul.f32 %v898, %v3458
      %v3517 = vmul.f32 %v899, %v3460
      %v3518 = vmul.f32 %v900, %v3463
      %v3519 = vmul.f32 %v901, %v3465
      %v3520 = vmul.f32 %v902, %v3468
      %v3521 = vmul.f32 %v903, %v3470
      %v3522 = vmul.f32 %v904, %v3473
      %v3523 = vmul.f32 %v905, %v3475
      %v3524 = vmul.f32 %v906, %v3478
      %v3525 = vmul.f32 %v907, %v3480
      %v3526 = vmul.f32 %v908, %v3483
      %v3527 = vmul.f32 %v909, %v3485
      %v3528 = vmul.f32 %v910, %v3488
      %v3529 = vmul.f32 %v911, %v3490
      %v3530 = vmul.f32 %v912, %v3493
      %v3531 = vmul.f32 %v913, %v3495
      %v3532 = vmul.f32 %v914, %v3498
      %v3533 = vmul.f32 %v915, %v3500
      %v3534 = vadd.f32 %v3259, %v3502
      %v3535 = vadd.f32 %v3261, %v3503
      %v3536 = vadd.f32 %v3264, %v3504
      %v3537 = vadd.f32 %v3266, %v3505
      %v3538 = vadd.f32 %v3269, %v3506
      %v3539 = vadd.f32 %v3271, %v3507
      %v3540 = vadd.f32 %v3274, %v3508
      %v3541 = vadd.f32 %v3276, %v3509
      %v3542 = vadd.f32 %v3279, %v3510
      %v3543 = vadd.f32 %v3281, %v3511
      %v3544 = vadd.f32 %v3284, %v3512
      %v3545 = vadd.f32 %v3286, %v3513
      %v3546 = vadd.f32 %v3289, %v3514
      %v3547 = vadd.f32 %v3291, %v3515
      %v3548 = vadd.f32 %v3294, %v3516
      %v3549 = vadd.f32 %v3296, %v3517
      %v3550 = vadd.f32 %v3299, %v3518
      %v3551 = vadd.f32 %v3301, %v3519
      %v3552 = vadd.f32 %v3304, %v3520
      %v3553 = vadd.f32 %v3306, %v3521
      %v3554 = vadd.f32 %v3309, %v3522
      %v3555 = vadd.f32 %v3311, %v3523
      %v3556 = vadd.f32 %v3314, %v3524
      %v3557 = vadd.f32 %v3316, %v3525
      %v3558 = vadd.f32 %v3319, %v3526
      %v3559 = vadd.f32 %v3321, %v3527
      %v3560 = vadd.f32 %v3324, %v3528
      %v3561 = vadd.f32 %v3326, %v3529
      %v3562 = vadd.f32 %v3329, %v3530
      %v3563 = vadd.f32 %v3331, %v3531
      %v3564 = vadd.f32 %v3334, %v3532
      %v3565 = vadd.f32 %v3336, %v3533
      %v3566 = vld [vmem:[%s6] sm:$0xf]
      %v3599 = vunpack.c.l.b16 %v980
      %v3600 = vunpack.c.l.b16 %v981
      %v3601 = vunpack.c.l.b16 %v982
      %v3602 = vunpack.c.l.b16 %v983
      %v3603 = vunpack.c.l.b16 %v984
      %v3604 = vunpack.c.l.b16 %v985
      %v3605 = vunpack.c.l.b16 %v986
      %v3606 = vunpack.c.l.b16 %v987
      %v3607 = vunpack.c.l.b16 %v988
      %v3608 = vunpack.c.l.b16 %v989
      %v3609 = vunpack.c.l.b16 %v990
      %v3610 = vunpack.c.l.b16 %v991
      %v3611 = vunpack.c.l.b16 %v992
      %v3612 = vunpack.c.l.b16 %v993
      %v3613 = vunpack.c.l.b16 %v994
      %v3614 = vunpack.c.l.b16 %v995
      %v3615 = vunpack.c.l.b16 %v996
      %v3616 = vunpack.c.l.b16 %v997
      %v3617 = vunpack.c.l.b16 %v998
      %v3618 = vunpack.c.l.b16 %v999
      %v3619 = vunpack.c.l.b16 %v1000
      %v3620 = vunpack.c.l.b16 %v1001
      %v3621 = vunpack.c.l.b16 %v1002
      %v3622 = vunpack.c.l.b16 %v1003
      %v3623 = vunpack.c.l.b16 %v1004
      %v3624 = vunpack.c.l.b16 %v1005
      %v3625 = vunpack.c.l.b16 %v1006
      %v3626 = vunpack.c.l.b16 %v1007
      %v3627 = vunpack.c.l.b16 %v1008
      %v3628 = vunpack.c.l.b16 %v1009
      %v3629 = vunpack.c.l.b16 %v1010
      %v3630 = vunpack.c.l.b16 %v1011
      %v3631 = vpack.c.b16 %v3600, %v3599
      %v3632 = vpack.c.b16 %v3602, %v3601
      %v3633 = vpack.c.b16 %v3604, %v3603
      %v3634 = vpack.c.b16 %v3606, %v3605
      %v3635 = vpack.c.b16 %v3608, %v3607
      %v3636 = vpack.c.b16 %v3610, %v3609
      %v3637 = vpack.c.b16 %v3612, %v3611
      %v3638 = vpack.c.b16 %v3614, %v3613
      %v3639 = vpack.c.b16 %v3616, %v3615
      %v3640 = vpack.c.b16 %v3618, %v3617
      %v3641 = vpack.c.b16 %v3620, %v3619
      %v3642 = vpack.c.b16 %v3622, %v3621
      %v3643 = vpack.c.b16 %v3624, %v3623
      %v3644 = vpack.c.b16 %v3626, %v3625
      %v3645 = vpack.c.b16 %v3628, %v3627
      %v3646 = vpack.c.b16 %v3630, %v3629
      %v3648 = vsel %vm1596, %v3631, 0
      %v3651 = vsel %vm1596, %v3632, 0
      %v3654 = vsel %vm1596, %v3633, 0
      %v3657 = vsel %vm1596, %v3634, 0
      %v3660 = vsel %vm1596, %v3635, 0
      %v3663 = vsel %vm1596, %v3636, 0
      %v3666 = vsel %vm1596, %v3637, 0
      %v3669 = vsel %vm1596, %v3638, 0
      %v3672 = vsel %vm1596, %v3639, 0
      %v3675 = vsel %vm1596, %v3640, 0
      %v3678 = vsel %vm1596, %v3641, 0
      %v3681 = vsel %vm1596, %v3642, 0
      %v3684 = vsel %vm1596, %v3643, 0
      %v3687 = vsel %vm1596, %v3644, 0
      %v3690 = vsel %vm1596, %v3645, 0
      %v3693 = vsel %vm1596, %v3646, 0
      %v3696 = vsel %vm1889, %v3566, 0
      %3698 = vmatpush.bf16.msra.mxu0 0
      %3699 = vmatpush.bf16.msra.mxu0 0
      %3700 = vmatpush.bf16.msra.mxu0 0
      %3701 = vmatpush.bf16.msra.mxu0 0
      %3702 = vmatpush.bf16.msra.mxu0 0
      %3703 = vmatpush.bf16.msra.mxu0 0
      %3704 = vmatpush.bf16.msra.mxu0 0
      %3705 = vmatpush.bf16.msra.mxu0 %v3696
      %3706 = vmatmul.bf16.gmra.mxu0 %v3648
      %v3707 = vpop.f32.mrf.mxu0
      %v3708 = vadd.f32 0.0, %v3707
      %v3709 = vpop.f32.mrf.mxu0
      %v3710 = vadd.f32 0.0, %v3709
      %3711 = vmatmul.bf16.gmra.mxu0 %v3651
      %v3712 = vpop.f32.mrf.mxu0
      %v3713 = vadd.f32 0.0, %v3712
      %v3714 = vpop.f32.mrf.mxu0
      %v3715 = vadd.f32 0.0, %v3714
      %3716 = vmatmul.bf16.gmra.mxu0 %v3654
      %v3717 = vpop.f32.mrf.mxu0
      %v3718 = vadd.f32 0.0, %v3717
      %v3719 = vpop.f32.mrf.mxu0
      %v3720 = vadd.f32 0.0, %v3719
      %3721 = vmatmul.bf16.gmra.mxu0 %v3657
      %v3722 = vpop.f32.mrf.mxu0
      %v3723 = vadd.f32 0.0, %v3722
      %v3724 = vpop.f32.mrf.mxu0
      %v3725 = vadd.f32 0.0, %v3724
      %3726 = vmatmul.bf16.gmra.mxu0 %v3660
      %v3727 = vpop.f32.mrf.mxu0
      %v3728 = vadd.f32 0.0, %v3727
      %v3729 = vpop.f32.mrf.mxu0
      %v3730 = vadd.f32 0.0, %v3729
      %3731 = vmatmul.bf16.gmra.mxu0 %v3663
      %v3732 = vpop.f32.mrf.mxu0
      %v3733 = vadd.f32 0.0, %v3732
      %v3734 = vpop.f32.mrf.mxu0
      %v3735 = vadd.f32 0.0, %v3734
      %3736 = vmatmul.bf16.gmra.mxu0 %v3666
      %v3737 = vpop.f32.mrf.mxu0
      %v3738 = vadd.f32 0.0, %v3737
      %v3739 = vpop.f32.mrf.mxu0
      %v3740 = vadd.f32 0.0, %v3739
      %3741 = vmatmul.bf16.gmra.mxu0 %v3669
      %v3742 = vpop.f32.mrf.mxu0
      %v3743 = vadd.f32 0.0, %v3742
      %v3744 = vpop.f32.mrf.mxu0
      %v3745 = vadd.f32 0.0, %v3744
      %3746 = vmatmul.bf16.gmra.mxu0 %v3672
      %v3747 = vpop.f32.mrf.mxu0
      %v3748 = vadd.f32 0.0, %v3747
      %v3749 = vpop.f32.mrf.mxu0
      %v3750 = vadd.f32 0.0, %v3749
      %3751 = vmatmul.bf16.gmra.mxu0 %v3675
      %v3752 = vpop.f32.mrf.mxu0
      %v3753 = vadd.f32 0.0, %v3752
      %v3754 = vpop.f32.mrf.mxu0
      %v3755 = vadd.f32 0.0, %v3754
      %3756 = vmatmul.bf16.gmra.mxu0 %v3678
      %v3757 = vpop.f32.mrf.mxu0
      %v3758 = vadd.f32 0.0, %v3757
      %v3759 = vpop.f32.mrf.mxu0
      %v3760 = vadd.f32 0.0, %v3759
      %3761 = vmatmul.bf16.gmra.mxu0 %v3681
      %v3762 = vpop.f32.mrf.mxu0
      %v3763 = vadd.f32 0.0, %v3762
      %v3764 = vpop.f32.mrf.mxu0
      %v3765 = vadd.f32 0.0, %v3764
      %3766 = vmatmul.bf16.gmra.mxu0 %v3684
      %v3767 = vpop.f32.mrf.mxu0
      %v3768 = vadd.f32 0.0, %v3767
      %v3769 = vpop.f32.mrf.mxu0
      %v3770 = vadd.f32 0.0, %v3769
      %3771 = vmatmul.bf16.gmra.mxu0 %v3687
      %v3772 = vpop.f32.mrf.mxu0
      %v3773 = vadd.f32 0.0, %v3772
      %v3774 = vpop.f32.mrf.mxu0
      %v3775 = vadd.f32 0.0, %v3774
      %3776 = vmatmul.bf16.gmra.mxu0 %v3690
      %v3777 = vpop.f32.mrf.mxu0
      %v3778 = vadd.f32 0.0, %v3777
      %v3779 = vpop.f32.mrf.mxu0
      %v3780 = vadd.f32 0.0, %v3779
      %3781 = vmatmul.bf16.gmra.mxu0 %v3693
      %v3782 = vpop.f32.mrf.mxu0
      %v3783 = vadd.f32 0.0, %v3782
      %v3784 = vpop.f32.mrf.mxu0
      %v3785 = vadd.f32 0.0, %v3784
      %3786 = vdwg.mxu0
      %v3787 = vadd.f32 %v3534, %v3708
      %v3788 = vadd.f32 %v3535, %v3710
      %v3789 = vadd.f32 %v3536, %v3713
      %v3790 = vadd.f32 %v3537, %v3715
      %v3791 = vadd.f32 %v3538, %v3718
      %v3792 = vadd.f32 %v3539, %v3720
      %v3793 = vadd.f32 %v3540, %v3723
      %v3794 = vadd.f32 %v3541, %v3725
      %v3795 = vadd.f32 %v3542, %v3728
      %v3796 = vadd.f32 %v3543, %v3730
      %v3797 = vadd.f32 %v3544, %v3733
      %v3798 = vadd.f32 %v3545, %v3735
      %v3799 = vadd.f32 %v3546, %v3738
      %v3800 = vadd.f32 %v3547, %v3740
      %v3801 = vadd.f32 %v3548, %v3743
      %v3802 = vadd.f32 %v3549, %v3745
      %v3803 = vadd.f32 %v3550, %v3748
      %v3804 = vadd.f32 %v3551, %v3750
      %v3805 = vadd.f32 %v3552, %v3753
      %v3806 = vadd.f32 %v3553, %v3755
      %v3807 = vadd.f32 %v3554, %v3758
      %v3808 = vadd.f32 %v3555, %v3760
      %v3809 = vadd.f32 %v3556, %v3763
      %v3810 = vadd.f32 %v3557, %v3765
      %v3811 = vadd.f32 %v3558, %v3768
      %v3812 = vadd.f32 %v3559, %v3770
      %v3813 = vadd.f32 %v3560, %v3773
      %v3814 = vadd.f32 %v3561, %v3775
      %v3815 = vadd.f32 %v3562, %v3778
      %v3816 = vadd.f32 %v3563, %v3780
      %v3817 = vadd.f32 %v3564, %v3783
      %v3818 = vadd.f32 %v3565, %v3785
      %v3819 = vld [vmem:[%s7] sm:$0x1]
      %v3821 = vperm.slane %v3819, 0
      %v3823 = vadd.f32 %v3787, %v3821
      %v3824 = vadd.f32 %v3788, %v3821
      %v3825 = vadd.f32 %v3789, %v3821
      %v3826 = vadd.f32 %v3790, %v3821
      %v3827 = vadd.f32 %v3791, %v3821
      %v3828 = vadd.f32 %v3792, %v3821
      %v3829 = vadd.f32 %v3793, %v3821
      %v3830 = vadd.f32 %v3794, %v3821
      %v3831 = vadd.f32 %v3795, %v3821
      %v3832 = vadd.f32 %v3796, %v3821
      %v3833 = vadd.f32 %v3797, %v3821
      %v3834 = vadd.f32 %v3798, %v3821
      %v3835 = vadd.f32 %v3799, %v3821
      %v3836 = vadd.f32 %v3800, %v3821
      %v3837 = vadd.f32 %v3801, %v3821
      %v3838 = vadd.f32 %v3802, %v3821
      %v3839 = vadd.f32 %v3803, %v3821
      %v3840 = vadd.f32 %v3804, %v3821
      %v3841 = vadd.f32 %v3805, %v3821
      %v3842 = vadd.f32 %v3806, %v3821
      %v3843 = vadd.f32 %v3807, %v3821
      %v3844 = vadd.f32 %v3808, %v3821
      %v3845 = vadd.f32 %v3809, %v3821
      %v3846 = vadd.f32 %v3810, %v3821
      %v3847 = vadd.f32 %v3811, %v3821
      %v3848 = vadd.f32 %v3812, %v3821
      %v3849 = vadd.f32 %v3813, %v3821
      %v3850 = vadd.f32 %v3814, %v3821
      %v3851 = vadd.f32 %v3815, %v3821
      %v3852 = vadd.f32 %v3816, %v3821
      %v3853 = vadd.f32 %v3817, %v3821
      %v3854 = vadd.f32 %v3818, %v3821
      %3855 = vst.msk [vmem:[%s305] sm:$0xff] %vm2784, %v3823
      %3856 = vst.msk [vmem:[%s305 + $0x8] sm:$0xff] %vm2784, %v3824
      %3857 = vst.msk [vmem:[%s305 + $0x10] sm:$0xff] %vm2784, %v3825
      %3858 = vst.msk [vmem:[%s305 + $0x18] sm:$0xff] %vm2784, %v3826
      %3859 = vst.msk [vmem:[%s305 + $0x20] sm:$0xff] %vm2784, %v3827
      %3860 = vst.msk [vmem:[%s305 + $0x28] sm:$0xff] %vm2784, %v3828
      %3861 = vst.msk [vmem:[%s305 + $0x30] sm:$0xff] %vm2784, %v3829
      %3862 = vst.msk [vmem:[%s305 + $0x38] sm:$0xff] %vm2784, %v3830
      %3863 = vst.msk [vmem:[%s305 + $0x40] sm:$0xff] %vm2784, %v3831
      %3864 = vst.msk [vmem:[%s305 + $0x48] sm:$0xff] %vm2784, %v3832
      %3865 = vst.msk [vmem:[%s305 + $0x50] sm:$0xff] %vm2784, %v3833
      %3866 = vst.msk [vmem:[%s305 + $0x58] sm:$0xff] %vm2784, %v3834
      %3867 = vst.msk [vmem:[%s305 + $0x60] sm:$0xff] %vm2784, %v3835
      %3868 = vst.msk [vmem:[%s305 + $0x68] sm:$0xff] %vm2784, %v3836
      %3869 = vst.msk [vmem:[%s305 + $0x70] sm:$0xff] %vm2784, %v3837
      %3870 = vst.msk [vmem:[%s305 + $0x78] sm:$0xff] %vm2784, %v3838
      %3871 = vst.msk [vmem:[%s305 + $0x80] sm:$0xff] %vm2784, %v3839
      %3872 = vst.msk [vmem:[%s305 + $0x88] sm:$0xff] %vm2784, %v3840
      %3873 = vst.msk [vmem:[%s305 + $0x90] sm:$0xff] %vm2784, %v3841
      %3874 = vst.msk [vmem:[%s305 + $0x98] sm:$0xff] %vm2784, %v3842
      %3875 = vst.msk [vmem:[%s305 + $0xa0] sm:$0xff] %vm2784, %v3843
      %3876 = vst.msk [vmem:[%s305 + $0xa8] sm:$0xff] %vm2784, %v3844
      %3877 = vst.msk [vmem:[%s305 + $0xb0] sm:$0xff] %vm2784, %v3845
      %3878 = vst.msk [vmem:[%s305 + $0xb8] sm:$0xff] %vm2784, %v3846
      %3879 = vst.msk [vmem:[%s305 + $0xc0] sm:$0xff] %vm2784, %v3847
      %3880 = vst.msk [vmem:[%s305 + $0xc8] sm:$0xff] %vm2784, %v3848
      %3881 = vst.msk [vmem:[%s305 + $0xd0] sm:$0xff] %vm2784, %v3849
      %3882 = vst.msk [vmem:[%s305 + $0xd8] sm:$0xff] %vm2784, %v3850
      %3883 = vst.msk [vmem:[%s305 + $0xe0] sm:$0xff] %vm2784, %v3851
      %3884 = vst.msk [vmem:[%s305 + $0xe8] sm:$0xff] %vm2784, %v3852
      %3885 = vst.msk [vmem:[%s305 + $0xf0] sm:$0xff] %vm2784, %v3853
      %3886 = vst.msk [vmem:[%s305 + $0xf8] sm:$0xff] %vm2784, %v3854
      %p3887 = scmp.lt.s32.totalorder %s19, 1
      %s3888 = scalar_select %p3887, %s19, 1
      %s3889 = smul.addr %s3888, 32
      %s3890 = smul.addr %s3889, 8
      %s3891 = scalar_lea.vmem %s8, %s3890
      // Predicated region
      $region53: #{tpu_custom_call.1} parent=51 // pred_check
        %p3892 = pneg %p210
      $region54: #{tpu_custom_call.1} parent=51 // pred_check_branch
        %3894 = sbr.rel (%p3892) target = $region56
      $region55: #{tpu_custom_call.1} parent=51 // pred_region
        _
      $region56: #{tpu_custom_call.1} parent=51 // pred_fallthru
        _
    $region52: #{tpu_custom_call.1} parent=5 // pred_fallthru
      _
    %p3895 = scmp.le.s32.totalorder 2, %s14
    // Predicated region
    $region57: #{tpu_custom_call.1} parent=5 // pred_check
      %p3896 = pneg %p3895
    $region58: #{tpu_custom_call.1} parent=5 // pred_check_branch
      %3898 = sbr.rel (%p3896) target = $region60
    $region59: #{tpu_custom_call.1} parent=5 // pred_region
      %s3899 = ssub.s32 %s14, 2
      // Predicated region
      $region61: #{tpu_custom_call.1} parent=59 // pred_check
        %p3900 = pneg %p216
      $region62: #{tpu_custom_call.1} parent=59 // pred_check_branch
        %3902 = sbr.rel (%p3900) target = $region64
      $region63: #{tpu_custom_call.1} parent=59 // pred_region
        %p3903 = scmp.lt.s32.totalorder %s20, 1
        %s3904 = scalar_select %p3903, %s20, 1
        %s3905 = smul.addr %s3904, 32
        %s3906 = smul.addr %s3905, 8
        %s3907 = scalar_lea.vmem %s8, %s3906
      $region64: #{tpu_custom_call.1} parent=59 // pred_fallthru
        _
    $region60: #{tpu_custom_call.1} parent=5 // pred_fallthru
      _
  $region6: #{tpu_custom_call.1} parent=0 // loop_footer
    %s18 = sadd.s32 1, %s14
  $region7: #{tpu_custom_call.1} parent=0 // loop_footer_branch
    %13 = sbr.rel target = $region3
  $region8: #{tpu_custom_call.1} parent=0 // loop_exit
    _

</llo_original>
